<compile_context>
chip_gen: v6e
topology: v6e:2x2x1
jax: 0.10.0
libtpu: 0.0.40
codegen_flags: <defaults>
</compile_context>

<pallas_src>
import functools

import jax
import jax.numpy as jnp
from jax.experimental import pallas as pl
from jax.experimental.pallas import tpu as pltpu


_GATE_PERM = (0, 1, 3, 2)   # PyTorch gate order [i, f, g, o] -> kernel [i, f, o, g]


def _round_up(x, m):
    return ((x + m - 1) // m) * m


def _gate_pad_weight(w, in_pad, H, Hp, dtype):
    """PyTorch-layout LSTM weight (4H, in_dim) -> (in_pad, 4*Hp), gate k of the
    kernel order [i, f, o, g] occupying lane-aligned cols [k*Hp, k*Hp + H)."""
    in_dim = w.shape[1]
    wt = jnp.asarray(w, jnp.float32).T.reshape(in_dim, 4, H)
    wt = jnp.take(wt, jnp.array(_GATE_PERM), axis=1)
    out = jnp.zeros((in_pad, 4, Hp), jnp.float32)
    out = out.at[:in_dim, :, :H].set(wt)
    return out.reshape(in_pad, 4 * Hp).astype(dtype)


def _gate_pad_bias(b, H, Hp):
    """(4H,) -> (1, 4*Hp), gate-blocked in kernel order, kept f32."""
    bb = jnp.asarray(b, jnp.float32).reshape(4, H)
    bb = jnp.take(bb, jnp.array(_GATE_PERM), axis=0)
    out = jnp.zeros((4, Hp), jnp.float32).at[:, :H].set(bb)
    return out.reshape(1, 4 * Hp)


def _clickbait_lstm_kernel(L, T, Bt, Hp, cdt, *refs):
    """refs = (x, h0, c0, [w_ih[l], w_hh[l], b[l]] for l in 0..L-1,
               w_lin, b_lin, y, z_buf[, seq_buf])

    x       : (1, T*Bt, Ep)  bf16 padded time-major embeddings (batch tile)
    h0, c0  : (L, Bt, Hp)    f32
    w_ih[l] : (Ep|Hp, 4Hp)   bf16, gate-blocked
    w_hh[l] : (Hp, 4Hp)      bf16, gate-blocked
    b[l]    : (1, 4Hp)       f32 (= b_ih + b_hh)
    w_lin   : (1, Hp) f32, b_lin: (1, 1) f32, y: (Bt, 1) f32
    z_buf   : (T*Bt, 4Hp) f32 scratch; seq_buf: (T*Bt, Hp) bf16 scratch (L>1)
    """
    x_ref, h0_ref, c0_ref = refs[0], refs[1], refs[2]
    pos = 3
    layer_refs = []
    for _ in range(L):
        layer_refs.append((refs[pos], refs[pos + 1], refs[pos + 2]))
        pos += 3
    wlin_ref, blin_ref, y_ref = refs[pos], refs[pos + 1], refs[pos + 2]
    z_buf = refs[pos + 3]
    seq_buf = refs[pos + 4] if L > 1 else None

    h_last = None
    for layer in range(L):                       # static unroll over layers
        w_ih_ref, w_hh_ref, b_ref = layer_refs[layer]
        x_all = x_ref[0] if layer == 0 else seq_buf[...]   # (T*Bt, in) bf16

        # Hoisted input projection: one big matmul per layer, off the serial
        # recurrence chain.  bf16 operands, f32 accumulate + f32 bias.
        z_buf[...] = (
            jnp.dot(x_all, w_ih_ref[...], preferred_element_type=jnp.float32)
            + b_ref[...])

        h = h0_ref[layer]                        # (Bt, Hp) f32, vreg-carried
        c = c0_ref[layer]
        for t in range(T):                       # static unroll over timesteps
            # Only the hidden-state matmul remains on the serial chain.
            z = (z_buf[t * Bt:(t + 1) * Bt, :]
                 + jnp.dot(h.astype(cdt), w_hh_ref[...],
                           preferred_element_type=jnp.float32))
            # Gate blocks are whole lane tiles: [ i | f | o | g ].
            gates = jax.nn.sigmoid(z[:, :3 * Hp])
            i_g = gates[:, 0 * Hp:1 * Hp]
            f_g = gates[:, 1 * Hp:2 * Hp]
            o_g = gates[:, 2 * Hp:3 * Hp]
            g_g = jnp.tanh(z[:, 3 * Hp:4 * Hp])
            c = f_g * c + i_g * g_g
            h = o_g * jnp.tanh(c)
            if layer < L - 1:                    # feed the next layer
                seq_buf[t * Bt:(t + 1) * Bt, :] = h.astype(cdt)
        h_last = h

    # hn[-1] -> Linear(H, 1) -> Sigmoid (padded lanes of h and w_lin are 0).
    logits = (jnp.sum(h_last * wlin_ref[...], axis=-1, keepdims=True)
              + blin_ref[...])                   # (Bt, 1)
    y_ref[...] = jax.nn.sigmoid(logits)


def clickbait_rnn_forward(x_ids, h0, c0, params, *, batch_tile=128,
                          compute_dtype=jnp.bfloat16, interpret=False):
    """x_ids: (B, T) int32, h0/c0: (L, B, H). Returns (B, 1) f32."""
    emb_matrix = jnp.asarray(params["embedding"], jnp.float32)   # (V, E)
    lstm_params = params["lstm"]        # [(w_ih, w_hh, b_ih, b_hh)] * L
    w_lin, b_lin = params["linear"]     # (1, H), (1,)

    B, T = x_ids.shape
    L = len(lstm_params)
    H = h0.shape[-1]
    E = emb_matrix.shape[1]

    Hp = _round_up(H, 128)              # lane-aligned gate width
    Ep = _round_up(E, 128)              # lane-aligned embedding width

    # Batch tiling: aim for ~128 MXU rows, but keep >=2 parallel grid steps
    # when the batch allows it (v7x megacore).
    B8 = _round_up(B, 8)
    Bt = min(_round_up(batch_tile, 8), B8)
    if B8 // Bt < 2 and B8 >= 16:
        Bt = _round_up((B8 + 1) // 2, 8)
    Bp = _round_up(B, Bt)
    G = Bp // Bt

    # ---- embeddings: time-major gather, padded + batch-tiled, bf16 --------
    # TODO(synk): the vocab gather itself stays in the wrapper (data-dependent
    # gather is better served by XLA than an in-kernel DMA walk at this size).
    emb_tm = jnp.take(emb_matrix, x_ids.T, axis=0)               # (T, B, E)
    x_p = jnp.zeros((T, Bp, Ep), compute_dtype)
    x_p = x_p.at[:, :B, :E].set(emb_tm.astype(compute_dtype))
    x_tiled = (x_p.reshape(T, G, Bt, Ep)
                   .transpose(1, 0, 2, 3)
                   .reshape(G, T * Bt, Ep))                      # (G, T*Bt, Ep)

    h0_p = jnp.zeros((L, Bp, Hp), jnp.float32).at[:, :B, :H].set(
        jnp.asarray(h0, jnp.float32))
    c0_p = jnp.zeros((L, Bp, Hp), jnp.float32).at[:, :B, :H].set(
        jnp.asarray(c0, jnp.float32))

    inputs = [x_tiled, h0_p, c0_p]
    in_specs = [
        pl.BlockSpec((1, T * Bt, Ep), lambda i: (i, 0, 0)),
        pl.BlockSpec((L, Bt, Hp), lambda i: (0, i, 0)),
        pl.BlockSpec((L, Bt, Hp), lambda i: (0, i, 0)),
    ]
    for l in range(L):
        w_ih_l, w_hh_l, b_ih_l, b_hh_l = lstm_params[l]
        in_pad = Ep if l == 0 else Hp
        inputs.append(_gate_pad_weight(w_ih_l, in_pad, H, Hp, compute_dtype))
        in_specs.append(pl.BlockSpec((in_pad, 4 * Hp), lambda i: (0, 0)))
        inputs.append(_gate_pad_weight(w_hh_l, Hp, H, Hp, compute_dtype))
        in_specs.append(pl.BlockSpec((Hp, 4 * Hp), lambda i: (0, 0)))
        inputs.append(_gate_pad_bias(jnp.asarray(b_ih_l) + jnp.asarray(b_hh_l),
                                     H, Hp))
        in_specs.append(pl.BlockSpec((1, 4 * Hp), lambda i: (0, 0)))
    w_lin_p = jnp.zeros((1, Hp), jnp.float32).at[:, :H].set(
        jnp.asarray(w_lin, jnp.float32))
    inputs.append(w_lin_p)
    in_specs.append(pl.BlockSpec((1, Hp), lambda i: (0, 0)))
    inputs.append(jnp.asarray(b_lin, jnp.float32).reshape(1, 1))
    in_specs.append(pl.BlockSpec((1, 1), lambda i: (0, 0)))

    scratch_shapes = [pltpu.VMEM((T * Bt, 4 * Hp), jnp.float32)]   # z_buf
    if L > 1:
        scratch_shapes.append(pltpu.VMEM((T * Bt, Hp), compute_dtype))  # seq

    # ---- explicit VMEM budget: double-buffered blocks + scratch + headroom -
    csz = jnp.dtype(compute_dtype).itemsize
    est = 2 * (T * Bt * Ep * csz)                  # x block
    est += 2 * 2 * (L * Bt * Hp * 4)               # h0 + c0 blocks
    for l in range(L):
        in_pad = Ep if l == 0 else Hp
        est += 2 * ((in_pad + Hp) * 4 * Hp * csz + 4 * Hp * 4)
    est += 2 * (Hp * 4 + 4 + Bt * 4)               # w_lin, b_lin, y
    est += T * Bt * 4 * Hp * 4                     # z_buf
    if L > 1:
        est += T * Bt * Hp * csz                   # seq_buf
    vmem_limit = min(max(int(est * 1.5), 32 * 1024 * 1024), 64 * 1024 * 1024)

    kernel = functools.partial(_clickbait_lstm_kernel, L, T, Bt, Hp,
                               compute_dtype)

    y_p = pl.pallas_call(
        kernel,
        grid=(G,),                                  # batch-parallel grid
        out_shape=jax.ShapeDtypeStruct((Bp, 1), jnp.float32),
        in_specs=in_specs,
        out_specs=pl.BlockSpec((Bt, 1), lambda i: (i, 0)),
        scratch_shapes=scratch_shapes,
        compiler_params=pltpu.CompilerParams(
            dimension_semantics=("parallel",),
            vmem_limit_bytes=vmem_limit),
        interpret=interpret,
    )(*inputs)
    return y_p[:B]


def reference_forward(x_ids, h0, c0, params):
    """Pure-JAX f32 reference matching torch.nn.LSTM(batch_first=True)."""
    emb = jnp.take(params["embedding"], x_ids, axis=0)          # (B, T, E)
    H = h0.shape[-1]
    layer_in = emb
    h_last = None
    for l, (w_ih, w_hh, b_ih, b_hh) in enumerate(params["lstm"]):
        h, c = h0[l], c0[l]
        outs = []
        for t in range(layer_in.shape[1]):
            x_t = layer_in[:, t, :]
            z = x_t @ w_ih.T + h @ w_hh.T + b_ih + b_hh
            i = jax.nn.sigmoid(z[:, 0 * H:1 * H])
            f = jax.nn.sigmoid(z[:, 1 * H:2 * H])
            g = jnp.tanh(z[:, 2 * H:3 * H])
            o = jax.nn.sigmoid(z[:, 3 * H:4 * H])
            c = f * c + i * g
            h = o * jnp.tanh(c)
            outs.append(h)
        layer_in = jnp.stack(outs, axis=1)
        h_last = h
    w_lin, b_lin = params["linear"]
    return jax.nn.sigmoid(h_last @ w_lin.T + b_lin)


def init_params(key, vocab_size, emb_dim, hidden_size, n_layers):
    keys = jax.random.split(key, 3 + 4 * n_layers)
    bound = 1.0 / jnp.sqrt(hidden_size)
    params = {
        "embedding": jax.random.normal(keys[0], (vocab_size, emb_dim),
                                       jnp.float32) * 0.1,
        "lstm": [],
        "linear": (
            jax.random.uniform(keys[1], (1, hidden_size), jnp.float32,
                               -bound, bound),
            jax.random.uniform(keys[2], (1,), jnp.float32, -bound, bound),
        ),
    }
    for l in range(n_layers):
        in_dim = emb_dim if l == 0 else hidden_size
        k = keys[3 + 4 * l: 3 + 4 * (l + 1)]
        params["lstm"].append((
            jax.random.uniform(k[0], (4 * hidden_size, in_dim), jnp.float32,
                               -bound, bound),
            jax.random.uniform(k[1], (4 * hidden_size, hidden_size),
                               jnp.float32, -bound, bound),
            jax.random.uniform(k[2], (4 * hidden_size,), jnp.float32,
                               -bound, bound),
            jax.random.uniform(k[3], (4 * hidden_size,), jnp.float32,
                               -bound, bound),
        ))
    return params


if __name__ == "__main__":
    B, T = 2, 8          # batch, sequence length
    V, E = 50, 20        # vocab size, embedding dim
    H, L = 32, 2         # hidden size, num LSTM layers

    key = jax.random.PRNGKey(0)
    k_param, k_x, k_h, k_c = jax.random.split(key, 4)

    params = init_params(k_param, V, E, H, L)
    x_ids = jax.random.randint(k_x, (B, T), 0, V, dtype=jnp.int32)
    h0 = jax.random.normal(k_h, (L, B, H), jnp.float32) * 0.1
    c0 = jax.random.normal(k_c, (L, B, H), jnp.float32) * 0.1

    y = clickbait_rnn_forward(x_ids, h0, c0, params)
    y = jax.block_until_ready(y)

    y_ref = reference_forward(x_ids, h0, c0, params)
    assert y.shape == (B, 1)
    # bf16 matmul operands (f32 accumulate) -> compare against the f32
    # reference with a bf16-appropriate tolerance.
    assert jnp.max(jnp.abs(y - y_ref)) < 2e-2, "mismatch vs pure-JAX reference"

    print("KERNEL_OK")
</pallas_src>

<mosaic_0001>
module attributes {stable_mosaic.version = 11 : i64} {
  func.func @_clickbait_lstm_kernel(%arg0: i32, %arg1: memref<1x64x128xbf16, #tpu.memory_space<vmem>>, %arg2: memref<2x8x128xf32, #tpu.memory_space<vmem>>, %arg3: memref<2x8x128xf32, #tpu.memory_space<vmem>>, %arg4: memref<128x512xbf16, #tpu.memory_space<vmem>>, %arg5: memref<128x512xbf16, #tpu.memory_space<vmem>>, %arg6: memref<1x512xf32, #tpu.memory_space<vmem>>, %arg7: memref<128x512xbf16, #tpu.memory_space<vmem>>, %arg8: memref<128x512xbf16, #tpu.memory_space<vmem>>, %arg9: memref<1x512xf32, #tpu.memory_space<vmem>>, %arg10: memref<1x128xf32, #tpu.memory_space<vmem>>, %arg11: memref<1x1xf32, #tpu.memory_space<vmem>>, %arg12: memref<8x1xf32, #tpu.memory_space<vmem>>, %arg13: memref<64x512xf32, #tpu.memory_space<vmem>>, %arg14: memref<64x128xbf16, #tpu.memory_space<vmem>>) attributes {dimension_semantics = [#tpu.dimension_semantics<parallel>], iteration_bounds = array<i64: 1>, scalar_prefetch = 0 : i64, scratch_operands = 2 : i64, tpu.core_type = #tpu.core_type<tc>, window_params = [{transform_indices = @transform_0, window_bounds = array<i64: 1, 64, 128>}, {transform_indices = @transform_1, window_bounds = array<i64: 2, 8, 128>}, {transform_indices = @transform_2, window_bounds = array<i64: 2, 8, 128>}, {pipeline_mode = #tpu.pipeline_mode<synchronous>, transform_indices = @transform_3, window_bounds = array<i64: 128, 512>}, {pipeline_mode = #tpu.pipeline_mode<synchronous>, transform_indices = @transform_4, window_bounds = array<i64: 128, 512>}, {pipeline_mode = #tpu.pipeline_mode<synchronous>, transform_indices = @transform_5, window_bounds = array<i64: 1, 512>}, {pipeline_mode = #tpu.pipeline_mode<synchronous>, transform_indices = @transform_6, window_bounds = array<i64: 128, 512>}, {pipeline_mode = #tpu.pipeline_mode<synchronous>, transform_indices = @transform_7, window_bounds = array<i64: 128, 512>}, {pipeline_mode = #tpu.pipeline_mode<synchronous>, transform_indices = @transform_8, window_bounds = array<i64: 1, 512>}, {pipeline_mode = #tpu.pipeline_mode<synchronous>, transform_indices = @transform_9, window_bounds = array<i64: 1, 128>}, {pipeline_mode = #tpu.pipeline_mode<synchronous>, transform_indices = @transform_10, window_bounds = array<i64: 1, 1>}, {transform_indices = @transform_11, window_bounds = array<i64: 8, 1>}]} {
    %c0 = arith.constant 0 : index
    %c0_0 = arith.constant 0 : index
    %c0_1 = arith.constant 0 : index
    %0 = vector.load %arg1[%c0, %c0_0, %c0_1] : memref<1x64x128xbf16, #tpu.memory_space<vmem>>, vector<1x64x128xbf16>
    %1 = vector.shape_cast %0 : vector<1x64x128xbf16> to vector<64x128xbf16>
    %c0_2 = arith.constant 0 : index
    %c0_3 = arith.constant 0 : index
    %2 = vector.load %arg4[%c0_2, %c0_3] : memref<128x512xbf16, #tpu.memory_space<vmem>>, vector<128x512xbf16>
    %cst = arith.constant dense<0.000000e+00> : vector<64x512xf32>
    %3 = tpu.matmul %1, %2, %cst {dimension_numbers = #tpu.dot_dimension_numbers<[1], [0], [0], [1], [0, 0, 1, 1], [], []>} : vector<64x128xbf16>, vector<128x512xbf16>, vector<64x512xf32> -> vector<64x512xf32>
    %c0_4 = arith.constant 0 : index
    %c0_5 = arith.constant 0 : index
    %4 = vector.load %arg6[%c0_4, %c0_5] : memref<1x512xf32, #tpu.memory_space<vmem>>, vector<1x512xf32>
    %5 = vector.broadcast %4 : vector<1x512xf32> to vector<64x512xf32>
    %6 = arith.addf %3, %5 : vector<64x512xf32>
    %c0_6 = arith.constant 0 : index
    %c0_7 = arith.constant 0 : index
    %7 = vector.load %arg13[%c0_6, %c0_7] : memref<64x512xf32, #tpu.memory_space<vmem>>, vector<64x512xf32>
    tpu.vector_store %arg13[%c0_6, %c0_7], %6 {strides = array<i32>} : memref<64x512xf32, #tpu.memory_space<vmem>>, vector<64x512xf32>,
    %c0_8 = arith.constant 0 : index
    %c0_9 = arith.constant 0 : index
    %c0_10 = arith.constant 0 : index
    %8 = vector.load %arg2[%c0_8, %c0_9, %c0_10] : memref<2x8x128xf32, #tpu.memory_space<vmem>>, vector<1x8x128xf32>
    %9 = vector.shape_cast %8 : vector<1x8x128xf32> to vector<8x128xf32>
    %c0_11 = arith.constant 0 : index
    %c0_12 = arith.constant 0 : index
    %c0_13 = arith.constant 0 : index
    %10 = vector.load %arg3[%c0_11, %c0_12, %c0_13] : memref<2x8x128xf32, #tpu.memory_space<vmem>>, vector<1x8x128xf32>
    %11 = vector.shape_cast %10 : vector<1x8x128xf32> to vector<8x128xf32>
    %c0_14 = arith.constant 0 : index
    %c0_15 = arith.constant 0 : index
    %12 = vector.load %arg13[%c0_14, %c0_15] : memref<64x512xf32, #tpu.memory_space<vmem>>, vector<8x512xf32>
    %13 = arith.truncf %9 : vector<8x128xf32> to vector<8x128xbf16>
    %c0_16 = arith.constant 0 : index
    %c0_17 = arith.constant 0 : index
    %14 = vector.load %arg5[%c0_16, %c0_17] : memref<128x512xbf16, #tpu.memory_space<vmem>>, vector<128x512xbf16>
    %cst_18 = arith.constant dense<0.000000e+00> : vector<8x512xf32>
    %15 = tpu.matmul %13, %14, %cst_18 {dimension_numbers = #tpu.dot_dimension_numbers<[1], [0], [0], [1], [0, 0, 1, 1], [], []>} : vector<8x128xbf16>, vector<128x512xbf16>, vector<8x512xf32> -> vector<8x512xf32>
    %16 = arith.addf %12, %15 : vector<8x512xf32>
    %17 = vector.extract_strided_slice %16 {offsets = [0, 0], sizes = [8, 384], strides = [1, 1]} : vector<8x512xf32> to vector<8x384xf32>
    %18 = arith.negf %17 : vector<8x384xf32>
    %19 = math.exp %18 : vector<8x384xf32>
    %cst_19 = arith.constant 1.000000e+00 : f32
    %20 = vector.broadcast %cst_19 : f32 to vector<8x384xf32>
    %21 = arith.addf %20, %19 : vector<8x384xf32>
    %22 = arith.divf %20, %21 : vector<8x384xf32>
    %23 = vector.extract_strided_slice %22 {offsets = [0, 0], sizes = [8, 128], strides = [1, 1]} : vector<8x384xf32> to vector<8x128xf32>
    %24 = vector.extract_strided_slice %22 {offsets = [0, 128], sizes = [8, 128], strides = [1, 1]} : vector<8x384xf32> to vector<8x128xf32>
    %25 = vector.extract_strided_slice %22 {offsets = [0, 256], sizes = [8, 128], strides = [1, 1]} : vector<8x384xf32> to vector<8x128xf32>
    %26 = vector.extract_strided_slice %16 {offsets = [0, 384], sizes = [8, 128], strides = [1, 1]} : vector<8x512xf32> to vector<8x128xf32>
    %27 = math.tanh %26 : vector<8x128xf32>
    %28 = arith.mulf %24, %11 : vector<8x128xf32>
    %29 = arith.mulf %23, %27 : vector<8x128xf32>
    %30 = arith.addf %28, %29 : vector<8x128xf32>
    %31 = math.tanh %30 : vector<8x128xf32>
    %32 = arith.mulf %25, %31 : vector<8x128xf32>
    %33 = arith.truncf %32 : vector<8x128xf32> to vector<8x128xbf16>
    %c0_20 = arith.constant 0 : index
    %c0_21 = arith.constant 0 : index
    %34 = vector.load %arg14[%c0_20, %c0_21] : memref<64x128xbf16, #tpu.memory_space<vmem>>, vector<8x128xbf16>
    tpu.vector_store %arg14[%c0_20, %c0_21], %33 {strides = array<i32>} : memref<64x128xbf16, #tpu.memory_space<vmem>>, vector<8x128xbf16>,
    %c8 = arith.constant 8 : index
    %c0_22 = arith.constant 0 : index
    %35 = vector.load %arg13[%c8, %c0_22] : memref<64x512xf32, #tpu.memory_space<vmem>>, vector<8x512xf32>
    %36 = arith.truncf %32 : vector<8x128xf32> to vector<8x128xbf16>
    %c0_23 = arith.constant 0 : index
    %c0_24 = arith.constant 0 : index
    %37 = vector.load %arg5[%c0_23, %c0_24] : memref<128x512xbf16, #tpu.memory_space<vmem>>, vector<128x512xbf16>
    %cst_25 = arith.constant dense<0.000000e+00> : vector<8x512xf32>
    %38 = tpu.matmul %36, %37, %cst_25 {dimension_numbers = #tpu.dot_dimension_numbers<[1], [0], [0], [1], [0, 0, 1, 1], [], []>} : vector<8x128xbf16>, vector<128x512xbf16>, vector<8x512xf32> -> vector<8x512xf32>
    %39 = arith.addf %35, %38 : vector<8x512xf32>
    %40 = vector.extract_strided_slice %39 {offsets = [0, 0], sizes = [8, 384], strides = [1, 1]} : vector<8x512xf32> to vector<8x384xf32>
    %41 = arith.negf %40 : vector<8x384xf32>
    %42 = math.exp %41 : vector<8x384xf32>
    %cst_26 = arith.constant 1.000000e+00 : f32
    %43 = vector.broadcast %cst_26 : f32 to vector<8x384xf32>
    %44 = arith.addf %43, %42 : vector<8x384xf32>
    %45 = arith.divf %43, %44 : vector<8x384xf32>
    %46 = vector.extract_strided_slice %45 {offsets = [0, 0], sizes = [8, 128], strides = [1, 1]} : vector<8x384xf32> to vector<8x128xf32>
    %47 = vector.extract_strided_slice %45 {offsets = [0, 128], sizes = [8, 128], strides = [1, 1]} : vector<8x384xf32> to vector<8x128xf32>
    %48 = vector.extract_strided_slice %45 {offsets = [0, 256], sizes = [8, 128], strides = [1, 1]} : vector<8x384xf32> to vector<8x128xf32>
    %49 = vector.extract_strided_slice %39 {offsets = [0, 384], sizes = [8, 128], strides = [1, 1]} : vector<8x512xf32> to vector<8x128xf32>
    %50 = math.tanh %49 : vector<8x128xf32>
    %51 = arith.mulf %47, %30 : vector<8x128xf32>
    %52 = arith.mulf %46, %50 : vector<8x128xf32>
    %53 = arith.addf %51, %52 : vector<8x128xf32>
    %54 = math.tanh %53 : vector<8x128xf32>
    %55 = arith.mulf %48, %54 : vector<8x128xf32>
    %56 = arith.truncf %55 : vector<8x128xf32> to vector<8x128xbf16>
    %c8_27 = arith.constant 8 : index
    %c0_28 = arith.constant 0 : index
    %57 = vector.load %arg14[%c8_27, %c0_28] : memref<64x128xbf16, #tpu.memory_space<vmem>>, vector<8x128xbf16>
    tpu.vector_store %arg14[%c8_27, %c0_28], %56 {strides = array<i32>} : memref<64x128xbf16, #tpu.memory_space<vmem>>, vector<8x128xbf16>,
    %c16 = arith.constant 16 : index
    %c0_29 = arith.constant 0 : index
    %58 = vector.load %arg13[%c16, %c0_29] : memref<64x512xf32, #tpu.memory_space<vmem>>, vector<8x512xf32>
    %59 = arith.truncf %55 : vector<8x128xf32> to vector<8x128xbf16>
    %c0_30 = arith.constant 0 : index
    %c0_31 = arith.constant 0 : index
    %60 = vector.load %arg5[%c0_30, %c0_31] : memref<128x512xbf16, #tpu.memory_space<vmem>>, vector<128x512xbf16>
    %cst_32 = arith.constant dense<0.000000e+00> : vector<8x512xf32>
    %61 = tpu.matmul %59, %60, %cst_32 {dimension_numbers = #tpu.dot_dimension_numbers<[1], [0], [0], [1], [0, 0, 1, 1], [], []>} : vector<8x128xbf16>, vector<128x512xbf16>, vector<8x512xf32> -> vector<8x512xf32>
    %62 = arith.addf %58, %61 : vector<8x512xf32>
    %63 = vector.extract_strided_slice %62 {offsets = [0, 0], sizes = [8, 384], strides = [1, 1]} : vector<8x512xf32> to vector<8x384xf32>
    %64 = arith.negf %63 : vector<8x384xf32>
    %65 = math.exp %64 : vector<8x384xf32>
    %cst_33 = arith.constant 1.000000e+00 : f32
    %66 = vector.broadcast %cst_33 : f32 to vector<8x384xf32>
    %67 = arith.addf %66, %65 : vector<8x384xf32>
    %68 = arith.divf %66, %67 : vector<8x384xf32>
    %69 = vector.extract_strided_slice %68 {offsets = [0, 0], sizes = [8, 128], strides = [1, 1]} : vector<8x384xf32> to vector<8x128xf32>
    %70 = vector.extract_strided_slice %68 {offsets = [0, 128], sizes = [8, 128], strides = [1, 1]} : vector<8x384xf32> to vector<8x128xf32>
    %71 = vector.extract_strided_slice %68 {offsets = [0, 256], sizes = [8, 128], strides = [1, 1]} : vector<8x384xf32> to vector<8x128xf32>
    %72 = vector.extract_strided_slice %62 {offsets = [0, 384], sizes = [8, 128], strides = [1, 1]} : vector<8x512xf32> to vector<8x128xf32>
    %73 = math.tanh %72 : vector<8x128xf32>
    %74 = arith.mulf %70, %53 : vector<8x128xf32>
    %75 = arith.mulf %69, %73 : vector<8x128xf32>
    %76 = arith.addf %74, %75 : vector<8x128xf32>
    %77 = math.tanh %76 : vector<8x128xf32>
    %78 = arith.mulf %71, %77 : vector<8x128xf32>
    %79 = arith.truncf %78 : vector<8x128xf32> to vector<8x128xbf16>
    %c16_34 = arith.constant 16 : index
    %c0_35 = arith.constant 0 : index
    %80 = vector.load %arg14[%c16_34, %c0_35] : memref<64x128xbf16, #tpu.memory_space<vmem>>, vector<8x128xbf16>
    tpu.vector_store %arg14[%c16_34, %c0_35], %79 {strides = array<i32>} : memref<64x128xbf16, #tpu.memory_space<vmem>>, vector<8x128xbf16>,
    %c24 = arith.constant 24 : index
    %c0_36 = arith.constant 0 : index
    %81 = vector.load %arg13[%c24, %c0_36] : memref<64x512xf32, #tpu.memory_space<vmem>>, vector<8x512xf32>
    %82 = arith.truncf %78 : vector<8x128xf32> to vector<8x128xbf16>
    %c0_37 = arith.constant 0 : index
    %c0_38 = arith.constant 0 : index
    %83 = vector.load %arg5[%c0_37, %c0_38] : memref<128x512xbf16, #tpu.memory_space<vmem>>, vector<128x512xbf16>
    %cst_39 = arith.constant dense<0.000000e+00> : vector<8x512xf32>
    %84 = tpu.matmul %82, %83, %cst_39 {dimension_numbers = #tpu.dot_dimension_numbers<[1], [0], [0], [1], [0, 0, 1, 1], [], []>} : vector<8x128xbf16>, vector<128x512xbf16>, vector<8x512xf32> -> vector<8x512xf32>
    %85 = arith.addf %81, %84 : vector<8x512xf32>
    %86 = vector.extract_strided_slice %85 {offsets = [0, 0], sizes = [8, 384], strides = [1, 1]} : vector<8x512xf32> to vector<8x384xf32>
    %87 = arith.negf %86 : vector<8x384xf32>
    %88 = math.exp %87 : vector<8x384xf32>
    %cst_40 = arith.constant 1.000000e+00 : f32
    %89 = vector.broadcast %cst_40 : f32 to vector<8x384xf32>
    %90 = arith.addf %89, %88 : vector<8x384xf32>
    %91 = arith.divf %89, %90 : vector<8x384xf32>
    %92 = vector.extract_strided_slice %91 {offsets = [0, 0], sizes = [8, 128], strides = [1, 1]} : vector<8x384xf32> to vector<8x128xf32>
    %93 = vector.extract_strided_slice %91 {offsets = [0, 128], sizes = [8, 128], strides = [1, 1]} : vector<8x384xf32> to vector<8x128xf32>
    %94 = vector.extract_strided_slice %91 {offsets = [0, 256], sizes = [8, 128], strides = [1, 1]} : vector<8x384xf32> to vector<8x128xf32>
    %95 = vector.extract_strided_slice %85 {offsets = [0, 384], sizes = [8, 128], strides = [1, 1]} : vector<8x512xf32> to vector<8x128xf32>
    %96 = math.tanh %95 : vector<8x128xf32>
    %97 = arith.mulf %93, %76 : vector<8x128xf32>
    %98 = arith.mulf %92, %96 : vector<8x128xf32>
    %99 = arith.addf %97, %98 : vector<8x128xf32>
    %100 = math.tanh %99 : vector<8x128xf32>
    %101 = arith.mulf %94, %100 : vector<8x128xf32>
    %102 = arith.truncf %101 : vector<8x128xf32> to vector<8x128xbf16>
    %c24_41 = arith.constant 24 : index
    %c0_42 = arith.constant 0 : index
    %103 = vector.load %arg14[%c24_41, %c0_42] : memref<64x128xbf16, #tpu.memory_space<vmem>>, vector<8x128xbf16>
    tpu.vector_store %arg14[%c24_41, %c0_42], %102 {strides = array<i32>} : memref<64x128xbf16, #tpu.memory_space<vmem>>, vector<8x128xbf16>,
    %c32 = arith.constant 32 : index
    %c0_43 = arith.constant 0 : index
    %104 = vector.load %arg13[%c32, %c0_43] : memref<64x512xf32, #tpu.memory_space<vmem>>, vector<8x512xf32>
    %105 = arith.truncf %101 : vector<8x128xf32> to vector<8x128xbf16>
    %c0_44 = arith.constant 0 : index
    %c0_45 = arith.constant 0 : index
    %106 = vector.load %arg5[%c0_44, %c0_45] : memref<128x512xbf16, #tpu.memory_space<vmem>>, vector<128x512xbf16>
    %cst_46 = arith.constant dense<0.000000e+00> : vector<8x512xf32>
    %107 = tpu.matmul %105, %106, %cst_46 {dimension_numbers = #tpu.dot_dimension_numbers<[1], [0], [0], [1], [0, 0, 1, 1], [], []>} : vector<8x128xbf16>, vector<128x512xbf16>, vector<8x512xf32> -> vector<8x512xf32>
    %108 = arith.addf %104, %107 : vector<8x512xf32>
    %109 = vector.extract_strided_slice %108 {offsets = [0, 0], sizes = [8, 384], strides = [1, 1]} : vector<8x512xf32> to vector<8x384xf32>
    %110 = arith.negf %109 : vector<8x384xf32>
    %111 = math.exp %110 : vector<8x384xf32>
    %cst_47 = arith.constant 1.000000e+00 : f32
    %112 = vector.broadcast %cst_47 : f32 to vector<8x384xf32>
    %113 = arith.addf %112, %111 : vector<8x384xf32>
    %114 = arith.divf %112, %113 : vector<8x384xf32>
    %115 = vector.extract_strided_slice %114 {offsets = [0, 0], sizes = [8, 128], strides = [1, 1]} : vector<8x384xf32> to vector<8x128xf32>
    %116 = vector.extract_strided_slice %114 {offsets = [0, 128], sizes = [8, 128], strides = [1, 1]} : vector<8x384xf32> to vector<8x128xf32>
    %117 = vector.extract_strided_slice %114 {offsets = [0, 256], sizes = [8, 128], strides = [1, 1]} : vector<8x384xf32> to vector<8x128xf32>
    %118 = vector.extract_strided_slice %108 {offsets = [0, 384], sizes = [8, 128], strides = [1, 1]} : vector<8x512xf32> to vector<8x128xf32>
    %119 = math.tanh %118 : vector<8x128xf32>
    %120 = arith.mulf %116, %99 : vector<8x128xf32>
    %121 = arith.mulf %115, %119 : vector<8x128xf32>
    %122 = arith.addf %120, %121 : vector<8x128xf32>
    %123 = math.tanh %122 : vector<8x128xf32>
    %124 = arith.mulf %117, %123 : vector<8x128xf32>
    %125 = arith.truncf %124 : vector<8x128xf32> to vector<8x128xbf16>
    %c32_48 = arith.constant 32 : index
    %c0_49 = arith.constant 0 : index
    %126 = vector.load %arg14[%c32_48, %c0_49] : memref<64x128xbf16, #tpu.memory_space<vmem>>, vector<8x128xbf16>
    tpu.vector_store %arg14[%c32_48, %c0_49], %125 {strides = array<i32>} : memref<64x128xbf16, #tpu.memory_space<vmem>>, vector<8x128xbf16>,
    %c40 = arith.constant 40 : index
    %c0_50 = arith.constant 0 : index
    %127 = vector.load %arg13[%c40, %c0_50] : memref<64x512xf32, #tpu.memory_space<vmem>>, vector<8x512xf32>
    %128 = arith.truncf %124 : vector<8x128xf32> to vector<8x128xbf16>
    %c0_51 = arith.constant 0 : index
    %c0_52 = arith.constant 0 : index
    %129 = vector.load %arg5[%c0_51, %c0_52] : memref<128x512xbf16, #tpu.memory_space<vmem>>, vector<128x512xbf16>
    %cst_53 = arith.constant dense<0.000000e+00> : vector<8x512xf32>
    %130 = tpu.matmul %128, %129, %cst_53 {dimension_numbers = #tpu.dot_dimension_numbers<[1], [0], [0], [1], [0, 0, 1, 1], [], []>} : vector<8x128xbf16>, vector<128x512xbf16>, vector<8x512xf32> -> vector<8x512xf32>
    %131 = arith.addf %127, %130 : vector<8x512xf32>
    %132 = vector.extract_strided_slice %131 {offsets = [0, 0], sizes = [8, 384], strides = [1, 1]} : vector<8x512xf32> to vector<8x384xf32>
    %133 = arith.negf %132 : vector<8x384xf32>
    %134 = math.exp %133 : vector<8x384xf32>
    %cst_54 = arith.constant 1.000000e+00 : f32
    %135 = vector.broadcast %cst_54 : f32 to vector<8x384xf32>
    %136 = arith.addf %135, %134 : vector<8x384xf32>
    %137 = arith.divf %135, %136 : vector<8x384xf32>
    %138 = vector.extract_strided_slice %137 {offsets = [0, 0], sizes = [8, 128], strides = [1, 1]} : vector<8x384xf32> to vector<8x128xf32>
    %139 = vector.extract_strided_slice %137 {offsets = [0, 128], sizes = [8, 128], strides = [1, 1]} : vector<8x384xf32> to vector<8x128xf32>
    %140 = vector.extract_strided_slice %137 {offsets = [0, 256], sizes = [8, 128], strides = [1, 1]} : vector<8x384xf32> to vector<8x128xf32>
    %141 = vector.extract_strided_slice %131 {offsets = [0, 384], sizes = [8, 128], strides = [1, 1]} : vector<8x512xf32> to vector<8x128xf32>
    %142 = math.tanh %141 : vector<8x128xf32>
    %143 = arith.mulf %139, %122 : vector<8x128xf32>
    %144 = arith.mulf %138, %142 : vector<8x128xf32>
    %145 = arith.addf %143, %144 : vector<8x128xf32>
    %146 = math.tanh %145 : vector<8x128xf32>
    %147 = arith.mulf %140, %146 : vector<8x128xf32>
    %148 = arith.truncf %147 : vector<8x128xf32> to vector<8x128xbf16>
    %c40_55 = arith.constant 40 : index
    %c0_56 = arith.constant 0 : index
    %149 = vector.load %arg14[%c40_55, %c0_56] : memref<64x128xbf16, #tpu.memory_space<vmem>>, vector<8x128xbf16>
    tpu.vector_store %arg14[%c40_55, %c0_56], %148 {strides = array<i32>} : memref<64x128xbf16, #tpu.memory_space<vmem>>, vector<8x128xbf16>,
    %c48 = arith.constant 48 : index
    %c0_57 = arith.constant 0 : index
    %150 = vector.load %arg13[%c48, %c0_57] : memref<64x512xf32, #tpu.memory_space<vmem>>, vector<8x512xf32>
    %151 = arith.truncf %147 : vector<8x128xf32> to vector<8x128xbf16>
    %c0_58 = arith.constant 0 : index
    %c0_59 = arith.constant 0 : index
    %152 = vector.load %arg5[%c0_58, %c0_59] : memref<128x512xbf16, #tpu.memory_space<vmem>>, vector<128x512xbf16>
    %cst_60 = arith.constant dense<0.000000e+00> : vector<8x512xf32>
    %153 = tpu.matmul %151, %152, %cst_60 {dimension_numbers = #tpu.dot_dimension_numbers<[1], [0], [0], [1], [0, 0, 1, 1], [], []>} : vector<8x128xbf16>, vector<128x512xbf16>, vector<8x512xf32> -> vector<8x512xf32>
    %154 = arith.addf %150, %153 : vector<8x512xf32>
    %155 = vector.extract_strided_slice %154 {offsets = [0, 0], sizes = [8, 384], strides = [1, 1]} : vector<8x512xf32> to vector<8x384xf32>
    %156 = arith.negf %155 : vector<8x384xf32>
    %157 = math.exp %156 : vector<8x384xf32>
    %cst_61 = arith.constant 1.000000e+00 : f32
    %158 = vector.broadcast %cst_61 : f32 to vector<8x384xf32>
    %159 = arith.addf %158, %157 : vector<8x384xf32>
    %160 = arith.divf %158, %159 : vector<8x384xf32>
    %161 = vector.extract_strided_slice %160 {offsets = [0, 0], sizes = [8, 128], strides = [1, 1]} : vector<8x384xf32> to vector<8x128xf32>
    %162 = vector.extract_strided_slice %160 {offsets = [0, 128], sizes = [8, 128], strides = [1, 1]} : vector<8x384xf32> to vector<8x128xf32>
    %163 = vector.extract_strided_slice %160 {offsets = [0, 256], sizes = [8, 128], strides = [1, 1]} : vector<8x384xf32> to vector<8x128xf32>
    %164 = vector.extract_strided_slice %154 {offsets = [0, 384], sizes = [8, 128], strides = [1, 1]} : vector<8x512xf32> to vector<8x128xf32>
    %165 = math.tanh %164 : vector<8x128xf32>
    %166 = arith.mulf %162, %145 : vector<8x128xf32>
    %167 = arith.mulf %161, %165 : vector<8x128xf32>
    %168 = arith.addf %166, %167 : vector<8x128xf32>
    %169 = math.tanh %168 : vector<8x128xf32>
    %170 = arith.mulf %163, %169 : vector<8x128xf32>
    %171 = arith.truncf %170 : vector<8x128xf32> to vector<8x128xbf16>
    %c48_62 = arith.constant 48 : index
    %c0_63 = arith.constant 0 : index
    %172 = vector.load %arg14[%c48_62, %c0_63] : memref<64x128xbf16, #tpu.memory_space<vmem>>, vector<8x128xbf16>
    tpu.vector_store %arg14[%c48_62, %c0_63], %171 {strides = array<i32>} : memref<64x128xbf16, #tpu.memory_space<vmem>>, vector<8x128xbf16>,
    %c56 = arith.constant 56 : index
    %c0_64 = arith.constant 0 : index
    %173 = vector.load %arg13[%c56, %c0_64] : memref<64x512xf32, #tpu.memory_space<vmem>>, vector<8x512xf32>
    %174 = arith.truncf %170 : vector<8x128xf32> to vector<8x128xbf16>
    %c0_65 = arith.constant 0 : index
    %c0_66 = arith.constant 0 : index
    %175 = vector.load %arg5[%c0_65, %c0_66] : memref<128x512xbf16, #tpu.memory_space<vmem>>, vector<128x512xbf16>
    %cst_67 = arith.constant dense<0.000000e+00> : vector<8x512xf32>
    %176 = tpu.matmul %174, %175, %cst_67 {dimension_numbers = #tpu.dot_dimension_numbers<[1], [0], [0], [1], [0, 0, 1, 1], [], []>} : vector<8x128xbf16>, vector<128x512xbf16>, vector<8x512xf32> -> vector<8x512xf32>
    %177 = arith.addf %173, %176 : vector<8x512xf32>
    %178 = vector.extract_strided_slice %177 {offsets = [0, 0], sizes = [8, 384], strides = [1, 1]} : vector<8x512xf32> to vector<8x384xf32>
    %179 = arith.negf %178 : vector<8x384xf32>
    %180 = math.exp %179 : vector<8x384xf32>
    %cst_68 = arith.constant 1.000000e+00 : f32
    %181 = vector.broadcast %cst_68 : f32 to vector<8x384xf32>
    %182 = arith.addf %181, %180 : vector<8x384xf32>
    %183 = arith.divf %181, %182 : vector<8x384xf32>
    %184 = vector.extract_strided_slice %183 {offsets = [0, 0], sizes = [8, 128], strides = [1, 1]} : vector<8x384xf32> to vector<8x128xf32>
    %185 = vector.extract_strided_slice %183 {offsets = [0, 128], sizes = [8, 128], strides = [1, 1]} : vector<8x384xf32> to vector<8x128xf32>
    %186 = vector.extract_strided_slice %183 {offsets = [0, 256], sizes = [8, 128], strides = [1, 1]} : vector<8x384xf32> to vector<8x128xf32>
    %187 = vector.extract_strided_slice %177 {offsets = [0, 384], sizes = [8, 128], strides = [1, 1]} : vector<8x512xf32> to vector<8x128xf32>
    %188 = math.tanh %187 : vector<8x128xf32>
    %189 = arith.mulf %185, %168 : vector<8x128xf32>
    %190 = arith.mulf %184, %188 : vector<8x128xf32>
    %191 = arith.addf %189, %190 : vector<8x128xf32>
    %192 = math.tanh %191 : vector<8x128xf32>
    %193 = arith.mulf %186, %192 : vector<8x128xf32>
    %194 = arith.truncf %193 : vector<8x128xf32> to vector<8x128xbf16>
    %c56_69 = arith.constant 56 : index
    %c0_70 = arith.constant 0 : index
    %195 = vector.load %arg14[%c56_69, %c0_70] : memref<64x128xbf16, #tpu.memory_space<vmem>>, vector<8x128xbf16>
    tpu.vector_store %arg14[%c56_69, %c0_70], %194 {strides = array<i32>} : memref<64x128xbf16, #tpu.memory_space<vmem>>, vector<8x128xbf16>,
    %c0_71 = arith.constant 0 : index
    %c0_72 = arith.constant 0 : index
    %196 = vector.load %arg14[%c0_71, %c0_72] : memref<64x128xbf16, #tpu.memory_space<vmem>>, vector<64x128xbf16>
    %c0_73 = arith.constant 0 : index
    %c0_74 = arith.constant 0 : index
    %197 = vector.load %arg7[%c0_73, %c0_74] : memref<128x512xbf16, #tpu.memory_space<vmem>>, vector<128x512xbf16>
    %cst_75 = arith.constant dense<0.000000e+00> : vector<64x512xf32>
    %198 = tpu.matmul %196, %197, %cst_75 {dimension_numbers = #tpu.dot_dimension_numbers<[1], [0], [0], [1], [0, 0, 1, 1], [], []>} : vector<64x128xbf16>, vector<128x512xbf16>, vector<64x512xf32> -> vector<64x512xf32>
    %c0_76 = arith.constant 0 : index
    %c0_77 = arith.constant 0 : index
    %199 = vector.load %arg9[%c0_76, %c0_77] : memref<1x512xf32, #tpu.memory_space<vmem>>, vector<1x512xf32>
    %200 = vector.broadcast %199 : vector<1x512xf32> to vector<64x512xf32>
    %201 = arith.addf %198, %200 : vector<64x512xf32>
    %c0_78 = arith.constant 0 : index
    %c0_79 = arith.constant 0 : index
    %202 = vector.load %arg13[%c0_78, %c0_79] : memref<64x512xf32, #tpu.memory_space<vmem>>, vector<64x512xf32>
    tpu.vector_store %arg13[%c0_78, %c0_79], %201 {strides = array<i32>} : memref<64x512xf32, #tpu.memory_space<vmem>>, vector<64x512xf32>,
    %c1 = arith.constant 1 : index
    %c0_80 = arith.constant 0 : index
    %c0_81 = arith.constant 0 : index
    %203 = vector.load %arg2[%c1, %c0_80, %c0_81] : memref<2x8x128xf32, #tpu.memory_space<vmem>>, vector<1x8x128xf32>
    %204 = vector.shape_cast %203 : vector<1x8x128xf32> to vector<8x128xf32>
    %c1_82 = arith.constant 1 : index
    %c0_83 = arith.constant 0 : index
    %c0_84 = arith.constant 0 : index
    %205 = vector.load %arg3[%c1_82, %c0_83, %c0_84] : memref<2x8x128xf32, #tpu.memory_space<vmem>>, vector<1x8x128xf32>
    %206 = vector.shape_cast %205 : vector<1x8x128xf32> to vector<8x128xf32>
    %c0_85 = arith.constant 0 : index
    %c0_86 = arith.constant 0 : index
    %207 = vector.load %arg13[%c0_85, %c0_86] : memref<64x512xf32, #tpu.memory_space<vmem>>, vector<8x512xf32>
    %208 = arith.truncf %204 : vector<8x128xf32> to vector<8x128xbf16>
    %c0_87 = arith.constant 0 : index
    %c0_88 = arith.constant 0 : index
    %209 = vector.load %arg8[%c0_87, %c0_88] : memref<128x512xbf16, #tpu.memory_space<vmem>>, vector<128x512xbf16>
    %cst_89 = arith.constant dense<0.000000e+00> : vector<8x512xf32>
    %210 = tpu.matmul %208, %209, %cst_89 {dimension_numbers = #tpu.dot_dimension_numbers<[1], [0], [0], [1], [0, 0, 1, 1], [], []>} : vector<8x128xbf16>, vector<128x512xbf16>, vector<8x512xf32> -> vector<8x512xf32>
    %211 = arith.addf %207, %210 : vector<8x512xf32>
    %212 = vector.extract_strided_slice %211 {offsets = [0, 0], sizes = [8, 384], strides = [1, 1]} : vector<8x512xf32> to vector<8x384xf32>
    %213 = arith.negf %212 : vector<8x384xf32>
    %214 = math.exp %213 : vector<8x384xf32>
    %cst_90 = arith.constant 1.000000e+00 : f32
    %215 = vector.broadcast %cst_90 : f32 to vector<8x384xf32>
    %216 = arith.addf %215, %214 : vector<8x384xf32>
    %217 = arith.divf %215, %216 : vector<8x384xf32>
    %218 = vector.extract_strided_slice %217 {offsets = [0, 0], sizes = [8, 128], strides = [1, 1]} : vector<8x384xf32> to vector<8x128xf32>
    %219 = vector.extract_strided_slice %217 {offsets = [0, 128], sizes = [8, 128], strides = [1, 1]} : vector<8x384xf32> to vector<8x128xf32>
    %220 = vector.extract_strided_slice %217 {offsets = [0, 256], sizes = [8, 128], strides = [1, 1]} : vector<8x384xf32> to vector<8x128xf32>
    %221 = vector.extract_strided_slice %211 {offsets = [0, 384], sizes = [8, 128], strides = [1, 1]} : vector<8x512xf32> to vector<8x128xf32>
    %222 = math.tanh %221 : vector<8x128xf32>
    %223 = arith.mulf %219, %206 : vector<8x128xf32>
    %224 = arith.mulf %218, %222 : vector<8x128xf32>
    %225 = arith.addf %223, %224 : vector<8x128xf32>
    %226 = math.tanh %225 : vector<8x128xf32>
    %227 = arith.mulf %220, %226 : vector<8x128xf32>
    %c8_91 = arith.constant 8 : index
    %c0_92 = arith.constant 0 : index
    %228 = vector.load %arg13[%c8_91, %c0_92] : memref<64x512xf32, #tpu.memory_space<vmem>>, vector<8x512xf32>
    %229 = arith.truncf %227 : vector<8x128xf32> to vector<8x128xbf16>
    %c0_93 = arith.constant 0 : index
    %c0_94 = arith.constant 0 : index
    %230 = vector.load %arg8[%c0_93, %c0_94] : memref<128x512xbf16, #tpu.memory_space<vmem>>, vector<128x512xbf16>
    %cst_95 = arith.constant dense<0.000000e+00> : vector<8x512xf32>
    %231 = tpu.matmul %229, %230, %cst_95 {dimension_numbers = #tpu.dot_dimension_numbers<[1], [0], [0], [1], [0, 0, 1, 1], [], []>} : vector<8x128xbf16>, vector<128x512xbf16>, vector<8x512xf32> -> vector<8x512xf32>
    %232 = arith.addf %228, %231 : vector<8x512xf32>
    %233 = vector.extract_strided_slice %232 {offsets = [0, 0], sizes = [8, 384], strides = [1, 1]} : vector<8x512xf32> to vector<8x384xf32>
    %234 = arith.negf %233 : vector<8x384xf32>
    %235 = math.exp %234 : vector<8x384xf32>
    %cst_96 = arith.constant 1.000000e+00 : f32
    %236 = vector.broadcast %cst_96 : f32 to vector<8x384xf32>
    %237 = arith.addf %236, %235 : vector<8x384xf32>
    %238 = arith.divf %236, %237 : vector<8x384xf32>
    %239 = vector.extract_strided_slice %238 {offsets = [0, 0], sizes = [8, 128], strides = [1, 1]} : vector<8x384xf32> to vector<8x128xf32>
    %240 = vector.extract_strided_slice %238 {offsets = [0, 128], sizes = [8, 128], strides = [1, 1]} : vector<8x384xf32> to vector<8x128xf32>
    %241 = vector.extract_strided_slice %238 {offsets = [0, 256], sizes = [8, 128], strides = [1, 1]} : vector<8x384xf32> to vector<8x128xf32>
    %242 = vector.extract_strided_slice %232 {offsets = [0, 384], sizes = [8, 128], strides = [1, 1]} : vector<8x512xf32> to vector<8x128xf32>
    %243 = math.tanh %242 : vector<8x128xf32>
    %244 = arith.mulf %240, %225 : vector<8x128xf32>
    %245 = arith.mulf %239, %243 : vector<8x128xf32>
    %246 = arith.addf %244, %245 : vector<8x128xf32>
    %247 = math.tanh %246 : vector<8x128xf32>
    %248 = arith.mulf %241, %247 : vector<8x128xf32>
    %c16_97 = arith.constant 16 : index
    %c0_98 = arith.constant 0 : index
    %249 = vector.load %arg13[%c16_97, %c0_98] : memref<64x512xf32, #tpu.memory_space<vmem>>, vector<8x512xf32>
    %250 = arith.truncf %248 : vector<8x128xf32> to vector<8x128xbf16>
    %c0_99 = arith.constant 0 : index
    %c0_100 = arith.constant 0 : index
    %251 = vector.load %arg8[%c0_99, %c0_100] : memref<128x512xbf16, #tpu.memory_space<vmem>>, vector<128x512xbf16>
    %cst_101 = arith.constant dense<0.000000e+00> : vector<8x512xf32>
    %252 = tpu.matmul %250, %251, %cst_101 {dimension_numbers = #tpu.dot_dimension_numbers<[1], [0], [0], [1], [0, 0, 1, 1], [], []>} : vector<8x128xbf16>, vector<128x512xbf16>, vector<8x512xf32> -> vector<8x512xf32>
    %253 = arith.addf %249, %252 : vector<8x512xf32>
    %254 = vector.extract_strided_slice %253 {offsets = [0, 0], sizes = [8, 384], strides = [1, 1]} : vector<8x512xf32> to vector<8x384xf32>
    %255 = arith.negf %254 : vector<8x384xf32>
    %256 = math.exp %255 : vector<8x384xf32>
    %cst_102 = arith.constant 1.000000e+00 : f32
    %257 = vector.broadcast %cst_102 : f32 to vector<8x384xf32>
    %258 = arith.addf %257, %256 : vector<8x384xf32>
    %259 = arith.divf %257, %258 : vector<8x384xf32>
    %260 = vector.extract_strided_slice %259 {offsets = [0, 0], sizes = [8, 128], strides = [1, 1]} : vector<8x384xf32> to vector<8x128xf32>
    %261 = vector.extract_strided_slice %259 {offsets = [0, 128], sizes = [8, 128], strides = [1, 1]} : vector<8x384xf32> to vector<8x128xf32>
    %262 = vector.extract_strided_slice %259 {offsets = [0, 256], sizes = [8, 128], strides = [1, 1]} : vector<8x384xf32> to vector<8x128xf32>
    %263 = vector.extract_strided_slice %253 {offsets = [0, 384], sizes = [8, 128], strides = [1, 1]} : vector<8x512xf32> to vector<8x128xf32>
    %264 = math.tanh %263 : vector<8x128xf32>
    %265 = arith.mulf %261, %246 : vector<8x128xf32>
    %266 = arith.mulf %260, %264 : vector<8x128xf32>
    %267 = arith.addf %265, %266 : vector<8x128xf32>
    %268 = math.tanh %267 : vector<8x128xf32>
    %269 = arith.mulf %262, %268 : vector<8x128xf32>
    %c24_103 = arith.constant 24 : index
    %c0_104 = arith.constant 0 : index
    %270 = vector.load %arg13[%c24_103, %c0_104] : memref<64x512xf32, #tpu.memory_space<vmem>>, vector<8x512xf32>
    %271 = arith.truncf %269 : vector<8x128xf32> to vector<8x128xbf16>
    %c0_105 = arith.constant 0 : index
    %c0_106 = arith.constant 0 : index
    %272 = vector.load %arg8[%c0_105, %c0_106] : memref<128x512xbf16, #tpu.memory_space<vmem>>, vector<128x512xbf16>
    %cst_107 = arith.constant dense<0.000000e+00> : vector<8x512xf32>
    %273 = tpu.matmul %271, %272, %cst_107 {dimension_numbers = #tpu.dot_dimension_numbers<[1], [0], [0], [1], [0, 0, 1, 1], [], []>} : vector<8x128xbf16>, vector<128x512xbf16>, vector<8x512xf32> -> vector<8x512xf32>
    %274 = arith.addf %270, %273 : vector<8x512xf32>
    %275 = vector.extract_strided_slice %274 {offsets = [0, 0], sizes = [8, 384], strides = [1, 1]} : vector<8x512xf32> to vector<8x384xf32>
    %276 = arith.negf %275 : vector<8x384xf32>
    %277 = math.exp %276 : vector<8x384xf32>
    %cst_108 = arith.constant 1.000000e+00 : f32
    %278 = vector.broadcast %cst_108 : f32 to vector<8x384xf32>
    %279 = arith.addf %278, %277 : vector<8x384xf32>
    %280 = arith.divf %278, %279 : vector<8x384xf32>
    %281 = vector.extract_strided_slice %280 {offsets = [0, 0], sizes = [8, 128], strides = [1, 1]} : vector<8x384xf32> to vector<8x128xf32>
    %282 = vector.extract_strided_slice %280 {offsets = [0, 128], sizes = [8, 128], strides = [1, 1]} : vector<8x384xf32> to vector<8x128xf32>
    %283 = vector.extract_strided_slice %280 {offsets = [0, 256], sizes = [8, 128], strides = [1, 1]} : vector<8x384xf32> to vector<8x128xf32>
    %284 = vector.extract_strided_slice %274 {offsets = [0, 384], sizes = [8, 128], strides = [1, 1]} : vector<8x512xf32> to vector<8x128xf32>
    %285 = math.tanh %284 : vector<8x128xf32>
    %286 = arith.mulf %282, %267 : vector<8x128xf32>
    %287 = arith.mulf %281, %285 : vector<8x128xf32>
    %288 = arith.addf %286, %287 : vector<8x128xf32>
    %289 = math.tanh %288 : vector<8x128xf32>
    %290 = arith.mulf %283, %289 : vector<8x128xf32>
    %c32_109 = arith.constant 32 : index
    %c0_110 = arith.constant 0 : index
    %291 = vector.load %arg13[%c32_109, %c0_110] : memref<64x512xf32, #tpu.memory_space<vmem>>, vector<8x512xf32>
    %292 = arith.truncf %290 : vector<8x128xf32> to vector<8x128xbf16>
    %c0_111 = arith.constant 0 : index
    %c0_112 = arith.constant 0 : index
    %293 = vector.load %arg8[%c0_111, %c0_112] : memref<128x512xbf16, #tpu.memory_space<vmem>>, vector<128x512xbf16>
    %cst_113 = arith.constant dense<0.000000e+00> : vector<8x512xf32>
    %294 = tpu.matmul %292, %293, %cst_113 {dimension_numbers = #tpu.dot_dimension_numbers<[1], [0], [0], [1], [0, 0, 1, 1], [], []>} : vector<8x128xbf16>, vector<128x512xbf16>, vector<8x512xf32> -> vector<8x512xf32>
    %295 = arith.addf %291, %294 : vector<8x512xf32>
    %296 = vector.extract_strided_slice %295 {offsets = [0, 0], sizes = [8, 384], strides = [1, 1]} : vector<8x512xf32> to vector<8x384xf32>
    %297 = arith.negf %296 : vector<8x384xf32>
    %298 = math.exp %297 : vector<8x384xf32>
    %cst_114 = arith.constant 1.000000e+00 : f32
    %299 = vector.broadcast %cst_114 : f32 to vector<8x384xf32>
    %300 = arith.addf %299, %298 : vector<8x384xf32>
    %301 = arith.divf %299, %300 : vector<8x384xf32>
    %302 = vector.extract_strided_slice %301 {offsets = [0, 0], sizes = [8, 128], strides = [1, 1]} : vector<8x384xf32> to vector<8x128xf32>
    %303 = vector.extract_strided_slice %301 {offsets = [0, 128], sizes = [8, 128], strides = [1, 1]} : vector<8x384xf32> to vector<8x128xf32>
    %304 = vector.extract_strided_slice %301 {offsets = [0, 256], sizes = [8, 128], strides = [1, 1]} : vector<8x384xf32> to vector<8x128xf32>
    %305 = vector.extract_strided_slice %295 {offsets = [0, 384], sizes = [8, 128], strides = [1, 1]} : vector<8x512xf32> to vector<8x128xf32>
    %306 = math.tanh %305 : vector<8x128xf32>
    %307 = arith.mulf %303, %288 : vector<8x128xf32>
    %308 = arith.mulf %302, %306 : vector<8x128xf32>
    %309 = arith.addf %307, %308 : vector<8x128xf32>
    %310 = math.tanh %309 : vector<8x128xf32>
    %311 = arith.mulf %304, %310 : vector<8x128xf32>
    %c40_115 = arith.constant 40 : index
    %c0_116 = arith.constant 0 : index
    %312 = vector.load %arg13[%c40_115, %c0_116] : memref<64x512xf32, #tpu.memory_space<vmem>>, vector<8x512xf32>
    %313 = arith.truncf %311 : vector<8x128xf32> to vector<8x128xbf16>
    %c0_117 = arith.constant 0 : index
    %c0_118 = arith.constant 0 : index
    %314 = vector.load %arg8[%c0_117, %c0_118] : memref<128x512xbf16, #tpu.memory_space<vmem>>, vector<128x512xbf16>
    %cst_119 = arith.constant dense<0.000000e+00> : vector<8x512xf32>
    %315 = tpu.matmul %313, %314, %cst_119 {dimension_numbers = #tpu.dot_dimension_numbers<[1], [0], [0], [1], [0, 0, 1, 1], [], []>} : vector<8x128xbf16>, vector<128x512xbf16>, vector<8x512xf32> -> vector<8x512xf32>
    %316 = arith.addf %312, %315 : vector<8x512xf32>
    %317 = vector.extract_strided_slice %316 {offsets = [0, 0], sizes = [8, 384], strides = [1, 1]} : vector<8x512xf32> to vector<8x384xf32>
    %318 = arith.negf %317 : vector<8x384xf32>
    %319 = math.exp %318 : vector<8x384xf32>
    %cst_120 = arith.constant 1.000000e+00 : f32
    %320 = vector.broadcast %cst_120 : f32 to vector<8x384xf32>
    %321 = arith.addf %320, %319 : vector<8x384xf32>
    %322 = arith.divf %320, %321 : vector<8x384xf32>
    %323 = vector.extract_strided_slice %322 {offsets = [0, 0], sizes = [8, 128], strides = [1, 1]} : vector<8x384xf32> to vector<8x128xf32>
    %324 = vector.extract_strided_slice %322 {offsets = [0, 128], sizes = [8, 128], strides = [1, 1]} : vector<8x384xf32> to vector<8x128xf32>
    %325 = vector.extract_strided_slice %322 {offsets = [0, 256], sizes = [8, 128], strides = [1, 1]} : vector<8x384xf32> to vector<8x128xf32>
    %326 = vector.extract_strided_slice %316 {offsets = [0, 384], sizes = [8, 128], strides = [1, 1]} : vector<8x512xf32> to vector<8x128xf32>
    %327 = math.tanh %326 : vector<8x128xf32>
    %328 = arith.mulf %324, %309 : vector<8x128xf32>
    %329 = arith.mulf %323, %327 : vector<8x128xf32>
    %330 = arith.addf %328, %329 : vector<8x128xf32>
    %331 = math.tanh %330 : vector<8x128xf32>
    %332 = arith.mulf %325, %331 : vector<8x128xf32>
    %c48_121 = arith.constant 48 : index
    %c0_122 = arith.constant 0 : index
    %333 = vector.load %arg13[%c48_121, %c0_122] : memref<64x512xf32, #tpu.memory_space<vmem>>, vector<8x512xf32>
    %334 = arith.truncf %332 : vector<8x128xf32> to vector<8x128xbf16>
    %c0_123 = arith.constant 0 : index
    %c0_124 = arith.constant 0 : index
    %335 = vector.load %arg8[%c0_123, %c0_124] : memref<128x512xbf16, #tpu.memory_space<vmem>>, vector<128x512xbf16>
    %cst_125 = arith.constant dense<0.000000e+00> : vector<8x512xf32>
    %336 = tpu.matmul %334, %335, %cst_125 {dimension_numbers = #tpu.dot_dimension_numbers<[1], [0], [0], [1], [0, 0, 1, 1], [], []>} : vector<8x128xbf16>, vector<128x512xbf16>, vector<8x512xf32> -> vector<8x512xf32>
    %337 = arith.addf %333, %336 : vector<8x512xf32>
    %338 = vector.extract_strided_slice %337 {offsets = [0, 0], sizes = [8, 384], strides = [1, 1]} : vector<8x512xf32> to vector<8x384xf32>
    %339 = arith.negf %338 : vector<8x384xf32>
    %340 = math.exp %339 : vector<8x384xf32>
    %cst_126 = arith.constant 1.000000e+00 : f32
    %341 = vector.broadcast %cst_126 : f32 to vector<8x384xf32>
    %342 = arith.addf %341, %340 : vector<8x384xf32>
    %343 = arith.divf %341, %342 : vector<8x384xf32>
    %344 = vector.extract_strided_slice %343 {offsets = [0, 0], sizes = [8, 128], strides = [1, 1]} : vector<8x384xf32> to vector<8x128xf32>
    %345 = vector.extract_strided_slice %343 {offsets = [0, 128], sizes = [8, 128], strides = [1, 1]} : vector<8x384xf32> to vector<8x128xf32>
    %346 = vector.extract_strided_slice %343 {offsets = [0, 256], sizes = [8, 128], strides = [1, 1]} : vector<8x384xf32> to vector<8x128xf32>
    %347 = vector.extract_strided_slice %337 {offsets = [0, 384], sizes = [8, 128], strides = [1, 1]} : vector<8x512xf32> to vector<8x128xf32>
    %348 = math.tanh %347 : vector<8x128xf32>
    %349 = arith.mulf %345, %330 : vector<8x128xf32>
    %350 = arith.mulf %344, %348 : vector<8x128xf32>
    %351 = arith.addf %349, %350 : vector<8x128xf32>
    %352 = math.tanh %351 : vector<8x128xf32>
    %353 = arith.mulf %346, %352 : vector<8x128xf32>
    %c56_127 = arith.constant 56 : index
    %c0_128 = arith.constant 0 : index
    %354 = vector.load %arg13[%c56_127, %c0_128] : memref<64x512xf32, #tpu.memory_space<vmem>>, vector<8x512xf32>
    %355 = arith.truncf %353 : vector<8x128xf32> to vector<8x128xbf16>
    %c0_129 = arith.constant 0 : index
    %c0_130 = arith.constant 0 : index
    %356 = vector.load %arg8[%c0_129, %c0_130] : memref<128x512xbf16, #tpu.memory_space<vmem>>, vector<128x512xbf16>
    %cst_131 = arith.constant dense<0.000000e+00> : vector<8x512xf32>
    %357 = tpu.matmul %355, %356, %cst_131 {dimension_numbers = #tpu.dot_dimension_numbers<[1], [0], [0], [1], [0, 0, 1, 1], [], []>} : vector<8x128xbf16>, vector<128x512xbf16>, vector<8x512xf32> -> vector<8x512xf32>
    %358 = arith.addf %354, %357 : vector<8x512xf32>
    %359 = vector.extract_strided_slice %358 {offsets = [0, 0], sizes = [8, 384], strides = [1, 1]} : vector<8x512xf32> to vector<8x384xf32>
    %360 = arith.negf %359 : vector<8x384xf32>
    %361 = math.exp %360 : vector<8x384xf32>
    %cst_132 = arith.constant 1.000000e+00 : f32
    %362 = vector.broadcast %cst_132 : f32 to vector<8x384xf32>
    %363 = arith.addf %362, %361 : vector<8x384xf32>
    %364 = arith.divf %362, %363 : vector<8x384xf32>
    %365 = vector.extract_strided_slice %364 {offsets = [0, 0], sizes = [8, 128], strides = [1, 1]} : vector<8x384xf32> to vector<8x128xf32>
    %366 = vector.extract_strided_slice %364 {offsets = [0, 128], sizes = [8, 128], strides = [1, 1]} : vector<8x384xf32> to vector<8x128xf32>
    %367 = vector.extract_strided_slice %364 {offsets = [0, 256], sizes = [8, 128], strides = [1, 1]} : vector<8x384xf32> to vector<8x128xf32>
    %368 = vector.extract_strided_slice %358 {offsets = [0, 384], sizes = [8, 128], strides = [1, 1]} : vector<8x512xf32> to vector<8x128xf32>
    %369 = math.tanh %368 : vector<8x128xf32>
    %370 = arith.mulf %366, %351 : vector<8x128xf32>
    %371 = arith.mulf %365, %369 : vector<8x128xf32>
    %372 = arith.addf %370, %371 : vector<8x128xf32>
    %373 = math.tanh %372 : vector<8x128xf32>
    %374 = arith.mulf %367, %373 : vector<8x128xf32>
    %c0_133 = arith.constant 0 : index
    %c0_134 = arith.constant 0 : index
    %375 = vector.load %arg10[%c0_133, %c0_134] : memref<1x128xf32, #tpu.memory_space<vmem>>, vector<1x128xf32>
    %376 = vector.broadcast %375 : vector<1x128xf32> to vector<8x128xf32>
    %377 = arith.mulf %374, %376 : vector<8x128xf32>
    %cst_135 = arith.constant dense<0.000000e+00> : vector<8xf32>
    %378 = vector.multi_reduction <add>, %377, %cst_135 [1] : vector<8x128xf32> to vector<8xf32>
    %379 = vector.shape_cast %378 : vector<8xf32> to vector<8x1xf32>
    %c0_136 = arith.constant 0 : index
    %c0_137 = arith.constant 0 : index
    %380 = vector.load %arg11[%c0_136, %c0_137] : memref<1x1xf32, #tpu.memory_space<vmem>>, vector<1x1xf32>
    %381 = vector.broadcast %380 : vector<1x1xf32> to vector<8x1xf32>
    %382 = arith.addf %379, %381 : vector<8x1xf32>
    %383 = arith.negf %382 : vector<8x1xf32>
    %384 = math.exp %383 : vector<8x1xf32>
    %cst_138 = arith.constant 1.000000e+00 : f32
    %385 = vector.broadcast %cst_138 : f32 to vector<8x1xf32>
    %386 = arith.addf %385, %384 : vector<8x1xf32>
    %387 = arith.divf %385, %386 : vector<8x1xf32>
    %c0_139 = arith.constant 0 : index
    %c0_140 = arith.constant 0 : index
    %388 = vector.load %arg12[%c0_139, %c0_140] : memref<8x1xf32, #tpu.memory_space<vmem>>, vector<8x1xf32>
    tpu.vector_store %arg12[%c0_139, %c0_140], %387 {strides = array<i32>} : memref<8x1xf32, #tpu.memory_space<vmem>>, vector<8x1xf32>,
    return
  }
  func.func @transform_0(%arg0: i32) -> (i32, i32, i32) {
    %c0_i32 = arith.constant 0 : i32
    %c0_i32_0 = arith.constant 0 : i32
    %c0_i32_1 = arith.constant 0 : i32
    return %arg0, %c0_i32, %c0_i32_0 : i32, i32, i32
  }
  func.func @transform_1(%arg0: i32) -> (i32, i32, i32) {
    %c0_i32 = arith.constant 0 : i32
    %c0_i32_0 = arith.constant 0 : i32
    %c0_i32_1 = arith.constant 0 : i32
    return %c0_i32, %arg0, %c0_i32_0 : i32, i32, i32
  }
  func.func @transform_2(%arg0: i32) -> (i32, i32, i32) {
    %c0_i32 = arith.constant 0 : i32
    %c0_i32_0 = arith.constant 0 : i32
    %c0_i32_1 = arith.constant 0 : i32
    return %c0_i32, %arg0, %c0_i32_0 : i32, i32, i32
  }
  func.func @transform_3(%arg0: i32) -> (i32, i32) {
    %c0_i32 = arith.constant 0 : i32
    %c0_i32_0 = arith.constant 0 : i32
    %c0_i32_1 = arith.constant 0 : i32
    return %c0_i32, %c0_i32_0 : i32, i32
  }
  func.func @transform_4(%arg0: i32) -> (i32, i32) {
    %c0_i32 = arith.constant 0 : i32
    %c0_i32_0 = arith.constant 0 : i32
    %c0_i32_1 = arith.constant 0 : i32
    return %c0_i32, %c0_i32_0 : i32, i32
  }
  func.func @transform_5(%arg0: i32) -> (i32, i32) {
    %c0_i32 = arith.constant 0 : i32
    %c0_i32_0 = arith.constant 0 : i32
    %c0_i32_1 = arith.constant 0 : i32
    return %c0_i32, %c0_i32_0 : i32, i32
  }
  func.func @transform_6(%arg0: i32) -> (i32, i32) {
    %c0_i32 = arith.constant 0 : i32
    %c0_i32_0 = arith.constant 0 : i32
    %c0_i32_1 = arith.constant 0 : i32
    return %c0_i32, %c0_i32_0 : i32, i32
  }
  func.func @transform_7(%arg0: i32) -> (i32, i32) {
    %c0_i32 = arith.constant 0 : i32
    %c0_i32_0 = arith.constant 0 : i32
    %c0_i32_1 = arith.constant 0 : i32
    return %c0_i32, %c0_i32_0 : i32, i32
  }
  func.func @transform_8(%arg0: i32) -> (i32, i32) {
    %c0_i32 = arith.constant 0 : i32
    %c0_i32_0 = arith.constant 0 : i32
    %c0_i32_1 = arith.constant 0 : i32
    return %c0_i32, %c0_i32_0 : i32, i32
  }
  func.func @transform_9(%arg0: i32) -> (i32, i32) {
    %c0_i32 = arith.constant 0 : i32
    %c0_i32_0 = arith.constant 0 : i32
    %c0_i32_1 = arith.constant 0 : i32
    return %c0_i32, %c0_i32_0 : i32, i32
  }
  func.func @transform_10(%arg0: i32) -> (i32, i32) {
    %c0_i32 = arith.constant 0 : i32
    %c0_i32_0 = arith.constant 0 : i32
    %c0_i32_1 = arith.constant 0 : i32
    return %c0_i32, %c0_i32_0 : i32, i32
  }
  func.func @transform_11(%arg0: i32) -> (i32, i32) {
    %c0_i32 = arith.constant 0 : i32
    %c0_i32_0 = arith.constant 0 : i32
    return %arg0, %c0_i32 : i32, i32
  }
}

</mosaic_0001>

<llo_original>
// kernel: tpu_custom_call.1
$region0: #{tpu_custom_call.1}
  #allocation0 [shape = 'u32[]', space=smem, size = 0x4, offset = 0x4, fixed_abs, tag = 'smem constant byte address 0x4 - core index']
  #allocation1 [shape = 'u32[144,128]{1,0:T(1,128)}', space=vmem, size = 0x12000, scoped, tag = 'internal scratch']
  #allocation2 [shape = 'f32[64,512]{1,0:T(8,128)}', space=vmem, size = 0x20000, scoped, tag = 'scratch operand']
  #allocation3 [shape = 'bf16[64,128]{1,0:T(8,128)(2,1)}', space=vmem, size = 0x4000, scoped, tag = 'scratch operand']
  #allocation4 [shape = 'f32[1,1]{1,0:T(1,128)S(1)}', space=vmem, size = 0x200, scoped, tag = 'scoped memory for tpu_custom_call.1']
  %s0 = inlined_call_operand.hbm [shape: bf16[1,64,128], index: 0, kind: input, shape index: {}]
  %s1 = inlined_call_operand.hbm [shape: f32[2,8,128], index: 1, kind: input, shape index: {}]
  %s2 = inlined_call_operand.hbm [shape: f32[2,8,128], index: 2, kind: input, shape index: {}]
  %s3 = inlined_call_operand.hbm [shape: bf16[128,512], index: 3, kind: input, shape index: {}]
  %s4 = inlined_call_operand.hbm [shape: bf16[128,512], index: 4, kind: input, shape index: {}]
  %s5 = inlined_call_operand.vmem [shape: f32[1,512], index: 5, kind: input, shape index: {}]
  %s6 = inlined_call_operand.hbm [shape: bf16[128,512], index: 6, kind: input, shape index: {}]
  %s7 = inlined_call_operand.hbm [shape: bf16[128,512], index: 7, kind: input, shape index: {}]
  %s8 = inlined_call_operand.vmem [shape: f32[1,512], index: 8, kind: input, shape index: {}]
  %s9 = inlined_call_operand.vmem [shape: f32[1,128], index: 9, kind: input, shape index: {}]
  %s10 = inlined_call_operand.<no memory space> [shape: f32[1,1], index: 10, kind: input, shape index: {}]
  %s11 = inlined_call_operand.vmem [shape: f32[8,1], index: 11, kind: output, shape index: {}]
  %s12 = sld [smem:[#allocation0]]
  $region82: #{tpu_custom_call.1} parent=0
    _
  %s14 = ssub.s32 1, %s12
  %s15 = scalar_select 0, %s14, %s12
  %v16 = vstv %s10
  %17 = vst [vmem:[#allocation4] sm:$0x1] %v16
  $region1: #{tpu_custom_call.1} parent=0
    #allocation5 [shape = 'u8[16384]{0}', space=vmem, size = 0x4000, scoped, tag = 'input window, operand 0, single buffered']
    #allocation6 [shape = 's32[1]{0}', space=sflag, size = 0x4, scoped, tag = 'scoped memory for tpu_custom_call.1']
    #allocation7 [shape = 'u8[8192]{0}', space=vmem, size = 0x2000, scoped, tag = 'input window, operand 1, single buffered']
    #allocation8 [shape = 's32[1]{0}', space=sflag, size = 0x4, scoped, tag = 'scoped memory for tpu_custom_call.1']
    #allocation9 [shape = 'u8[8192]{0}', space=vmem, size = 0x2000, scoped, tag = 'input window, operand 2, single buffered']
    #allocation10 [shape = 'u8[131072]{0}', space=vmem, size = 0x20000, scoped, tag = 'input window, operand 3, single buffered']
    #allocation11 [shape = 's32[1]{0}', space=sflag, size = 0x4, scoped, tag = 'scoped memory for tpu_custom_call.1']
    #allocation12 [shape = 'u8[131072]{0}', space=vmem, size = 0x20000, scoped, tag = 'input window, operand 4, single buffered']
    #allocation13 [shape = 'u8[131072]{0}', space=vmem, size = 0x20000, scoped, tag = 'input window, operand 6, single buffered']
    #allocation14 [shape = 's32[1]{0}', space=sflag, size = 0x4, scoped, tag = 'scoped memory for tpu_custom_call.1']
    #allocation15 [shape = 'u8[131072]{0}', space=vmem, size = 0x20000, scoped, tag = 'input window, operand 7, single buffered']
    %18 = vsyncpa [#allocation6], 0
    %19 = vsyncpa [#allocation8], 0
    %20 = vsyncpa [#allocation11], 0
    %21 = vsyncpa [#allocation14], 0
    // Predicated region
    $region2: #{tpu_custom_call.1} parent=1 // pred_check
      _
    $region3: #{tpu_custom_call.1} parent=1 // pred_check_branch
      %23 = sbr.rel (0) target = $region5
    $region4: #{tpu_custom_call.1} parent=1 // pred_region
      %s25 = ssub.s32 512, 512
      %26 = vsyncadd [#allocation6], %s25
      %s27 = sshll.u32 [#allocation5], 4
      %s28 = int_to_ptr.vmem [resolvable:$true] %s27
      %33 = dma.hbm_to_vmem [thread:$0]  %s0, 512, %s28, [#allocation6], 64, 64, 4
    $region5: #{tpu_custom_call.1} parent=1 // pred_fallthru
      _
    // Predicated region
    $region6: #{tpu_custom_call.1} parent=1 // pred_check
      _
    $region7: #{tpu_custom_call.1} parent=1 // pred_check_branch
      %35 = sbr.rel (0) target = $region9
    $region8: #{tpu_custom_call.1} parent=1 // pred_region
      %s37 = ssub.s32 256, 256
      %38 = vsyncadd [#allocation8], %s37
      %s39 = sshll.u32 [#allocation7], 4
      %s40 = int_to_ptr.vmem [resolvable:$true] %s39
      %45 = dma.hbm_to_vmem [thread:$0]  %s1, 256, %s40, [#allocation8], 128, 128, 8
    $region9: #{tpu_custom_call.1} parent=1 // pred_fallthru
      _
    // Predicated region
    $region10: #{tpu_custom_call.1} parent=1 // pred_check
      _
    $region11: #{tpu_custom_call.1} parent=1 // pred_check_branch
      %47 = sbr.rel (0) target = $region13
    $region12: #{tpu_custom_call.1} parent=1 // pred_region
      %s49 = ssub.s32 256, 256
      %50 = vsyncadd [#allocation8], %s49
      %s51 = sshll.u32 [#allocation9], 4
      %s52 = int_to_ptr.vmem [resolvable:$true] %s51
      %57 = dma.hbm_to_vmem [thread:$0]  %s2, 256, %s52, [#allocation8], 128, 128, 8
    $region13: #{tpu_custom_call.1} parent=1 // pred_fallthru
      _
    // Predicated region
    $region14: #{tpu_custom_call.1} parent=1 // pred_check
      _
    $region15: #{tpu_custom_call.1} parent=1 // pred_check_branch
      %59 = sbr.rel (0) target = $region17
    $region16: #{tpu_custom_call.1} parent=1 // pred_region
      %s61 = ssub.s32 4096, 4096
      %62 = vsyncadd [#allocation11], %s61
      %s63 = sshll.u32 [#allocation10], 4
      %s64 = int_to_ptr.vmem [resolvable:$true] %s63
      %69 = dma.hbm_to_vmem [thread:$0]  %s3, 4096, %s64, [#allocation11], 256, 256, 16
    $region17: #{tpu_custom_call.1} parent=1 // pred_fallthru
      _
    // Predicated region
    $region18: #{tpu_custom_call.1} parent=1 // pred_check
      _
    $region19: #{tpu_custom_call.1} parent=1 // pred_check_branch
      %71 = sbr.rel (0) target = $region21
    $region20: #{tpu_custom_call.1} parent=1 // pred_region
      %s73 = ssub.s32 4096, 4096
      %74 = vsyncadd [#allocation11], %s73
      %s75 = sshll.u32 [#allocation12], 4
      %s76 = int_to_ptr.vmem [resolvable:$true] %s75
      %81 = dma.hbm_to_vmem [thread:$0]  %s4, 4096, %s76, [#allocation11], 256, 256, 16
    $region21: #{tpu_custom_call.1} parent=1 // pred_fallthru
      _
    // Predicated region
    $region22: #{tpu_custom_call.1} parent=1 // pred_check
      _
    $region23: #{tpu_custom_call.1} parent=1 // pred_check_branch
      %83 = sbr.rel (0) target = $region25
    $region24: #{tpu_custom_call.1} parent=1 // pred_region
      _
    $region25: #{tpu_custom_call.1} parent=1 // pred_fallthru
      _
    // Predicated region
    $region26: #{tpu_custom_call.1} parent=1 // pred_check
      _
    $region27: #{tpu_custom_call.1} parent=1 // pred_check_branch
      %85 = sbr.rel (0) target = $region29
    $region28: #{tpu_custom_call.1} parent=1 // pred_region
      %s87 = ssub.s32 4096, 4096
      %88 = vsyncadd [#allocation14], %s87
      %s89 = sshll.u32 [#allocation13], 4
      %s90 = int_to_ptr.vmem [resolvable:$true] %s89
      %95 = dma.hbm_to_vmem [thread:$0]  %s6, 4096, %s90, [#allocation14], 256, 256, 16
    $region29: #{tpu_custom_call.1} parent=1 // pred_fallthru
      _
    // Predicated region
    $region30: #{tpu_custom_call.1} parent=1 // pred_check
      _
    $region31: #{tpu_custom_call.1} parent=1 // pred_check_branch
      %97 = sbr.rel (0) target = $region33
    $region32: #{tpu_custom_call.1} parent=1 // pred_region
      %s99 = ssub.s32 4096, 4096
      %100 = vsyncadd [#allocation14], %s99
      %s101 = sshll.u32 [#allocation15], 4
      %s102 = int_to_ptr.vmem [resolvable:$true] %s101
      %107 = dma.hbm_to_vmem [thread:$0]  %s7, 4096, %s102, [#allocation14], 256, 256, 16
    $region33: #{tpu_custom_call.1} parent=1 // pred_fallthru
      _
    // Predicated region
    $region34: #{tpu_custom_call.1} parent=1 // pred_check
      _
    $region35: #{tpu_custom_call.1} parent=1 // pred_check_branch
      %109 = sbr.rel (0) target = $region37
    $region36: #{tpu_custom_call.1} parent=1 // pred_region
      _
    $region37: #{tpu_custom_call.1} parent=1 // pred_fallthru
      _
    // Predicated region
    $region38: #{tpu_custom_call.1} parent=1 // pred_check
      _
    $region39: #{tpu_custom_call.1} parent=1 // pred_check_branch
      %111 = sbr.rel (0) target = $region41
    $region40: #{tpu_custom_call.1} parent=1 // pred_region
      _
    $region41: #{tpu_custom_call.1} parent=1 // pred_fallthru
      _
    // Predicated region
    $region42: #{tpu_custom_call.1} parent=1 // pred_check
      _
    $region43: #{tpu_custom_call.1} parent=1 // pred_check_branch
      %113 = sbr.rel (0) target = $region45
    $region44: #{tpu_custom_call.1} parent=1 // pred_region
      _
    $region45: #{tpu_custom_call.1} parent=1 // pred_fallthru
      _
    // Predicated region
    $region46: #{tpu_custom_call.1} parent=1 // pred_check
      _
    $region47: #{tpu_custom_call.1} parent=1 // pred_check_branch
      %115 = sbr.rel (0) target = $region49
    $region48: #{tpu_custom_call.1} parent=1 // pred_region
      %116 = dma.done [#allocation6], 512
    $region49: #{tpu_custom_call.1} parent=1 // pred_fallthru
      _
    // Predicated region
    $region50: #{tpu_custom_call.1} parent=1 // pred_check
      _
    $region51: #{tpu_custom_call.1} parent=1 // pred_check_branch
      %118 = sbr.rel (0) target = $region53
    $region52: #{tpu_custom_call.1} parent=1 // pred_region
      %119 = dma.done [#allocation8], 256
    $region53: #{tpu_custom_call.1} parent=1 // pred_fallthru
      _
    // Predicated region
    $region54: #{tpu_custom_call.1} parent=1 // pred_check
      _
    $region55: #{tpu_custom_call.1} parent=1 // pred_check_branch
      %121 = sbr.rel (0) target = $region57
    $region56: #{tpu_custom_call.1} parent=1 // pred_region
      %122 = dma.done [#allocation8], 256
    $region57: #{tpu_custom_call.1} parent=1 // pred_fallthru
      _
    // Predicated region
    $region58: #{tpu_custom_call.1} parent=1 // pred_check
      _
    $region59: #{tpu_custom_call.1} parent=1 // pred_check_branch
      %124 = sbr.rel (0) target = $region61
    $region60: #{tpu_custom_call.1} parent=1 // pred_region
      %125 = dma.done [#allocation11], 4096
    $region61: #{tpu_custom_call.1} parent=1 // pred_fallthru
      _
    // Predicated region
    $region62: #{tpu_custom_call.1} parent=1 // pred_check
      _
    $region63: #{tpu_custom_call.1} parent=1 // pred_check_branch
      %127 = sbr.rel (0) target = $region65
    $region64: #{tpu_custom_call.1} parent=1 // pred_region
      %128 = dma.done [#allocation11], 4096
    $region65: #{tpu_custom_call.1} parent=1 // pred_fallthru
      _
    // Predicated region
    $region66: #{tpu_custom_call.1} parent=1 // pred_check
      _
    $region67: #{tpu_custom_call.1} parent=1 // pred_check_branch
      %130 = sbr.rel (0) target = $region69
    $region68: #{tpu_custom_call.1} parent=1 // pred_region
      %131 = dma.done [#allocation14], 4096
    $region69: #{tpu_custom_call.1} parent=1 // pred_fallthru
      _
    // Predicated region
    $region70: #{tpu_custom_call.1} parent=1 // pred_check
      _
    $region71: #{tpu_custom_call.1} parent=1 // pred_check_branch
      %133 = sbr.rel (0) target = $region73
    $region72: #{tpu_custom_call.1} parent=1 // pred_region
      %134 = dma.done [#allocation14], 4096
    $region73: #{tpu_custom_call.1} parent=1 // pred_fallthru
      _
    %v136 = vld [vmem:[#allocation5] sm:$0xf]
    %v137 = vld [vmem:[#allocation5 + $0x4] sm:$0xf]
    %v138 = vld [vmem:[#allocation5 + $0x8] sm:$0xf]
    %v139 = vld [vmem:[#allocation5 + $0xc] sm:$0xf]
    %v140 = vld [vmem:[#allocation5 + $0x10] sm:$0xf]
    %v141 = vld [vmem:[#allocation5 + $0x14] sm:$0xf]
    %v142 = vld [vmem:[#allocation5 + $0x18] sm:$0xf]
    %v143 = vld [vmem:[#allocation5 + $0x1c] sm:$0xf]
    %v144 = vld [vmem:[#allocation10] sm:$0xff]
    %v145 = vld [vmem:[#allocation10 + $0x8] sm:$0xff]
    %v146 = vld [vmem:[#allocation10 + $0x10] sm:$0xff]
    %v147 = vld [vmem:[#allocation10 + $0x18] sm:$0xff]
    %v148 = vld [vmem:[#allocation10 + $0x20] sm:$0xff]
    %v149 = vld [vmem:[#allocation10 + $0x28] sm:$0xff]
    %v150 = vld [vmem:[#allocation10 + $0x30] sm:$0xff]
    %v151 = vld [vmem:[#allocation10 + $0x38] sm:$0xff]
    %v152 = vld [vmem:[#allocation10 + $0x40] sm:$0xff]
    %v153 = vld [vmem:[#allocation10 + $0x48] sm:$0xff]
    %v154 = vld [vmem:[#allocation10 + $0x50] sm:$0xff]
    %v155 = vld [vmem:[#allocation10 + $0x58] sm:$0xff]
    %v156 = vld [vmem:[#allocation10 + $0x60] sm:$0xff]
    %v157 = vld [vmem:[#allocation10 + $0x68] sm:$0xff]
    %v158 = vld [vmem:[#allocation10 + $0x70] sm:$0xff]
    %v159 = vld [vmem:[#allocation10 + $0x78] sm:$0xff]
    %v160 = vld [vmem:[#allocation10 + $0x80] sm:$0xff]
    %v161 = vld [vmem:[#allocation10 + $0x88] sm:$0xff]
    %v162 = vld [vmem:[#allocation10 + $0x90] sm:$0xff]
    %v163 = vld [vmem:[#allocation10 + $0x98] sm:$0xff]
    %v164 = vld [vmem:[#allocation10 + $0xa0] sm:$0xff]
    %v165 = vld [vmem:[#allocation10 + $0xa8] sm:$0xff]
    %v166 = vld [vmem:[#allocation10 + $0xb0] sm:$0xff]
    %v167 = vld [vmem:[#allocation10 + $0xb8] sm:$0xff]
    %v168 = vld [vmem:[#allocation10 + $0xc0] sm:$0xff]
    %v169 = vld [vmem:[#allocation10 + $0xc8] sm:$0xff]
    %v170 = vld [vmem:[#allocation10 + $0xd0] sm:$0xff]
    %v171 = vld [vmem:[#allocation10 + $0xd8] sm:$0xff]
    %v172 = vld [vmem:[#allocation10 + $0xe0] sm:$0xff]
    %v173 = vld [vmem:[#allocation10 + $0xe8] sm:$0xff]
    %v174 = vld [vmem:[#allocation10 + $0xf0] sm:$0xff]
    %v175 = vld [vmem:[#allocation10 + $0xf8] sm:$0xff]
    %v176 = vld [vmem:[%s5] sm:$0xf]
    %v178 = vlaneseq
    %v179 = vshrl.u32 %v178, 7
    %v180 = vsub.s32 0, %v179
    %v181 = vrot.slane %v176, %v180
    %v182 = vlaneseq
    %v183 = vshrl.u32 %v182, 7
    %v184 = vsub.s32 1, %v183
    %v185 = vrot.slane %v176, %v184
    %v186 = vlaneseq
    %v187 = vshrl.u32 %v186, 7
    %v188 = vsub.s32 2, %v187
    %v189 = vrot.slane %v176, %v188
    %v190 = vlaneseq
    %v191 = vshrl.u32 %v190, 7
    %v192 = vsub.s32 3, %v191
    %v193 = vrot.slane %v176, %v192
    %v206 = vunpack.c.l.b16 %v136
    %v207 = vunpack.c.l.b16 %v137
    %v208 = vunpack.c.l.b16 %v138
    %v209 = vunpack.c.l.b16 %v139
    %v210 = vunpack.c.l.b16 %v140
    %v211 = vunpack.c.l.b16 %v141
    %v212 = vunpack.c.l.b16 %v142
    %v213 = vunpack.c.l.b16 %v143
    %v214 = vpack.c.b16 %v207, %v206
    %v215 = vpack.c.b16 %v209, %v208
    %v216 = vpack.c.b16 %v211, %v210
    %v217 = vpack.c.b16 %v213, %v212
    %v254 = vunpack.c.l.b16 %v144
    %v255 = vunpack.c.h.b16 %v144
    %v256 = vunpack.c.l.b16 %v145
    %v257 = vunpack.c.h.b16 %v145
    %v258 = vunpack.c.l.b16 %v146
    %v259 = vunpack.c.h.b16 %v146
    %v260 = vunpack.c.l.b16 %v147
    %v261 = vunpack.c.h.b16 %v147
    %v262 = vunpack.c.l.b16 %v148
    %v263 = vunpack.c.h.b16 %v148
    %v264 = vunpack.c.l.b16 %v149
    %v265 = vunpack.c.h.b16 %v149
    %v266 = vunpack.c.l.b16 %v150
    %v267 = vunpack.c.h.b16 %v150
    %v268 = vunpack.c.l.b16 %v151
    %v269 = vunpack.c.h.b16 %v151
    %v270 = vunpack.c.l.b16 %v152
    %v271 = vunpack.c.h.b16 %v152
    %v272 = vunpack.c.l.b16 %v153
    %v273 = vunpack.c.h.b16 %v153
    %v274 = vunpack.c.l.b16 %v154
    %v275 = vunpack.c.h.b16 %v154
    %v276 = vunpack.c.l.b16 %v155
    %v277 = vunpack.c.h.b16 %v155
    %v278 = vunpack.c.l.b16 %v156
    %v279 = vunpack.c.h.b16 %v156
    %v280 = vunpack.c.l.b16 %v157
    %v281 = vunpack.c.h.b16 %v157
    %v282 = vunpack.c.l.b16 %v158
    %v283 = vunpack.c.h.b16 %v158
    %v284 = vunpack.c.l.b16 %v159
    %v285 = vunpack.c.h.b16 %v159
    %v286 = vunpack.c.l.b16 %v160
    %v287 = vunpack.c.h.b16 %v160
    %v288 = vunpack.c.l.b16 %v161
    %v289 = vunpack.c.h.b16 %v161
    %v290 = vunpack.c.l.b16 %v162
    %v291 = vunpack.c.h.b16 %v162
    %v292 = vunpack.c.l.b16 %v163
    %v293 = vunpack.c.h.b16 %v163
    %v294 = vunpack.c.l.b16 %v164
    %v295 = vunpack.c.h.b16 %v164
    %v296 = vunpack.c.l.b16 %v165
    %v297 = vunpack.c.h.b16 %v165
    %v298 = vunpack.c.l.b16 %v166
    %v299 = vunpack.c.h.b16 %v166
    %v300 = vunpack.c.l.b16 %v167
    %v301 = vunpack.c.h.b16 %v167
    %v302 = vunpack.c.l.b16 %v168
    %v303 = vunpack.c.h.b16 %v168
    %v304 = vunpack.c.l.b16 %v169
    %v305 = vunpack.c.h.b16 %v169
    %v306 = vunpack.c.l.b16 %v170
    %v307 = vunpack.c.h.b16 %v170
    %v308 = vunpack.c.l.b16 %v171
    %v309 = vunpack.c.h.b16 %v171
    %v310 = vunpack.c.l.b16 %v172
    %v311 = vunpack.c.h.b16 %v172
    %v312 = vunpack.c.l.b16 %v173
    %v313 = vunpack.c.h.b16 %v173
    %v314 = vunpack.c.l.b16 %v174
    %v315 = vunpack.c.h.b16 %v174
    %v316 = vunpack.c.l.b16 %v175
    %v317 = vunpack.c.h.b16 %v175
    %v318 = vpack.c.b16 %v258, %v254
    %v319 = vpack.c.b16 %v259, %v255
    %v320 = vpack.c.b16 %v260, %v256
    %v321 = vpack.c.b16 %v261, %v257
    %v322 = vpack.c.b16 %v266, %v262
    %v323 = vpack.c.b16 %v267, %v263
    %v324 = vpack.c.b16 %v268, %v264
    %v325 = vpack.c.b16 %v269, %v265
    %v326 = vpack.c.b16 %v274, %v270
    %v327 = vpack.c.b16 %v275, %v271
    %v328 = vpack.c.b16 %v276, %v272
    %v329 = vpack.c.b16 %v277, %v273
    %v330 = vpack.c.b16 %v282, %v278
    %v331 = vpack.c.b16 %v283, %v279
    %v332 = vpack.c.b16 %v284, %v280
    %v333 = vpack.c.b16 %v285, %v281
    %v334 = vpack.c.b16 %v290, %v286
    %v335 = vpack.c.b16 %v291, %v287
    %v336 = vpack.c.b16 %v292, %v288
    %v337 = vpack.c.b16 %v293, %v289
    %v338 = vpack.c.b16 %v298, %v294
    %v339 = vpack.c.b16 %v299, %v295
    %v340 = vpack.c.b16 %v300, %v296
    %v341 = vpack.c.b16 %v301, %v297
    %v342 = vpack.c.b16 %v306, %v302
    %v343 = vpack.c.b16 %v307, %v303
    %v344 = vpack.c.b16 %v308, %v304
    %v345 = vpack.c.b16 %v309, %v305
    %v346 = vpack.c.b16 %v314, %v310
    %v347 = vpack.c.b16 %v315, %v311
    %v348 = vpack.c.b16 %v316, %v312
    %v349 = vpack.c.b16 %v317, %v313
    %382 = vmatprep.subr.bf16.mxu0 %v347
    %383 = vmatpush1.bf16.msra.mxu0 %v346
    %384 = vmatprep.subr.bf16.mxu0 %v343
    %385 = vmatpush1.bf16.msra.mxu0 %v342
    %386 = vmatprep.subr.bf16.mxu0 %v339
    %387 = vmatpush1.bf16.msra.mxu0 %v338
    %388 = vmatprep.subr.bf16.mxu0 %v335
    %389 = vmatpush1.bf16.msra.mxu0 %v334
    %390 = vmatprep.subr.bf16.mxu0 %v331
    %391 = vmatpush1.bf16.msra.mxu0 %v330
    %392 = vmatprep.subr.bf16.mxu0 %v327
    %393 = vmatpush1.bf16.msra.mxu0 %v326
    %394 = vmatprep.subr.bf16.mxu0 %v323
    %395 = vmatpush1.bf16.msra.mxu0 %v322
    %396 = vmatprep.subr.bf16.mxu0 %v319
    %397 = vmatpush1.bf16.msra.mxu0 %v318
    %398 = vmatprep.subr.bf16.mxu0 0
    %399 = vmatpush2.bf16.msra.mxu0 0
    %400 = vmatprep.subr.bf16.mxu0 0
    %401 = vmatpush2.bf16.msra.mxu0 0
    %402 = vmatprep.subr.bf16.mxu0 0
    %403 = vmatpush2.bf16.msra.mxu0 0
    %404 = vmatprep.subr.bf16.mxu0 0
    %405 = vmatpush2.bf16.msra.mxu0 0
    %406 = vmatprep.subr.bf16.mxu0 0
    %407 = vmatpush2.bf16.msra.mxu0 0
    %408 = vmatprep.subr.bf16.mxu0 0
    %409 = vmatpush2.bf16.msra.mxu0 0
    %410 = vmatprep.subr.bf16.mxu0 0
    %411 = vmatpush2.bf16.msra.mxu0 0
    %412 = vmatprep.subr.bf16.mxu0 0
    %413 = vmatpush2.bf16.msra.mxu0 0
    %414 = vmatprep.mubr.bf16.mxu0 0
    %415 = vmatmul.mubr.bf16.gmra.mxu0 %v214
    %v416 = vpop.f32.mrf.mxu0
    %v417 = vadd.f32 %v181, %v416
    %v418 = vpop.f32.mrf.mxu0
    %v419 = vadd.f32 %v185, %v418
    %v420 = vpop.f32.mrf.mxu0
    %v421 = vadd.f32 %v181, %v420
    %v422 = vpop.f32.mrf.mxu0
    %v423 = vadd.f32 %v185, %v422
    %424 = vmatprep.mubr.bf16.mxu0 0
    %425 = vmatmul.mubr.bf16.gmra.mxu0 %v215
    %v426 = vpop.f32.mrf.mxu0
    %v427 = vadd.f32 %v181, %v426
    %v428 = vpop.f32.mrf.mxu0
    %v429 = vadd.f32 %v185, %v428
    %v430 = vpop.f32.mrf.mxu0
    %v431 = vadd.f32 %v181, %v430
    %v432 = vpop.f32.mrf.mxu0
    %v433 = vadd.f32 %v185, %v432
    %434 = vmatprep.mubr.bf16.mxu0 0
    %435 = vmatmul.mubr.bf16.gmra.mxu0 %v216
    %v436 = vpop.f32.mrf.mxu0
    %v437 = vadd.f32 %v181, %v436
    %v438 = vpop.f32.mrf.mxu0
    %v439 = vadd.f32 %v185, %v438
    %v440 = vpop.f32.mrf.mxu0
    %v441 = vadd.f32 %v181, %v440
    %v442 = vpop.f32.mrf.mxu0
    %v443 = vadd.f32 %v185, %v442
    %444 = vmatprep.mubr.bf16.mxu0 0
    %445 = vmatmul.mubr.bf16.gmra.mxu0 %v217
    %v446 = vpop.f32.mrf.mxu0
    %v447 = vadd.f32 %v181, %v446
    %v448 = vpop.f32.mrf.mxu0
    %v449 = vadd.f32 %v185, %v448
    %v450 = vpop.f32.mrf.mxu0
    %v451 = vadd.f32 %v181, %v450
    %v452 = vpop.f32.mrf.mxu0
    %v453 = vadd.f32 %v185, %v452
    %454 = vdwg.mxu0
    %455 = vmatprep.subr.bf16.mxu0 %v349
    %456 = vmatpush1.bf16.msra.mxu0 %v348
    %457 = vmatprep.subr.bf16.mxu0 %v345
    %458 = vmatpush1.bf16.msra.mxu0 %v344
    %459 = vmatprep.subr.bf16.mxu0 %v341
    %460 = vmatpush1.bf16.msra.mxu0 %v340
    %461 = vmatprep.subr.bf16.mxu0 %v337
    %462 = vmatpush1.bf16.msra.mxu0 %v336
    %463 = vmatprep.subr.bf16.mxu0 %v333
    %464 = vmatpush1.bf16.msra.mxu0 %v332
    %465 = vmatprep.subr.bf16.mxu0 %v329
    %466 = vmatpush1.bf16.msra.mxu0 %v328
    %467 = vmatprep.subr.bf16.mxu0 %v325
    %468 = vmatpush1.bf16.msra.mxu0 %v324
    %469 = vmatprep.subr.bf16.mxu0 %v321
    %470 = vmatpush1.bf16.msra.mxu0 %v320
    %471 = vmatprep.subr.bf16.mxu0 0
    %472 = vmatpush2.bf16.msra.mxu0 0
    %473 = vmatprep.subr.bf16.mxu0 0
    %474 = vmatpush2.bf16.msra.mxu0 0
    %475 = vmatprep.subr.bf16.mxu0 0
    %476 = vmatpush2.bf16.msra.mxu0 0
    %477 = vmatprep.subr.bf16.mxu0 0
    %478 = vmatpush2.bf16.msra.mxu0 0
    %479 = vmatprep.subr.bf16.mxu0 0
    %480 = vmatpush2.bf16.msra.mxu0 0
    %481 = vmatprep.subr.bf16.mxu0 0
    %482 = vmatpush2.bf16.msra.mxu0 0
    %483 = vmatprep.subr.bf16.mxu0 0
    %484 = vmatpush2.bf16.msra.mxu0 0
    %485 = vmatprep.subr.bf16.mxu0 0
    %486 = vmatpush2.bf16.msra.mxu0 0
    %487 = vmatprep.mubr.bf16.mxu0 0
    %488 = vmatmul.mubr.bf16.gmra.mxu0 %v214
    %v489 = vpop.f32.mrf.mxu0
    %v490 = vadd.f32 %v189, %v489
    %v491 = vpop.f32.mrf.mxu0
    %v492 = vadd.f32 %v193, %v491
    %v493 = vpop.f32.mrf.mxu0
    %v494 = vadd.f32 %v189, %v493
    %v495 = vpop.f32.mrf.mxu0
    %v496 = vadd.f32 %v193, %v495
    %497 = vmatprep.mubr.bf16.mxu0 0
    %498 = vmatmul.mubr.bf16.gmra.mxu0 %v215
    %v499 = vpop.f32.mrf.mxu0
    %v500 = vadd.f32 %v189, %v499
    %v501 = vpop.f32.mrf.mxu0
    %v502 = vadd.f32 %v193, %v501
    %v503 = vpop.f32.mrf.mxu0
    %v504 = vadd.f32 %v189, %v503
    %v505 = vpop.f32.mrf.mxu0
    %v506 = vadd.f32 %v193, %v505
    %507 = vmatprep.mubr.bf16.mxu0 0
    %508 = vmatmul.mubr.bf16.gmra.mxu0 %v216
    %v509 = vpop.f32.mrf.mxu0
    %v510 = vadd.f32 %v189, %v509
    %v511 = vpop.f32.mrf.mxu0
    %v512 = vadd.f32 %v193, %v511
    %v513 = vpop.f32.mrf.mxu0
    %v514 = vadd.f32 %v189, %v513
    %v515 = vpop.f32.mrf.mxu0
    %v516 = vadd.f32 %v193, %v515
    %517 = vmatprep.mubr.bf16.mxu0 0
    %518 = vmatmul.mubr.bf16.gmra.mxu0 %v217
    %v519 = vpop.f32.mrf.mxu0
    %v520 = vadd.f32 %v189, %v519
    %v521 = vpop.f32.mrf.mxu0
    %v522 = vadd.f32 %v193, %v521
    %v523 = vpop.f32.mrf.mxu0
    %v524 = vadd.f32 %v189, %v523
    %v525 = vpop.f32.mrf.mxu0
    %v526 = vadd.f32 %v193, %v525
    %527 = vdwg.mxu0
    %528 = vst [vmem:[#allocation2] sm:$0xff] %v417
    %529 = vst [vmem:[#allocation2 + $0x8] sm:$0xff] %v419
    %530 = vst [vmem:[#allocation2 + $0x10] sm:$0xff] %v490
    %531 = vst [vmem:[#allocation2 + $0x18] sm:$0xff] %v492
    %532 = vst [vmem:[#allocation2 + $0x20] sm:$0xff] %v421
    %533 = vst [vmem:[#allocation2 + $0x28] sm:$0xff] %v423
    %534 = vst [vmem:[#allocation2 + $0x30] sm:$0xff] %v494
    %535 = vst [vmem:[#allocation2 + $0x38] sm:$0xff] %v496
    %536 = vst [vmem:[#allocation2 + $0x40] sm:$0xff] %v427
    %537 = vst [vmem:[#allocation2 + $0x48] sm:$0xff] %v429
    %538 = vst [vmem:[#allocation2 + $0x50] sm:$0xff] %v500
    %539 = vst [vmem:[#allocation2 + $0x58] sm:$0xff] %v502
    %540 = vst [vmem:[#allocation2 + $0x60] sm:$0xff] %v431
    %541 = vst [vmem:[#allocation2 + $0x68] sm:$0xff] %v433
    %542 = vst [vmem:[#allocation2 + $0x70] sm:$0xff] %v504
    %543 = vst [vmem:[#allocation2 + $0x78] sm:$0xff] %v506
    %544 = vst [vmem:[#allocation2 + $0x80] sm:$0xff] %v437
    %545 = vst [vmem:[#allocation2 + $0x88] sm:$0xff] %v439
    %546 = vst [vmem:[#allocation2 + $0x90] sm:$0xff] %v510
    %547 = vst [vmem:[#allocation2 + $0x98] sm:$0xff] %v512
    %548 = vst [vmem:[#allocation2 + $0xa0] sm:$0xff] %v441
    %549 = vst [vmem:[#allocation2 + $0xa8] sm:$0xff] %v443
    %550 = vst [vmem:[#allocation2 + $0xb0] sm:$0xff] %v514
    %551 = vst [vmem:[#allocation2 + $0xb8] sm:$0xff] %v516
    %552 = vst [vmem:[#allocation2 + $0xc0] sm:$0xff] %v447
    %553 = vst [vmem:[#allocation2 + $0xc8] sm:$0xff] %v449
    %554 = vst [vmem:[#allocation2 + $0xd0] sm:$0xff] %v520
    %555 = vst [vmem:[#allocation2 + $0xd8] sm:$0xff] %v522
    %556 = vst [vmem:[#allocation2 + $0xe0] sm:$0xff] %v451
    %557 = vst [vmem:[#allocation2 + $0xe8] sm:$0xff] %v453
    %558 = vst [vmem:[#allocation2 + $0xf0] sm:$0xff] %v524
    %559 = vst [vmem:[#allocation2 + $0xf8] sm:$0xff] %v526
    %v560 = vld [vmem:[#allocation7] sm:$0xff]
    %v561 = vld [vmem:[#allocation9] sm:$0xff]
    %v562 = vld [vmem:[#allocation2] sm:$0xff]
    %v563 = vld [vmem:[#allocation2 + $0x8] sm:$0xff]
    %v564 = vld [vmem:[#allocation2 + $0x10] sm:$0xff]
    %v565 = vld [vmem:[#allocation2 + $0x18] sm:$0xff]
    %v566 = vpack.c.bf16 %v560, %v560
    %v567 = vld [vmem:[#allocation12] sm:$0xff]
    %v568 = vld [vmem:[#allocation12 + $0x8] sm:$0xff]
    %v569 = vld [vmem:[#allocation12 + $0x10] sm:$0xff]
    %v570 = vld [vmem:[#allocation12 + $0x18] sm:$0xff]
    %v571 = vld [vmem:[#allocation12 + $0x20] sm:$0xff]
    %v572 = vld [vmem:[#allocation12 + $0x28] sm:$0xff]
    %v573 = vld [vmem:[#allocation12 + $0x30] sm:$0xff]
    %v574 = vld [vmem:[#allocation12 + $0x38] sm:$0xff]
    %v575 = vld [vmem:[#allocation12 + $0x40] sm:$0xff]
    %v576 = vld [vmem:[#allocation12 + $0x48] sm:$0xff]
    %v577 = vld [vmem:[#allocation12 + $0x50] sm:$0xff]
    %v578 = vld [vmem:[#allocation12 + $0x58] sm:$0xff]
    %v579 = vld [vmem:[#allocation12 + $0x60] sm:$0xff]
    %v580 = vld [vmem:[#allocation12 + $0x68] sm:$0xff]
    %v581 = vld [vmem:[#allocation12 + $0x70] sm:$0xff]
    %v582 = vld [vmem:[#allocation12 + $0x78] sm:$0xff]
    %v583 = vld [vmem:[#allocation12 + $0x80] sm:$0xff]
    %v584 = vld [vmem:[#allocation12 + $0x88] sm:$0xff]
    %v585 = vld [vmem:[#allocation12 + $0x90] sm:$0xff]
    %v586 = vld [vmem:[#allocation12 + $0x98] sm:$0xff]
    %v587 = vld [vmem:[#allocation12 + $0xa0] sm:$0xff]
    %v588 = vld [vmem:[#allocation12 + $0xa8] sm:$0xff]
    %v589 = vld [vmem:[#allocation12 + $0xb0] sm:$0xff]
    %v590 = vld [vmem:[#allocation12 + $0xb8] sm:$0xff]
    %v591 = vld [vmem:[#allocation12 + $0xc0] sm:$0xff]
    %v592 = vld [vmem:[#allocation12 + $0xc8] sm:$0xff]
    %v593 = vld [vmem:[#allocation12 + $0xd0] sm:$0xff]
    %v594 = vld [vmem:[#allocation12 + $0xd8] sm:$0xff]
    %v595 = vld [vmem:[#allocation12 + $0xe0] sm:$0xff]
    %v596 = vld [vmem:[#allocation12 + $0xe8] sm:$0xff]
    %v597 = vld [vmem:[#allocation12 + $0xf0] sm:$0xff]
    %v598 = vld [vmem:[#allocation12 + $0xf8] sm:$0xff]
    %v631 = vunpack.c.l.b16 %v567
    %v632 = vunpack.c.h.b16 %v567
    %v633 = vunpack.c.l.b16 %v568
    %v634 = vunpack.c.h.b16 %v568
    %v635 = vunpack.c.l.b16 %v569
    %v636 = vunpack.c.h.b16 %v569
    %v637 = vunpack.c.l.b16 %v570
    %v638 = vunpack.c.h.b16 %v570
    %v639 = vunpack.c.l.b16 %v571
    %v640 = vunpack.c.h.b16 %v571
    %v641 = vunpack.c.l.b16 %v572
    %v642 = vunpack.c.h.b16 %v572
    %v643 = vunpack.c.l.b16 %v573
    %v644 = vunpack.c.h.b16 %v573
    %v645 = vunpack.c.l.b16 %v574
    %v646 = vunpack.c.h.b16 %v574
    %v647 = vunpack.c.l.b16 %v575
    %v648 = vunpack.c.h.b16 %v575
    %v649 = vunpack.c.l.b16 %v576
    %v650 = vunpack.c.h.b16 %v576
    %v651 = vunpack.c.l.b16 %v577
    %v652 = vunpack.c.h.b16 %v577
    %v653 = vunpack.c.l.b16 %v578
    %v654 = vunpack.c.h.b16 %v578
    %v655 = vunpack.c.l.b16 %v579
    %v656 = vunpack.c.h.b16 %v579
    %v657 = vunpack.c.l.b16 %v580
    %v658 = vunpack.c.h.b16 %v580
    %v659 = vunpack.c.l.b16 %v581
    %v660 = vunpack.c.h.b16 %v581
    %v661 = vunpack.c.l.b16 %v582
    %v662 = vunpack.c.h.b16 %v582
    %v663 = vunpack.c.l.b16 %v583
    %v664 = vunpack.c.h.b16 %v583
    %v665 = vunpack.c.l.b16 %v584
    %v666 = vunpack.c.h.b16 %v584
    %v667 = vunpack.c.l.b16 %v585
    %v668 = vunpack.c.h.b16 %v585
    %v669 = vunpack.c.l.b16 %v586
    %v670 = vunpack.c.h.b16 %v586
    %v671 = vunpack.c.l.b16 %v587
    %v672 = vunpack.c.h.b16 %v587
    %v673 = vunpack.c.l.b16 %v588
    %v674 = vunpack.c.h.b16 %v588
    %v675 = vunpack.c.l.b16 %v589
    %v676 = vunpack.c.h.b16 %v589
    %v677 = vunpack.c.l.b16 %v590
    %v678 = vunpack.c.h.b16 %v590
    %v679 = vunpack.c.l.b16 %v591
    %v680 = vunpack.c.h.b16 %v591
    %v681 = vunpack.c.l.b16 %v592
    %v682 = vunpack.c.h.b16 %v592
    %v683 = vunpack.c.l.b16 %v593
    %v684 = vunpack.c.h.b16 %v593
    %v685 = vunpack.c.l.b16 %v594
    %v686 = vunpack.c.h.b16 %v594
    %v687 = vunpack.c.l.b16 %v595
    %v688 = vunpack.c.h.b16 %v595
    %v689 = vunpack.c.l.b16 %v596
    %v690 = vunpack.c.h.b16 %v596
    %v691 = vunpack.c.l.b16 %v597
    %v692 = vunpack.c.h.b16 %v597
    %v693 = vunpack.c.l.b16 %v598
    %v694 = vunpack.c.h.b16 %v598
    %v695 = vpack.c.b16 %v635, %v631
    %v696 = vpack.c.b16 %v636, %v632
    %v697 = vpack.c.b16 %v637, %v633
    %v698 = vpack.c.b16 %v638, %v634
    %v699 = vpack.c.b16 %v643, %v639
    %v700 = vpack.c.b16 %v644, %v640
    %v701 = vpack.c.b16 %v645, %v641
    %v702 = vpack.c.b16 %v646, %v642
    %v703 = vpack.c.b16 %v651, %v647
    %v704 = vpack.c.b16 %v652, %v648
    %v705 = vpack.c.b16 %v653, %v649
    %v706 = vpack.c.b16 %v654, %v650
    %v707 = vpack.c.b16 %v659, %v655
    %v708 = vpack.c.b16 %v660, %v656
    %v709 = vpack.c.b16 %v661, %v657
    %v710 = vpack.c.b16 %v662, %v658
    %v711 = vpack.c.b16 %v667, %v663
    %v712 = vpack.c.b16 %v668, %v664
    %v713 = vpack.c.b16 %v669, %v665
    %v714 = vpack.c.b16 %v670, %v666
    %v715 = vpack.c.b16 %v675, %v671
    %v716 = vpack.c.b16 %v676, %v672
    %v717 = vpack.c.b16 %v677, %v673
    %v718 = vpack.c.b16 %v678, %v674
    %v719 = vpack.c.b16 %v683, %v679
    %v720 = vpack.c.b16 %v684, %v680
    %v721 = vpack.c.b16 %v685, %v681
    %v722 = vpack.c.b16 %v686, %v682
    %v723 = vpack.c.b16 %v691, %v687
    %v724 = vpack.c.b16 %v692, %v688
    %v725 = vpack.c.b16 %v693, %v689
    %v726 = vpack.c.b16 %v694, %v690
    %759 = vmatprep.subr.bf16.mxu0 %v724
    %760 = vmatpush1.bf16.msra.mxu0 %v723
    %761 = vmatprep.subr.bf16.mxu0 %v720
    %762 = vmatpush1.bf16.msra.mxu0 %v719
    %763 = vmatprep.subr.bf16.mxu0 %v716
    %764 = vmatpush1.bf16.msra.mxu0 %v715
    %765 = vmatprep.subr.bf16.mxu0 %v712
    %766 = vmatpush1.bf16.msra.mxu0 %v711
    %767 = vmatprep.subr.bf16.mxu0 %v708
    %768 = vmatpush1.bf16.msra.mxu0 %v707
    %769 = vmatprep.subr.bf16.mxu0 %v704
    %770 = vmatpush1.bf16.msra.mxu0 %v703
    %771 = vmatprep.subr.bf16.mxu0 %v700
    %772 = vmatpush1.bf16.msra.mxu0 %v699
    %773 = vmatprep.subr.bf16.mxu0 %v696
    %774 = vmatpush1.bf16.msra.mxu0 %v695
    %775 = vmatprep.subr.bf16.mxu0 0
    %776 = vmatpush2.bf16.msra.mxu0 0
    %777 = vmatprep.subr.bf16.mxu0 0
    %778 = vmatpush2.bf16.msra.mxu0 0
    %779 = vmatprep.subr.bf16.mxu0 0
    %780 = vmatpush2.bf16.msra.mxu0 0
    %781 = vmatprep.subr.bf16.mxu0 0
    %782 = vmatpush2.bf16.msra.mxu0 0
    %783 = vmatprep.subr.bf16.mxu0 0
    %784 = vmatpush2.bf16.msra.mxu0 0
    %785 = vmatprep.subr.bf16.mxu0 0
    %786 = vmatpush2.bf16.msra.mxu0 0
    %787 = vmatprep.subr.bf16.mxu0 0
    %788 = vmatpush2.bf16.msra.mxu0 0
    %789 = vmatprep.subr.bf16.mxu0 0
    %790 = vmatpush2.bf16.msra.mxu0 0
    %791 = vmatprep.mubr.bf16.mxu0 0
    %792 = vmatmul.mubr.bf16.gmra.mxu0 %v566
    %v793 = vpop.f32.mrf.mxu0
    %v794 = vadd.f32 0.0, %v793
    %v795 = vpop.f32.mrf.mxu0
    %v796 = vadd.f32 0.0, %v795
    %v797 = vpop.f32.mrf.mxu0
    %v798 = vpop.f32.mrf.mxu0
    %799 = vdwg.mxu0
    %800 = vmatprep.subr.bf16.mxu0 %v726
    %801 = vmatpush1.bf16.msra.mxu0 %v725
    %802 = vmatprep.subr.bf16.mxu0 %v722
    %803 = vmatpush1.bf16.msra.mxu0 %v721
    %804 = vmatprep.subr.bf16.mxu0 %v718
    %805 = vmatpush1.bf16.msra.mxu0 %v717
    %806 = vmatprep.subr.bf16.mxu0 %v714
    %807 = vmatpush1.bf16.msra.mxu0 %v713
    %808 = vmatprep.subr.bf16.mxu0 %v710
    %809 = vmatpush1.bf16.msra.mxu0 %v709
    %810 = vmatprep.subr.bf16.mxu0 %v706
    %811 = vmatpush1.bf16.msra.mxu0 %v705
    %812 = vmatprep.subr.bf16.mxu0 %v702
    %813 = vmatpush1.bf16.msra.mxu0 %v701
    %814 = vmatprep.subr.bf16.mxu0 %v698
    %815 = vmatpush1.bf16.msra.mxu0 %v697
    %816 = vmatprep.subr.bf16.mxu0 0
    %817 = vmatpush2.bf16.msra.mxu0 0
    %818 = vmatprep.subr.bf16.mxu0 0
    %819 = vmatpush2.bf16.msra.mxu0 0
    %820 = vmatprep.subr.bf16.mxu0 0
    %821 = vmatpush2.bf16.msra.mxu0 0
    %822 = vmatprep.subr.bf16.mxu0 0
    %823 = vmatpush2.bf16.msra.mxu0 0
    %824 = vmatprep.subr.bf16.mxu0 0
    %825 = vmatpush2.bf16.msra.mxu0 0
    %826 = vmatprep.subr.bf16.mxu0 0
    %827 = vmatpush2.bf16.msra.mxu0 0
    %828 = vmatprep.subr.bf16.mxu0 0
    %829 = vmatpush2.bf16.msra.mxu0 0
    %830 = vmatprep.subr.bf16.mxu0 0
    %831 = vmatpush2.bf16.msra.mxu0 0
    %832 = vmatprep.mubr.bf16.mxu0 0
    %833 = vmatmul.mubr.bf16.gmra.mxu0 %v566
    %v834 = vpop.f32.mrf.mxu0
    %v835 = vadd.f32 0.0, %v834
    %v836 = vpop.f32.mrf.mxu0
    %v837 = vadd.f32 0.0, %v836
    %v838 = vpop.f32.mrf.mxu0
    %v839 = vpop.f32.mrf.mxu0
    %840 = vdwg.mxu0
    %v841 = vadd.f32 %v562, %v794
    %v842 = vadd.f32 %v563, %v796
    %v843 = vadd.f32 %v564, %v835
    %v844 = vadd.f32 %v565, %v837
    %v845 = vxor.u32 %v841, 2147483648
    %v846 = vxor.u32 %v842, 2147483648
    %v847 = vxor.u32 %v843, 2147483648
    %v848 = vmul.f32 %v845, 1.442695
    %v849 = vpow.pop %v848
    %v850 = vmul.f32 %v846, 1.442695
    %v851 = vpow.pop %v850
    %v852 = vmul.f32 %v847, 1.442695
    %v853 = vpow.pop %v852
    %v854 = vadd.f32 %v849, 1.0
    %v855 = vadd.f32 %v851, 1.0
    %v856 = vadd.f32 %v853, 1.0
    %v857 = vrcp.pop %v854
    %v858 = vmul.f32 1.0, %v857
    %v859 = vrcp.pop %v855
    %v860 = vmul.f32 1.0, %v859
    %v861 = vrcp.pop %v856
    %v862 = vmul.f32 1.0, %v861
    %v863 = vtanh.pop %v844
    %v864 = vmul.f32 %v860, %v561
    %v865 = vmul.f32 %v858, %v863
    %v866 = vadd.f32 %v864, %v865
    %v867 = vtanh.pop %v866
    %v868 = vmul.f32 %v862, %v867
    %v869 = vpack.c.bf16 %v868, %v868
    %870 = vst [vmem:[#allocation3] sm:$0xf] %v869
    %v871 = vld [vmem:[#allocation2 + $0x20] sm:$0xff]
    %v872 = vld [vmem:[#allocation2 + $0x28] sm:$0xff]
    %v873 = vld [vmem:[#allocation2 + $0x30] sm:$0xff]
    %v874 = vld [vmem:[#allocation2 + $0x38] sm:$0xff]
    %v875 = vld [vmem:[#allocation12] sm:$0xff]
    %v876 = vld [vmem:[#allocation12 + $0x8] sm:$0xff]
    %v877 = vld [vmem:[#allocation12 + $0x10] sm:$0xff]
    %v878 = vld [vmem:[#allocation12 + $0x18] sm:$0xff]
    %v879 = vld [vmem:[#allocation12 + $0x20] sm:$0xff]
    %v880 = vld [vmem:[#allocation12 + $0x28] sm:$0xff]
    %v881 = vld [vmem:[#allocation12 + $0x30] sm:$0xff]
    %v882 = vld [vmem:[#allocation12 + $0x38] sm:$0xff]
    %v883 = vld [vmem:[#allocation12 + $0x40] sm:$0xff]
    %v884 = vld [vmem:[#allocation12 + $0x48] sm:$0xff]
    %v885 = vld [vmem:[#allocation12 + $0x50] sm:$0xff]
    %v886 = vld [vmem:[#allocation12 + $0x58] sm:$0xff]
    %v887 = vld [vmem:[#allocation12 + $0x60] sm:$0xff]
    %v888 = vld [vmem:[#allocation12 + $0x68] sm:$0xff]
    %v889 = vld [vmem:[#allocation12 + $0x70] sm:$0xff]
    %v890 = vld [vmem:[#allocation12 + $0x78] sm:$0xff]
    %v891 = vld [vmem:[#allocation12 + $0x80] sm:$0xff]
    %v892 = vld [vmem:[#allocation12 + $0x88] sm:$0xff]
    %v893 = vld [vmem:[#allocation12 + $0x90] sm:$0xff]
    %v894 = vld [vmem:[#allocation12 + $0x98] sm:$0xff]
    %v895 = vld [vmem:[#allocation12 + $0xa0] sm:$0xff]
    %v896 = vld [vmem:[#allocation12 + $0xa8] sm:$0xff]
    %v897 = vld [vmem:[#allocation12 + $0xb0] sm:$0xff]
    %v898 = vld [vmem:[#allocation12 + $0xb8] sm:$0xff]
    %v899 = vld [vmem:[#allocation12 + $0xc0] sm:$0xff]
    %v900 = vld [vmem:[#allocation12 + $0xc8] sm:$0xff]
    %v901 = vld [vmem:[#allocation12 + $0xd0] sm:$0xff]
    %v902 = vld [vmem:[#allocation12 + $0xd8] sm:$0xff]
    %v903 = vld [vmem:[#allocation12 + $0xe0] sm:$0xff]
    %v904 = vld [vmem:[#allocation12 + $0xe8] sm:$0xff]
    %v905 = vld [vmem:[#allocation12 + $0xf0] sm:$0xff]
    %v906 = vld [vmem:[#allocation12 + $0xf8] sm:$0xff]
    %v939 = vunpack.c.l.b16 %v875
    %v940 = vunpack.c.h.b16 %v875
    %v941 = vunpack.c.l.b16 %v876
    %v942 = vunpack.c.h.b16 %v876
    %v943 = vunpack.c.l.b16 %v877
    %v944 = vunpack.c.h.b16 %v877
    %v945 = vunpack.c.l.b16 %v878
    %v946 = vunpack.c.h.b16 %v878
    %v947 = vunpack.c.l.b16 %v879
    %v948 = vunpack.c.h.b16 %v879
    %v949 = vunpack.c.l.b16 %v880
    %v950 = vunpack.c.h.b16 %v880
    %v951 = vunpack.c.l.b16 %v881
    %v952 = vunpack.c.h.b16 %v881
    %v953 = vunpack.c.l.b16 %v882
    %v954 = vunpack.c.h.b16 %v882
    %v955 = vunpack.c.l.b16 %v883
    %v956 = vunpack.c.h.b16 %v883
    %v957 = vunpack.c.l.b16 %v884
    %v958 = vunpack.c.h.b16 %v884
    %v959 = vunpack.c.l.b16 %v885
    %v960 = vunpack.c.h.b16 %v885
    %v961 = vunpack.c.l.b16 %v886
    %v962 = vunpack.c.h.b16 %v886
    %v963 = vunpack.c.l.b16 %v887
    %v964 = vunpack.c.h.b16 %v887
    %v965 = vunpack.c.l.b16 %v888
    %v966 = vunpack.c.h.b16 %v888
    %v967 = vunpack.c.l.b16 %v889
    %v968 = vunpack.c.h.b16 %v889
    %v969 = vunpack.c.l.b16 %v890
    %v970 = vunpack.c.h.b16 %v890
    %v971 = vunpack.c.l.b16 %v891
    %v972 = vunpack.c.h.b16 %v891
    %v973 = vunpack.c.l.b16 %v892
    %v974 = vunpack.c.h.b16 %v892
    %v975 = vunpack.c.l.b16 %v893
    %v976 = vunpack.c.h.b16 %v893
    %v977 = vunpack.c.l.b16 %v894
    %v978 = vunpack.c.h.b16 %v894
    %v979 = vunpack.c.l.b16 %v895
    %v980 = vunpack.c.h.b16 %v895
    %v981 = vunpack.c.l.b16 %v896
    %v982 = vunpack.c.h.b16 %v896
    %v983 = vunpack.c.l.b16 %v897
    %v984 = vunpack.c.h.b16 %v897
    %v985 = vunpack.c.l.b16 %v898
    %v986 = vunpack.c.h.b16 %v898
    %v987 = vunpack.c.l.b16 %v899
    %v988 = vunpack.c.h.b16 %v899
    %v989 = vunpack.c.l.b16 %v900
    %v990 = vunpack.c.h.b16 %v900
    %v991 = vunpack.c.l.b16 %v901
    %v992 = vunpack.c.h.b16 %v901
    %v993 = vunpack.c.l.b16 %v902
    %v994 = vunpack.c.h.b16 %v902
    %v995 = vunpack.c.l.b16 %v903
    %v996 = vunpack.c.h.b16 %v903
    %v997 = vunpack.c.l.b16 %v904
    %v998 = vunpack.c.h.b16 %v904
    %v999 = vunpack.c.l.b16 %v905
    %v1000 = vunpack.c.h.b16 %v905
    %v1001 = vunpack.c.l.b16 %v906
    %v1002 = vunpack.c.h.b16 %v906
    %v1003 = vpack.c.b16 %v943, %v939
    %v1004 = vpack.c.b16 %v944, %v940
    %v1005 = vpack.c.b16 %v945, %v941
    %v1006 = vpack.c.b16 %v946, %v942
    %v1007 = vpack.c.b16 %v951, %v947
    %v1008 = vpack.c.b16 %v952, %v948
    %v1009 = vpack.c.b16 %v953, %v949
    %v1010 = vpack.c.b16 %v954, %v950
    %v1011 = vpack.c.b16 %v959, %v955
    %v1012 = vpack.c.b16 %v960, %v956
    %v1013 = vpack.c.b16 %v961, %v957
    %v1014 = vpack.c.b16 %v962, %v958
    %v1015 = vpack.c.b16 %v967, %v963
    %v1016 = vpack.c.b16 %v968, %v964
    %v1017 = vpack.c.b16 %v969, %v965
    %v1018 = vpack.c.b16 %v970, %v966
    %v1019 = vpack.c.b16 %v975, %v971
    %v1020 = vpack.c.b16 %v976, %v972
    %v1021 = vpack.c.b16 %v977, %v973
    %v1022 = vpack.c.b16 %v978, %v974
    %v1023 = vpack.c.b16 %v983, %v979
    %v1024 = vpack.c.b16 %v984, %v980
    %v1025 = vpack.c.b16 %v985, %v981
    %v1026 = vpack.c.b16 %v986, %v982
    %v1027 = vpack.c.b16 %v991, %v987
    %v1028 = vpack.c.b16 %v992, %v988
    %v1029 = vpack.c.b16 %v993, %v989
    %v1030 = vpack.c.b16 %v994, %v990
    %v1031 = vpack.c.b16 %v999, %v995
    %v1032 = vpack.c.b16 %v1000, %v996
    %v1033 = vpack.c.b16 %v1001, %v997
    %v1034 = vpack.c.b16 %v1002, %v998
    %1067 = vmatprep.subr.bf16.mxu0 %v1032
    %1068 = vmatpush1.bf16.msra.mxu0 %v1031
    %1069 = vmatprep.subr.bf16.mxu0 %v1028
    %1070 = vmatpush1.bf16.msra.mxu0 %v1027
    %1071 = vmatprep.subr.bf16.mxu0 %v1024
    %1072 = vmatpush1.bf16.msra.mxu0 %v1023
    %1073 = vmatprep.subr.bf16.mxu0 %v1020
    %1074 = vmatpush1.bf16.msra.mxu0 %v1019
    %1075 = vmatprep.subr.bf16.mxu0 %v1016
    %1076 = vmatpush1.bf16.msra.mxu0 %v1015
    %1077 = vmatprep.subr.bf16.mxu0 %v1012
    %1078 = vmatpush1.bf16.msra.mxu0 %v1011
    %1079 = vmatprep.subr.bf16.mxu0 %v1008
    %1080 = vmatpush1.bf16.msra.mxu0 %v1007
    %1081 = vmatprep.subr.bf16.mxu0 %v1004
    %1082 = vmatpush1.bf16.msra.mxu0 %v1003
    %1083 = vmatprep.subr.bf16.mxu0 0
    %1084 = vmatpush2.bf16.msra.mxu0 0
    %1085 = vmatprep.subr.bf16.mxu0 0
    %1086 = vmatpush2.bf16.msra.mxu0 0
    %1087 = vmatprep.subr.bf16.mxu0 0
    %1088 = vmatpush2.bf16.msra.mxu0 0
    %1089 = vmatprep.subr.bf16.mxu0 0
    %1090 = vmatpush2.bf16.msra.mxu0 0
    %1091 = vmatprep.subr.bf16.mxu0 0
    %1092 = vmatpush2.bf16.msra.mxu0 0
    %1093 = vmatprep.subr.bf16.mxu0 0
    %1094 = vmatpush2.bf16.msra.mxu0 0
    %1095 = vmatprep.subr.bf16.mxu0 0
    %1096 = vmatpush2.bf16.msra.mxu0 0
    %1097 = vmatprep.subr.bf16.mxu0 0
    %1098 = vmatpush2.bf16.msra.mxu0 0
    %1099 = vmatprep.mubr.bf16.mxu0 0
    %1100 = vmatmul.mubr.bf16.gmra.mxu0 %v869
    %v1101 = vpop.f32.mrf.mxu0
    %v1102 = vadd.f32 0.0, %v1101
    %v1103 = vpop.f32.mrf.mxu0
    %v1104 = vadd.f32 0.0, %v1103
    %v1105 = vpop.f32.mrf.mxu0
    %v1106 = vpop.f32.mrf.mxu0
    %1107 = vdwg.mxu0
    %1108 = vmatprep.subr.bf16.mxu0 %v1034
    %1109 = vmatpush1.bf16.msra.mxu0 %v1033
    %1110 = vmatprep.subr.bf16.mxu0 %v1030
    %1111 = vmatpush1.bf16.msra.mxu0 %v1029
    %1112 = vmatprep.subr.bf16.mxu0 %v1026
    %1113 = vmatpush1.bf16.msra.mxu0 %v1025
    %1114 = vmatprep.subr.bf16.mxu0 %v1022
    %1115 = vmatpush1.bf16.msra.mxu0 %v1021
    %1116 = vmatprep.subr.bf16.mxu0 %v1018
    %1117 = vmatpush1.bf16.msra.mxu0 %v1017
    %1118 = vmatprep.subr.bf16.mxu0 %v1014
    %1119 = vmatpush1.bf16.msra.mxu0 %v1013
    %1120 = vmatprep.subr.bf16.mxu0 %v1010
    %1121 = vmatpush1.bf16.msra.mxu0 %v1009
    %1122 = vmatprep.subr.bf16.mxu0 %v1006
    %1123 = vmatpush1.bf16.msra.mxu0 %v1005
    %1124 = vmatprep.subr.bf16.mxu0 0
    %1125 = vmatpush2.bf16.msra.mxu0 0
    %1126 = vmatprep.subr.bf16.mxu0 0
    %1127 = vmatpush2.bf16.msra.mxu0 0
    %1128 = vmatprep.subr.bf16.mxu0 0
    %1129 = vmatpush2.bf16.msra.mxu0 0
    %1130 = vmatprep.subr.bf16.mxu0 0
    %1131 = vmatpush2.bf16.msra.mxu0 0
    %1132 = vmatprep.subr.bf16.mxu0 0
    %1133 = vmatpush2.bf16.msra.mxu0 0
    %1134 = vmatprep.subr.bf16.mxu0 0
    %1135 = vmatpush2.bf16.msra.mxu0 0
    %1136 = vmatprep.subr.bf16.mxu0 0
    %1137 = vmatpush2.bf16.msra.mxu0 0
    %1138 = vmatprep.subr.bf16.mxu0 0
    %1139 = vmatpush2.bf16.msra.mxu0 0
    %1140 = vmatprep.mubr.bf16.mxu0 0
    %1141 = vmatmul.mubr.bf16.gmra.mxu0 %v869
    %v1142 = vpop.f32.mrf.mxu0
    %v1143 = vadd.f32 0.0, %v1142
    %v1144 = vpop.f32.mrf.mxu0
    %v1145 = vadd.f32 0.0, %v1144
    %v1146 = vpop.f32.mrf.mxu0
    %v1147 = vpop.f32.mrf.mxu0
    %1148 = vdwg.mxu0
    %v1149 = vadd.f32 %v871, %v1102
    %v1150 = vadd.f32 %v872, %v1104
    %v1151 = vadd.f32 %v873, %v1143
    %v1152 = vadd.f32 %v874, %v1145
    %v1153 = vxor.u32 %v1149, 2147483648
    %v1154 = vxor.u32 %v1150, 2147483648
    %v1155 = vxor.u32 %v1151, 2147483648
    %v1156 = vmul.f32 %v1153, 1.442695
    %v1157 = vpow.pop %v1156
    %v1158 = vmul.f32 %v1154, 1.442695
    %v1159 = vpow.pop %v1158
    %v1160 = vmul.f32 %v1155, 1.442695
    %v1161 = vpow.pop %v1160
    %v1162 = vadd.f32 %v1157, 1.0
    %v1163 = vadd.f32 %v1159, 1.0
    %v1164 = vadd.f32 %v1161, 1.0
    %v1165 = vrcp.pop %v1162
    %v1166 = vmul.f32 1.0, %v1165
    %v1167 = vrcp.pop %v1163
    %v1168 = vmul.f32 1.0, %v1167
    %v1169 = vrcp.pop %v1164
    %v1170 = vmul.f32 1.0, %v1169
    %v1171 = vtanh.pop %v1152
    %v1172 = vmul.f32 %v1168, %v866
    %v1173 = vmul.f32 %v1166, %v1171
    %v1174 = vadd.f32 %v1172, %v1173
    %v1175 = vtanh.pop %v1174
    %v1176 = vmul.f32 %v1170, %v1175
    %v1177 = vpack.c.bf16 %v1176, %v1176
    %1178 = vst [vmem:[#allocation3 + $0x4] sm:$0xf] %v1177
    %v1179 = vld [vmem:[#allocation2 + $0x40] sm:$0xff]
    %v1180 = vld [vmem:[#allocation2 + $0x48] sm:$0xff]
    %v1181 = vld [vmem:[#allocation2 + $0x50] sm:$0xff]
    %v1182 = vld [vmem:[#allocation2 + $0x58] sm:$0xff]
    %v1183 = vld [vmem:[#allocation12] sm:$0xff]
    %v1184 = vld [vmem:[#allocation12 + $0x8] sm:$0xff]
    %v1185 = vld [vmem:[#allocation12 + $0x10] sm:$0xff]
    %v1186 = vld [vmem:[#allocation12 + $0x18] sm:$0xff]
    %v1187 = vld [vmem:[#allocation12 + $0x20] sm:$0xff]
    %v1188 = vld [vmem:[#allocation12 + $0x28] sm:$0xff]
    %v1189 = vld [vmem:[#allocation12 + $0x30] sm:$0xff]
    %v1190 = vld [vmem:[#allocation12 + $0x38] sm:$0xff]
    %v1191 = vld [vmem:[#allocation12 + $0x40] sm:$0xff]
    %v1192 = vld [vmem:[#allocation12 + $0x48] sm:$0xff]
    %v1193 = vld [vmem:[#allocation12 + $0x50] sm:$0xff]
    %v1194 = vld [vmem:[#allocation12 + $0x58] sm:$0xff]
    %v1195 = vld [vmem:[#allocation12 + $0x60] sm:$0xff]
    %v1196 = vld [vmem:[#allocation12 + $0x68] sm:$0xff]
    %v1197 = vld [vmem:[#allocation12 + $0x70] sm:$0xff]
    %v1198 = vld [vmem:[#allocation12 + $0x78] sm:$0xff]
    %v1199 = vld [vmem:[#allocation12 + $0x80] sm:$0xff]
    %v1200 = vld [vmem:[#allocation12 + $0x88] sm:$0xff]
    %v1201 = vld [vmem:[#allocation12 + $0x90] sm:$0xff]
    %v1202 = vld [vmem:[#allocation12 + $0x98] sm:$0xff]
    %v1203 = vld [vmem:[#allocation12 + $0xa0] sm:$0xff]
    %v1204 = vld [vmem:[#allocation12 + $0xa8] sm:$0xff]
    %v1205 = vld [vmem:[#allocation12 + $0xb0] sm:$0xff]
    %v1206 = vld [vmem:[#allocation12 + $0xb8] sm:$0xff]
    %v1207 = vld [vmem:[#allocation12 + $0xc0] sm:$0xff]
    %v1208 = vld [vmem:[#allocation12 + $0xc8] sm:$0xff]
    %v1209 = vld [vmem:[#allocation12 + $0xd0] sm:$0xff]
    %v1210 = vld [vmem:[#allocation12 + $0xd8] sm:$0xff]
    %v1211 = vld [vmem:[#allocation12 + $0xe0] sm:$0xff]
    %v1212 = vld [vmem:[#allocation12 + $0xe8] sm:$0xff]
    %v1213 = vld [vmem:[#allocation12 + $0xf0] sm:$0xff]
    %v1214 = vld [vmem:[#allocation12 + $0xf8] sm:$0xff]
    %v1247 = vunpack.c.l.b16 %v1183
    %v1248 = vunpack.c.h.b16 %v1183
    %v1249 = vunpack.c.l.b16 %v1184
    %v1250 = vunpack.c.h.b16 %v1184
    %v1251 = vunpack.c.l.b16 %v1185
    %v1252 = vunpack.c.h.b16 %v1185
    %v1253 = vunpack.c.l.b16 %v1186
    %v1254 = vunpack.c.h.b16 %v1186
    %v1255 = vunpack.c.l.b16 %v1187
    %v1256 = vunpack.c.h.b16 %v1187
    %v1257 = vunpack.c.l.b16 %v1188
    %v1258 = vunpack.c.h.b16 %v1188
    %v1259 = vunpack.c.l.b16 %v1189
    %v1260 = vunpack.c.h.b16 %v1189
    %v1261 = vunpack.c.l.b16 %v1190
    %v1262 = vunpack.c.h.b16 %v1190
    %v1263 = vunpack.c.l.b16 %v1191
    %v1264 = vunpack.c.h.b16 %v1191
    %v1265 = vunpack.c.l.b16 %v1192
    %v1266 = vunpack.c.h.b16 %v1192
    %v1267 = vunpack.c.l.b16 %v1193
    %v1268 = vunpack.c.h.b16 %v1193
    %v1269 = vunpack.c.l.b16 %v1194
    %v1270 = vunpack.c.h.b16 %v1194
    %v1271 = vunpack.c.l.b16 %v1195
    %v1272 = vunpack.c.h.b16 %v1195
    %v1273 = vunpack.c.l.b16 %v1196
    %v1274 = vunpack.c.h.b16 %v1196
    %v1275 = vunpack.c.l.b16 %v1197
    %v1276 = vunpack.c.h.b16 %v1197
    %v1277 = vunpack.c.l.b16 %v1198
    %v1278 = vunpack.c.h.b16 %v1198
    %v1279 = vunpack.c.l.b16 %v1199
    %v1280 = vunpack.c.h.b16 %v1199
    %v1281 = vunpack.c.l.b16 %v1200
    %v1282 = vunpack.c.h.b16 %v1200
    %v1283 = vunpack.c.l.b16 %v1201
    %v1284 = vunpack.c.h.b16 %v1201
    %v1285 = vunpack.c.l.b16 %v1202
    %v1286 = vunpack.c.h.b16 %v1202
    %v1287 = vunpack.c.l.b16 %v1203
    %v1288 = vunpack.c.h.b16 %v1203
    %v1289 = vunpack.c.l.b16 %v1204
    %v1290 = vunpack.c.h.b16 %v1204
    %v1291 = vunpack.c.l.b16 %v1205
    %v1292 = vunpack.c.h.b16 %v1205
    %v1293 = vunpack.c.l.b16 %v1206
    %v1294 = vunpack.c.h.b16 %v1206
    %v1295 = vunpack.c.l.b16 %v1207
    %v1296 = vunpack.c.h.b16 %v1207
    %v1297 = vunpack.c.l.b16 %v1208
    %v1298 = vunpack.c.h.b16 %v1208
    %v1299 = vunpack.c.l.b16 %v1209
    %v1300 = vunpack.c.h.b16 %v1209
    %v1301 = vunpack.c.l.b16 %v1210
    %v1302 = vunpack.c.h.b16 %v1210
    %v1303 = vunpack.c.l.b16 %v1211
    %v1304 = vunpack.c.h.b16 %v1211
    %v1305 = vunpack.c.l.b16 %v1212
    %v1306 = vunpack.c.h.b16 %v1212
    %v1307 = vunpack.c.l.b16 %v1213
    %v1308 = vunpack.c.h.b16 %v1213
    %v1309 = vunpack.c.l.b16 %v1214
    %v1310 = vunpack.c.h.b16 %v1214
    %v1311 = vpack.c.b16 %v1251, %v1247
    %v1312 = vpack.c.b16 %v1252, %v1248
    %v1313 = vpack.c.b16 %v1253, %v1249
    %v1314 = vpack.c.b16 %v1254, %v1250
    %v1315 = vpack.c.b16 %v1259, %v1255
    %v1316 = vpack.c.b16 %v1260, %v1256
    %v1317 = vpack.c.b16 %v1261, %v1257
    %v1318 = vpack.c.b16 %v1262, %v1258
    %v1319 = vpack.c.b16 %v1267, %v1263
    %v1320 = vpack.c.b16 %v1268, %v1264
    %v1321 = vpack.c.b16 %v1269, %v1265
    %v1322 = vpack.c.b16 %v1270, %v1266
    %v1323 = vpack.c.b16 %v1275, %v1271
    %v1324 = vpack.c.b16 %v1276, %v1272
    %v1325 = vpack.c.b16 %v1277, %v1273
    %v1326 = vpack.c.b16 %v1278, %v1274
    %v1327 = vpack.c.b16 %v1283, %v1279
    %v1328 = vpack.c.b16 %v1284, %v1280
    %v1329 = vpack.c.b16 %v1285, %v1281
    %v1330 = vpack.c.b16 %v1286, %v1282
    %v1331 = vpack.c.b16 %v1291, %v1287
    %v1332 = vpack.c.b16 %v1292, %v1288
    %v1333 = vpack.c.b16 %v1293, %v1289
    %v1334 = vpack.c.b16 %v1294, %v1290
    %v1335 = vpack.c.b16 %v1299, %v1295
    %v1336 = vpack.c.b16 %v1300, %v1296
    %v1337 = vpack.c.b16 %v1301, %v1297
    %v1338 = vpack.c.b16 %v1302, %v1298
    %v1339 = vpack.c.b16 %v1307, %v1303
    %v1340 = vpack.c.b16 %v1308, %v1304
    %v1341 = vpack.c.b16 %v1309, %v1305
    %v1342 = vpack.c.b16 %v1310, %v1306
    %1375 = vmatprep.subr.bf16.mxu0 %v1340
    %1376 = vmatpush1.bf16.msra.mxu0 %v1339
    %1377 = vmatprep.subr.bf16.mxu0 %v1336
    %1378 = vmatpush1.bf16.msra.mxu0 %v1335
    %1379 = vmatprep.subr.bf16.mxu0 %v1332
    %1380 = vmatpush1.bf16.msra.mxu0 %v1331
    %1381 = vmatprep.subr.bf16.mxu0 %v1328
    %1382 = vmatpush1.bf16.msra.mxu0 %v1327
    %1383 = vmatprep.subr.bf16.mxu0 %v1324
    %1384 = vmatpush1.bf16.msra.mxu0 %v1323
    %1385 = vmatprep.subr.bf16.mxu0 %v1320
    %1386 = vmatpush1.bf16.msra.mxu0 %v1319
    %1387 = vmatprep.subr.bf16.mxu0 %v1316
    %1388 = vmatpush1.bf16.msra.mxu0 %v1315
    %1389 = vmatprep.subr.bf16.mxu0 %v1312
    %1390 = vmatpush1.bf16.msra.mxu0 %v1311
    %1391 = vmatprep.subr.bf16.mxu0 0
    %1392 = vmatpush2.bf16.msra.mxu0 0
    %1393 = vmatprep.subr.bf16.mxu0 0
    %1394 = vmatpush2.bf16.msra.mxu0 0
    %1395 = vmatprep.subr.bf16.mxu0 0
    %1396 = vmatpush2.bf16.msra.mxu0 0
    %1397 = vmatprep.subr.bf16.mxu0 0
    %1398 = vmatpush2.bf16.msra.mxu0 0
    %1399 = vmatprep.subr.bf16.mxu0 0
    %1400 = vmatpush2.bf16.msra.mxu0 0
    %1401 = vmatprep.subr.bf16.mxu0 0
    %1402 = vmatpush2.bf16.msra.mxu0 0
    %1403 = vmatprep.subr.bf16.mxu0 0
    %1404 = vmatpush2.bf16.msra.mxu0 0
    %1405 = vmatprep.subr.bf16.mxu0 0
    %1406 = vmatpush2.bf16.msra.mxu0 0
    %1407 = vmatprep.mubr.bf16.mxu0 0
    %1408 = vmatmul.mubr.bf16.gmra.mxu0 %v1177
    %v1409 = vpop.f32.mrf.mxu0
    %v1410 = vadd.f32 0.0, %v1409
    %v1411 = vpop.f32.mrf.mxu0
    %v1412 = vadd.f32 0.0, %v1411
    %v1413 = vpop.f32.mrf.mxu0
    %v1414 = vpop.f32.mrf.mxu0
    %1415 = vdwg.mxu0
    %1416 = vmatprep.subr.bf16.mxu0 %v1342
    %1417 = vmatpush1.bf16.msra.mxu0 %v1341
    %1418 = vmatprep.subr.bf16.mxu0 %v1338
    %1419 = vmatpush1.bf16.msra.mxu0 %v1337
    %1420 = vmatprep.subr.bf16.mxu0 %v1334
    %1421 = vmatpush1.bf16.msra.mxu0 %v1333
    %1422 = vmatprep.subr.bf16.mxu0 %v1330
    %1423 = vmatpush1.bf16.msra.mxu0 %v1329
    %1424 = vmatprep.subr.bf16.mxu0 %v1326
    %1425 = vmatpush1.bf16.msra.mxu0 %v1325
    %1426 = vmatprep.subr.bf16.mxu0 %v1322
    %1427 = vmatpush1.bf16.msra.mxu0 %v1321
    %1428 = vmatprep.subr.bf16.mxu0 %v1318
    %1429 = vmatpush1.bf16.msra.mxu0 %v1317
    %1430 = vmatprep.subr.bf16.mxu0 %v1314
    %1431 = vmatpush1.bf16.msra.mxu0 %v1313
    %1432 = vmatprep.subr.bf16.mxu0 0
    %1433 = vmatpush2.bf16.msra.mxu0 0
    %1434 = vmatprep.subr.bf16.mxu0 0
    %1435 = vmatpush2.bf16.msra.mxu0 0
    %1436 = vmatprep.subr.bf16.mxu0 0
    %1437 = vmatpush2.bf16.msra.mxu0 0
    %1438 = vmatprep.subr.bf16.mxu0 0
    %1439 = vmatpush2.bf16.msra.mxu0 0
    %1440 = vmatprep.subr.bf16.mxu0 0
    %1441 = vmatpush2.bf16.msra.mxu0 0
    %1442 = vmatprep.subr.bf16.mxu0 0
    %1443 = vmatpush2.bf16.msra.mxu0 0
    %1444 = vmatprep.subr.bf16.mxu0 0
    %1445 = vmatpush2.bf16.msra.mxu0 0
    %1446 = vmatprep.subr.bf16.mxu0 0
    %1447 = vmatpush2.bf16.msra.mxu0 0
    %1448 = vmatprep.mubr.bf16.mxu0 0
    %1449 = vmatmul.mubr.bf16.gmra.mxu0 %v1177
    %v1450 = vpop.f32.mrf.mxu0
    %v1451 = vadd.f32 0.0, %v1450
    %v1452 = vpop.f32.mrf.mxu0
    %v1453 = vadd.f32 0.0, %v1452
    %v1454 = vpop.f32.mrf.mxu0
    %v1455 = vpop.f32.mrf.mxu0
    %1456 = vdwg.mxu0
    %v1457 = vadd.f32 %v1179, %v1410
    %v1458 = vadd.f32 %v1180, %v1412
    %v1459 = vadd.f32 %v1181, %v1451
    %v1460 = vadd.f32 %v1182, %v1453
    %v1461 = vxor.u32 %v1457, 2147483648
    %v1462 = vxor.u32 %v1458, 2147483648
    %v1463 = vxor.u32 %v1459, 2147483648
    %v1464 = vmul.f32 %v1461, 1.442695
    %v1465 = vpow.pop %v1464
    %v1466 = vmul.f32 %v1462, 1.442695
    %v1467 = vpow.pop %v1466
    %v1468 = vmul.f32 %v1463, 1.442695
    %v1469 = vpow.pop %v1468
    %v1470 = vadd.f32 %v1465, 1.0
    %v1471 = vadd.f32 %v1467, 1.0
    %v1472 = vadd.f32 %v1469, 1.0
    %v1473 = vrcp.pop %v1470
    %v1474 = vmul.f32 1.0, %v1473
    %v1475 = vrcp.pop %v1471
    %v1476 = vmul.f32 1.0, %v1475
    %v1477 = vrcp.pop %v1472
    %v1478 = vmul.f32 1.0, %v1477
    %v1479 = vtanh.pop %v1460
    %v1480 = vmul.f32 %v1476, %v1174
    %v1481 = vmul.f32 %v1474, %v1479
    %v1482 = vadd.f32 %v1480, %v1481
    %v1483 = vtanh.pop %v1482
    %v1484 = vmul.f32 %v1478, %v1483
    %v1485 = vpack.c.bf16 %v1484, %v1484
    %1486 = vst [vmem:[#allocation3 + $0x8] sm:$0xf] %v1485
    %v1487 = vld [vmem:[#allocation2 + $0x60] sm:$0xff]
    %v1488 = vld [vmem:[#allocation2 + $0x68] sm:$0xff]
    %v1489 = vld [vmem:[#allocation2 + $0x70] sm:$0xff]
    %v1490 = vld [vmem:[#allocation2 + $0x78] sm:$0xff]
    %v1491 = vld [vmem:[#allocation12] sm:$0xff]
    %v1492 = vld [vmem:[#allocation12 + $0x8] sm:$0xff]
    %v1493 = vld [vmem:[#allocation12 + $0x10] sm:$0xff]
    %v1494 = vld [vmem:[#allocation12 + $0x18] sm:$0xff]
    %v1495 = vld [vmem:[#allocation12 + $0x20] sm:$0xff]
    %v1496 = vld [vmem:[#allocation12 + $0x28] sm:$0xff]
    %v1497 = vld [vmem:[#allocation12 + $0x30] sm:$0xff]
    %v1498 = vld [vmem:[#allocation12 + $0x38] sm:$0xff]
    %v1499 = vld [vmem:[#allocation12 + $0x40] sm:$0xff]
    %v1500 = vld [vmem:[#allocation12 + $0x48] sm:$0xff]
    %v1501 = vld [vmem:[#allocation12 + $0x50] sm:$0xff]
    %v1502 = vld [vmem:[#allocation12 + $0x58] sm:$0xff]
    %v1503 = vld [vmem:[#allocation12 + $0x60] sm:$0xff]
    %v1504 = vld [vmem:[#allocation12 + $0x68] sm:$0xff]
    %v1505 = vld [vmem:[#allocation12 + $0x70] sm:$0xff]
    %v1506 = vld [vmem:[#allocation12 + $0x78] sm:$0xff]
    %v1507 = vld [vmem:[#allocation12 + $0x80] sm:$0xff]
    %v1508 = vld [vmem:[#allocation12 + $0x88] sm:$0xff]
    %v1509 = vld [vmem:[#allocation12 + $0x90] sm:$0xff]
    %v1510 = vld [vmem:[#allocation12 + $0x98] sm:$0xff]
    %v1511 = vld [vmem:[#allocation12 + $0xa0] sm:$0xff]
    %v1512 = vld [vmem:[#allocation12 + $0xa8] sm:$0xff]
    %v1513 = vld [vmem:[#allocation12 + $0xb0] sm:$0xff]
    %v1514 = vld [vmem:[#allocation12 + $0xb8] sm:$0xff]
    %v1515 = vld [vmem:[#allocation12 + $0xc0] sm:$0xff]
    %v1516 = vld [vmem:[#allocation12 + $0xc8] sm:$0xff]
    %v1517 = vld [vmem:[#allocation12 + $0xd0] sm:$0xff]
    %v1518 = vld [vmem:[#allocation12 + $0xd8] sm:$0xff]
    %v1519 = vld [vmem:[#allocation12 + $0xe0] sm:$0xff]
    %v1520 = vld [vmem:[#allocation12 + $0xe8] sm:$0xff]
    %v1521 = vld [vmem:[#allocation12 + $0xf0] sm:$0xff]
    %v1522 = vld [vmem:[#allocation12 + $0xf8] sm:$0xff]
    %v1555 = vunpack.c.l.b16 %v1491
    %v1556 = vunpack.c.h.b16 %v1491
    %v1557 = vunpack.c.l.b16 %v1492
    %v1558 = vunpack.c.h.b16 %v1492
    %v1559 = vunpack.c.l.b16 %v1493
    %v1560 = vunpack.c.h.b16 %v1493
    %v1561 = vunpack.c.l.b16 %v1494
    %v1562 = vunpack.c.h.b16 %v1494
    %v1563 = vunpack.c.l.b16 %v1495
    %v1564 = vunpack.c.h.b16 %v1495
    %v1565 = vunpack.c.l.b16 %v1496
    %v1566 = vunpack.c.h.b16 %v1496
    %v1567 = vunpack.c.l.b16 %v1497
    %v1568 = vunpack.c.h.b16 %v1497
    %v1569 = vunpack.c.l.b16 %v1498
    %v1570 = vunpack.c.h.b16 %v1498
    %v1571 = vunpack.c.l.b16 %v1499
    %v1572 = vunpack.c.h.b16 %v1499
    %v1573 = vunpack.c.l.b16 %v1500
    %v1574 = vunpack.c.h.b16 %v1500
    %v1575 = vunpack.c.l.b16 %v1501
    %v1576 = vunpack.c.h.b16 %v1501
    %v1577 = vunpack.c.l.b16 %v1502
    %v1578 = vunpack.c.h.b16 %v1502
    %v1579 = vunpack.c.l.b16 %v1503
    %v1580 = vunpack.c.h.b16 %v1503
    %v1581 = vunpack.c.l.b16 %v1504
    %v1582 = vunpack.c.h.b16 %v1504
    %v1583 = vunpack.c.l.b16 %v1505
    %v1584 = vunpack.c.h.b16 %v1505
    %v1585 = vunpack.c.l.b16 %v1506
    %v1586 = vunpack.c.h.b16 %v1506
    %v1587 = vunpack.c.l.b16 %v1507
    %v1588 = vunpack.c.h.b16 %v1507
    %v1589 = vunpack.c.l.b16 %v1508
    %v1590 = vunpack.c.h.b16 %v1508
    %v1591 = vunpack.c.l.b16 %v1509
    %v1592 = vunpack.c.h.b16 %v1509
    %v1593 = vunpack.c.l.b16 %v1510
    %v1594 = vunpack.c.h.b16 %v1510
    %v1595 = vunpack.c.l.b16 %v1511
    %v1596 = vunpack.c.h.b16 %v1511
    %v1597 = vunpack.c.l.b16 %v1512
    %v1598 = vunpack.c.h.b16 %v1512
    %v1599 = vunpack.c.l.b16 %v1513
    %v1600 = vunpack.c.h.b16 %v1513
    %v1601 = vunpack.c.l.b16 %v1514
    %v1602 = vunpack.c.h.b16 %v1514
    %v1603 = vunpack.c.l.b16 %v1515
    %v1604 = vunpack.c.h.b16 %v1515
    %v1605 = vunpack.c.l.b16 %v1516
    %v1606 = vunpack.c.h.b16 %v1516
    %v1607 = vunpack.c.l.b16 %v1517
    %v1608 = vunpack.c.h.b16 %v1517
    %v1609 = vunpack.c.l.b16 %v1518
    %v1610 = vunpack.c.h.b16 %v1518
    %v1611 = vunpack.c.l.b16 %v1519
    %v1612 = vunpack.c.h.b16 %v1519
    %v1613 = vunpack.c.l.b16 %v1520
    %v1614 = vunpack.c.h.b16 %v1520
    %v1615 = vunpack.c.l.b16 %v1521
    %v1616 = vunpack.c.h.b16 %v1521
    %v1617 = vunpack.c.l.b16 %v1522
    %v1618 = vunpack.c.h.b16 %v1522
    %v1619 = vpack.c.b16 %v1559, %v1555
    %v1620 = vpack.c.b16 %v1560, %v1556
    %v1621 = vpack.c.b16 %v1561, %v1557
    %v1622 = vpack.c.b16 %v1562, %v1558
    %v1623 = vpack.c.b16 %v1567, %v1563
    %v1624 = vpack.c.b16 %v1568, %v1564
    %v1625 = vpack.c.b16 %v1569, %v1565
    %v1626 = vpack.c.b16 %v1570, %v1566
    %v1627 = vpack.c.b16 %v1575, %v1571
    %v1628 = vpack.c.b16 %v1576, %v1572
    %v1629 = vpack.c.b16 %v1577, %v1573
    %v1630 = vpack.c.b16 %v1578, %v1574
    %v1631 = vpack.c.b16 %v1583, %v1579
    %v1632 = vpack.c.b16 %v1584, %v1580
    %v1633 = vpack.c.b16 %v1585, %v1581
    %v1634 = vpack.c.b16 %v1586, %v1582
    %v1635 = vpack.c.b16 %v1591, %v1587
    %v1636 = vpack.c.b16 %v1592, %v1588
    %v1637 = vpack.c.b16 %v1593, %v1589
    %v1638 = vpack.c.b16 %v1594, %v1590
    %v1639 = vpack.c.b16 %v1599, %v1595
    %v1640 = vpack.c.b16 %v1600, %v1596
    %v1641 = vpack.c.b16 %v1601, %v1597
    %v1642 = vpack.c.b16 %v1602, %v1598
    %v1643 = vpack.c.b16 %v1607, %v1603
    %v1644 = vpack.c.b16 %v1608, %v1604
    %v1645 = vpack.c.b16 %v1609, %v1605
    %v1646 = vpack.c.b16 %v1610, %v1606
    %v1647 = vpack.c.b16 %v1615, %v1611
    %v1648 = vpack.c.b16 %v1616, %v1612
    %v1649 = vpack.c.b16 %v1617, %v1613
    %v1650 = vpack.c.b16 %v1618, %v1614
    %1683 = vmatprep.subr.bf16.mxu0 %v1648
    %1684 = vmatpush1.bf16.msra.mxu0 %v1647
    %1685 = vmatprep.subr.bf16.mxu0 %v1644
    %1686 = vmatpush1.bf16.msra.mxu0 %v1643
    %1687 = vmatprep.subr.bf16.mxu0 %v1640
    %1688 = vmatpush1.bf16.msra.mxu0 %v1639
    %1689 = vmatprep.subr.bf16.mxu0 %v1636
    %1690 = vmatpush1.bf16.msra.mxu0 %v1635
    %1691 = vmatprep.subr.bf16.mxu0 %v1632
    %1692 = vmatpush1.bf16.msra.mxu0 %v1631
    %1693 = vmatprep.subr.bf16.mxu0 %v1628
    %1694 = vmatpush1.bf16.msra.mxu0 %v1627
    %1695 = vmatprep.subr.bf16.mxu0 %v1624
    %1696 = vmatpush1.bf16.msra.mxu0 %v1623
    %1697 = vmatprep.subr.bf16.mxu0 %v1620
    %1698 = vmatpush1.bf16.msra.mxu0 %v1619
    %1699 = vmatprep.subr.bf16.mxu0 0
    %1700 = vmatpush2.bf16.msra.mxu0 0
    %1701 = vmatprep.subr.bf16.mxu0 0
    %1702 = vmatpush2.bf16.msra.mxu0 0
    %1703 = vmatprep.subr.bf16.mxu0 0
    %1704 = vmatpush2.bf16.msra.mxu0 0
    %1705 = vmatprep.subr.bf16.mxu0 0
    %1706 = vmatpush2.bf16.msra.mxu0 0
    %1707 = vmatprep.subr.bf16.mxu0 0
    %1708 = vmatpush2.bf16.msra.mxu0 0
    %1709 = vmatprep.subr.bf16.mxu0 0
    %1710 = vmatpush2.bf16.msra.mxu0 0
    %1711 = vmatprep.subr.bf16.mxu0 0
    %1712 = vmatpush2.bf16.msra.mxu0 0
    %1713 = vmatprep.subr.bf16.mxu0 0
    %1714 = vmatpush2.bf16.msra.mxu0 0
    %1715 = vmatprep.mubr.bf16.mxu0 0
    %1716 = vmatmul.mubr.bf16.gmra.mxu0 %v1485
    %v1717 = vpop.f32.mrf.mxu0
    %v1718 = vadd.f32 0.0, %v1717
    %v1719 = vpop.f32.mrf.mxu0
    %v1720 = vadd.f32 0.0, %v1719
    %v1721 = vpop.f32.mrf.mxu0
    %v1722 = vpop.f32.mrf.mxu0
    %1723 = vdwg.mxu0
    %1724 = vmatprep.subr.bf16.mxu0 %v1650
    %1725 = vmatpush1.bf16.msra.mxu0 %v1649
    %1726 = vmatprep.subr.bf16.mxu0 %v1646
    %1727 = vmatpush1.bf16.msra.mxu0 %v1645
    %1728 = vmatprep.subr.bf16.mxu0 %v1642
    %1729 = vmatpush1.bf16.msra.mxu0 %v1641
    %1730 = vmatprep.subr.bf16.mxu0 %v1638
    %1731 = vmatpush1.bf16.msra.mxu0 %v1637
    %1732 = vmatprep.subr.bf16.mxu0 %v1634
    %1733 = vmatpush1.bf16.msra.mxu0 %v1633
    %1734 = vmatprep.subr.bf16.mxu0 %v1630
    %1735 = vmatpush1.bf16.msra.mxu0 %v1629
    %1736 = vmatprep.subr.bf16.mxu0 %v1626
    %1737 = vmatpush1.bf16.msra.mxu0 %v1625
    %1738 = vmatprep.subr.bf16.mxu0 %v1622
    %1739 = vmatpush1.bf16.msra.mxu0 %v1621
    %1740 = vmatprep.subr.bf16.mxu0 0
    %1741 = vmatpush2.bf16.msra.mxu0 0
    %1742 = vmatprep.subr.bf16.mxu0 0
    %1743 = vmatpush2.bf16.msra.mxu0 0
    %1744 = vmatprep.subr.bf16.mxu0 0
    %1745 = vmatpush2.bf16.msra.mxu0 0
    %1746 = vmatprep.subr.bf16.mxu0 0
    %1747 = vmatpush2.bf16.msra.mxu0 0
    %1748 = vmatprep.subr.bf16.mxu0 0
    %1749 = vmatpush2.bf16.msra.mxu0 0
    %1750 = vmatprep.subr.bf16.mxu0 0
    %1751 = vmatpush2.bf16.msra.mxu0 0
    %1752 = vmatprep.subr.bf16.mxu0 0
    %1753 = vmatpush2.bf16.msra.mxu0 0
    %1754 = vmatprep.subr.bf16.mxu0 0
    %1755 = vmatpush2.bf16.msra.mxu0 0
    %1756 = vmatprep.mubr.bf16.mxu0 0
    %1757 = vmatmul.mubr.bf16.gmra.mxu0 %v1485
    %v1758 = vpop.f32.mrf.mxu0
    %v1759 = vadd.f32 0.0, %v1758
    %v1760 = vpop.f32.mrf.mxu0
    %v1761 = vadd.f32 0.0, %v1760
    %v1762 = vpop.f32.mrf.mxu0
    %v1763 = vpop.f32.mrf.mxu0
    %1764 = vdwg.mxu0
    %v1765 = vadd.f32 %v1487, %v1718
    %v1766 = vadd.f32 %v1488, %v1720
    %v1767 = vadd.f32 %v1489, %v1759
    %v1768 = vadd.f32 %v1490, %v1761
    %v1769 = vxor.u32 %v1765, 2147483648
    %v1770 = vxor.u32 %v1766, 2147483648
    %v1771 = vxor.u32 %v1767, 2147483648
    %v1772 = vmul.f32 %v1769, 1.442695
    %v1773 = vpow.pop %v1772
    %v1774 = vmul.f32 %v1770, 1.442695
    %v1775 = vpow.pop %v1774
    %v1776 = vmul.f32 %v1771, 1.442695
    %v1777 = vpow.pop %v1776
    %v1778 = vadd.f32 %v1773, 1.0
    %v1779 = vadd.f32 %v1775, 1.0
    %v1780 = vadd.f32 %v1777, 1.0
    %v1781 = vrcp.pop %v1778
    %v1782 = vmul.f32 1.0, %v1781
    %v1783 = vrcp.pop %v1779
    %v1784 = vmul.f32 1.0, %v1783
    %v1785 = vrcp.pop %v1780
    %v1786 = vmul.f32 1.0, %v1785
    %v1787 = vtanh.pop %v1768
    %v1788 = vmul.f32 %v1784, %v1482
    %v1789 = vmul.f32 %v1782, %v1787
    %v1790 = vadd.f32 %v1788, %v1789
    %v1791 = vtanh.pop %v1790
    %v1792 = vmul.f32 %v1786, %v1791
    %v1793 = vpack.c.bf16 %v1792, %v1792
    %1794 = vst [vmem:[#allocation3 + $0xc] sm:$0xf] %v1793
    %v1795 = vld [vmem:[#allocation2 + $0x80] sm:$0xff]
    %v1796 = vld [vmem:[#allocation2 + $0x88] sm:$0xff]
    %v1797 = vld [vmem:[#allocation2 + $0x90] sm:$0xff]
    %v1798 = vld [vmem:[#allocation2 + $0x98] sm:$0xff]
    %v1799 = vld [vmem:[#allocation12] sm:$0xff]
    %v1800 = vld [vmem:[#allocation12 + $0x8] sm:$0xff]
    %v1801 = vld [vmem:[#allocation12 + $0x10] sm:$0xff]
    %v1802 = vld [vmem:[#allocation12 + $0x18] sm:$0xff]
    %v1803 = vld [vmem:[#allocation12 + $0x20] sm:$0xff]
    %v1804 = vld [vmem:[#allocation12 + $0x28] sm:$0xff]
    %v1805 = vld [vmem:[#allocation12 + $0x30] sm:$0xff]
    %v1806 = vld [vmem:[#allocation12 + $0x38] sm:$0xff]
    %v1807 = vld [vmem:[#allocation12 + $0x40] sm:$0xff]
    %v1808 = vld [vmem:[#allocation12 + $0x48] sm:$0xff]
    %v1809 = vld [vmem:[#allocation12 + $0x50] sm:$0xff]
    %v1810 = vld [vmem:[#allocation12 + $0x58] sm:$0xff]
    %v1811 = vld [vmem:[#allocation12 + $0x60] sm:$0xff]
    %v1812 = vld [vmem:[#allocation12 + $0x68] sm:$0xff]
    %v1813 = vld [vmem:[#allocation12 + $0x70] sm:$0xff]
    %v1814 = vld [vmem:[#allocation12 + $0x78] sm:$0xff]
    %v1815 = vld [vmem:[#allocation12 + $0x80] sm:$0xff]
    %v1816 = vld [vmem:[#allocation12 + $0x88] sm:$0xff]
    %v1817 = vld [vmem:[#allocation12 + $0x90] sm:$0xff]
    %v1818 = vld [vmem:[#allocation12 + $0x98] sm:$0xff]
    %v1819 = vld [vmem:[#allocation12 + $0xa0] sm:$0xff]
    %v1820 = vld [vmem:[#allocation12 + $0xa8] sm:$0xff]
    %v1821 = vld [vmem:[#allocation12 + $0xb0] sm:$0xff]
    %v1822 = vld [vmem:[#allocation12 + $0xb8] sm:$0xff]
    %v1823 = vld [vmem:[#allocation12 + $0xc0] sm:$0xff]
    %v1824 = vld [vmem:[#allocation12 + $0xc8] sm:$0xff]
    %v1825 = vld [vmem:[#allocation12 + $0xd0] sm:$0xff]
    %v1826 = vld [vmem:[#allocation12 + $0xd8] sm:$0xff]
    %v1827 = vld [vmem:[#allocation12 + $0xe0] sm:$0xff]
    %v1828 = vld [vmem:[#allocation12 + $0xe8] sm:$0xff]
    %v1829 = vld [vmem:[#allocation12 + $0xf0] sm:$0xff]
    %v1830 = vld [vmem:[#allocation12 + $0xf8] sm:$0xff]
    %v1863 = vunpack.c.l.b16 %v1799
    %v1864 = vunpack.c.h.b16 %v1799
    %v1865 = vunpack.c.l.b16 %v1800
    %v1866 = vunpack.c.h.b16 %v1800
    %v1867 = vunpack.c.l.b16 %v1801
    %v1868 = vunpack.c.h.b16 %v1801
    %v1869 = vunpack.c.l.b16 %v1802
    %v1870 = vunpack.c.h.b16 %v1802
    %v1871 = vunpack.c.l.b16 %v1803
    %v1872 = vunpack.c.h.b16 %v1803
    %v1873 = vunpack.c.l.b16 %v1804
    %v1874 = vunpack.c.h.b16 %v1804
    %v1875 = vunpack.c.l.b16 %v1805
    %v1876 = vunpack.c.h.b16 %v1805
    %v1877 = vunpack.c.l.b16 %v1806
    %v1878 = vunpack.c.h.b16 %v1806
    %v1879 = vunpack.c.l.b16 %v1807
    %v1880 = vunpack.c.h.b16 %v1807
    %v1881 = vunpack.c.l.b16 %v1808
    %v1882 = vunpack.c.h.b16 %v1808
    %v1883 = vunpack.c.l.b16 %v1809
    %v1884 = vunpack.c.h.b16 %v1809
    %v1885 = vunpack.c.l.b16 %v1810
    %v1886 = vunpack.c.h.b16 %v1810
    %v1887 = vunpack.c.l.b16 %v1811
    %v1888 = vunpack.c.h.b16 %v1811
    %v1889 = vunpack.c.l.b16 %v1812
    %v1890 = vunpack.c.h.b16 %v1812
    %v1891 = vunpack.c.l.b16 %v1813
    %v1892 = vunpack.c.h.b16 %v1813
    %v1893 = vunpack.c.l.b16 %v1814
    %v1894 = vunpack.c.h.b16 %v1814
    %v1895 = vunpack.c.l.b16 %v1815
    %v1896 = vunpack.c.h.b16 %v1815
    %v1897 = vunpack.c.l.b16 %v1816
    %v1898 = vunpack.c.h.b16 %v1816
    %v1899 = vunpack.c.l.b16 %v1817
    %v1900 = vunpack.c.h.b16 %v1817
    %v1901 = vunpack.c.l.b16 %v1818
    %v1902 = vunpack.c.h.b16 %v1818
    %v1903 = vunpack.c.l.b16 %v1819
    %v1904 = vunpack.c.h.b16 %v1819
    %v1905 = vunpack.c.l.b16 %v1820
    %v1906 = vunpack.c.h.b16 %v1820
    %v1907 = vunpack.c.l.b16 %v1821
    %v1908 = vunpack.c.h.b16 %v1821
    %v1909 = vunpack.c.l.b16 %v1822
    %v1910 = vunpack.c.h.b16 %v1822
    %v1911 = vunpack.c.l.b16 %v1823
    %v1912 = vunpack.c.h.b16 %v1823
    %v1913 = vunpack.c.l.b16 %v1824
    %v1914 = vunpack.c.h.b16 %v1824
    %v1915 = vunpack.c.l.b16 %v1825
    %v1916 = vunpack.c.h.b16 %v1825
    %v1917 = vunpack.c.l.b16 %v1826
    %v1918 = vunpack.c.h.b16 %v1826
    %v1919 = vunpack.c.l.b16 %v1827
    %v1920 = vunpack.c.h.b16 %v1827
    %v1921 = vunpack.c.l.b16 %v1828
    %v1922 = vunpack.c.h.b16 %v1828
    %v1923 = vunpack.c.l.b16 %v1829
    %v1924 = vunpack.c.h.b16 %v1829
    %v1925 = vunpack.c.l.b16 %v1830
    %v1926 = vunpack.c.h.b16 %v1830
    %v1927 = vpack.c.b16 %v1867, %v1863
    %v1928 = vpack.c.b16 %v1868, %v1864
    %v1929 = vpack.c.b16 %v1869, %v1865
    %v1930 = vpack.c.b16 %v1870, %v1866
    %v1931 = vpack.c.b16 %v1875, %v1871
    %v1932 = vpack.c.b16 %v1876, %v1872
    %v1933 = vpack.c.b16 %v1877, %v1873
    %v1934 = vpack.c.b16 %v1878, %v1874
    %v1935 = vpack.c.b16 %v1883, %v1879
    %v1936 = vpack.c.b16 %v1884, %v1880
    %v1937 = vpack.c.b16 %v1885, %v1881
    %v1938 = vpack.c.b16 %v1886, %v1882
    %v1939 = vpack.c.b16 %v1891, %v1887
    %v1940 = vpack.c.b16 %v1892, %v1888
    %v1941 = vpack.c.b16 %v1893, %v1889
    %v1942 = vpack.c.b16 %v1894, %v1890
    %v1943 = vpack.c.b16 %v1899, %v1895
    %v1944 = vpack.c.b16 %v1900, %v1896
    %v1945 = vpack.c.b16 %v1901, %v1897
    %v1946 = vpack.c.b16 %v1902, %v1898
    %v1947 = vpack.c.b16 %v1907, %v1903
    %v1948 = vpack.c.b16 %v1908, %v1904
    %v1949 = vpack.c.b16 %v1909, %v1905
    %v1950 = vpack.c.b16 %v1910, %v1906
    %v1951 = vpack.c.b16 %v1915, %v1911
    %v1952 = vpack.c.b16 %v1916, %v1912
    %v1953 = vpack.c.b16 %v1917, %v1913
    %v1954 = vpack.c.b16 %v1918, %v1914
    %v1955 = vpack.c.b16 %v1923, %v1919
    %v1956 = vpack.c.b16 %v1924, %v1920
    %v1957 = vpack.c.b16 %v1925, %v1921
    %v1958 = vpack.c.b16 %v1926, %v1922
    %1991 = vmatprep.subr.bf16.mxu0 %v1956
    %1992 = vmatpush1.bf16.msra.mxu0 %v1955
    %1993 = vmatprep.subr.bf16.mxu0 %v1952
    %1994 = vmatpush1.bf16.msra.mxu0 %v1951
    %1995 = vmatprep.subr.bf16.mxu0 %v1948
    %1996 = vmatpush1.bf16.msra.mxu0 %v1947
    %1997 = vmatprep.subr.bf16.mxu0 %v1944
    %1998 = vmatpush1.bf16.msra.mxu0 %v1943
    %1999 = vmatprep.subr.bf16.mxu0 %v1940
    %2000 = vmatpush1.bf16.msra.mxu0 %v1939
    %2001 = vmatprep.subr.bf16.mxu0 %v1936
    %2002 = vmatpush1.bf16.msra.mxu0 %v1935
    %2003 = vmatprep.subr.bf16.mxu0 %v1932
    %2004 = vmatpush1.bf16.msra.mxu0 %v1931
    %2005 = vmatprep.subr.bf16.mxu0 %v1928
    %2006 = vmatpush1.bf16.msra.mxu0 %v1927
    %2007 = vmatprep.subr.bf16.mxu0 0
    %2008 = vmatpush2.bf16.msra.mxu0 0
    %2009 = vmatprep.subr.bf16.mxu0 0
    %2010 = vmatpush2.bf16.msra.mxu0 0
    %2011 = vmatprep.subr.bf16.mxu0 0
    %2012 = vmatpush2.bf16.msra.mxu0 0
    %2013 = vmatprep.subr.bf16.mxu0 0
    %2014 = vmatpush2.bf16.msra.mxu0 0
    %2015 = vmatprep.subr.bf16.mxu0 0
    %2016 = vmatpush2.bf16.msra.mxu0 0
    %2017 = vmatprep.subr.bf16.mxu0 0
    %2018 = vmatpush2.bf16.msra.mxu0 0
    %2019 = vmatprep.subr.bf16.mxu0 0
    %2020 = vmatpush2.bf16.msra.mxu0 0
    %2021 = vmatprep.subr.bf16.mxu0 0
    %2022 = vmatpush2.bf16.msra.mxu0 0
    %2023 = vmatprep.mubr.bf16.mxu0 0
    %2024 = vmatmul.mubr.bf16.gmra.mxu0 %v1793
    %v2025 = vpop.f32.mrf.mxu0
    %v2026 = vadd.f32 0.0, %v2025
    %v2027 = vpop.f32.mrf.mxu0
    %v2028 = vadd.f32 0.0, %v2027
    %v2029 = vpop.f32.mrf.mxu0
    %v2030 = vpop.f32.mrf.mxu0
    %2031 = vdwg.mxu0
    %2032 = vmatprep.subr.bf16.mxu0 %v1958
    %2033 = vmatpush1.bf16.msra.mxu0 %v1957
    %2034 = vmatprep.subr.bf16.mxu0 %v1954
    %2035 = vmatpush1.bf16.msra.mxu0 %v1953
    %2036 = vmatprep.subr.bf16.mxu0 %v1950
    %2037 = vmatpush1.bf16.msra.mxu0 %v1949
    %2038 = vmatprep.subr.bf16.mxu0 %v1946
    %2039 = vmatpush1.bf16.msra.mxu0 %v1945
    %2040 = vmatprep.subr.bf16.mxu0 %v1942
    %2041 = vmatpush1.bf16.msra.mxu0 %v1941
    %2042 = vmatprep.subr.bf16.mxu0 %v1938
    %2043 = vmatpush1.bf16.msra.mxu0 %v1937
    %2044 = vmatprep.subr.bf16.mxu0 %v1934
    %2045 = vmatpush1.bf16.msra.mxu0 %v1933
    %2046 = vmatprep.subr.bf16.mxu0 %v1930
    %2047 = vmatpush1.bf16.msra.mxu0 %v1929
    %2048 = vmatprep.subr.bf16.mxu0 0
    %2049 = vmatpush2.bf16.msra.mxu0 0
    %2050 = vmatprep.subr.bf16.mxu0 0
    %2051 = vmatpush2.bf16.msra.mxu0 0
    %2052 = vmatprep.subr.bf16.mxu0 0
    %2053 = vmatpush2.bf16.msra.mxu0 0
    %2054 = vmatprep.subr.bf16.mxu0 0
    %2055 = vmatpush2.bf16.msra.mxu0 0
    %2056 = vmatprep.subr.bf16.mxu0 0
    %2057 = vmatpush2.bf16.msra.mxu0 0
    %2058 = vmatprep.subr.bf16.mxu0 0
    %2059 = vmatpush2.bf16.msra.mxu0 0
    %2060 = vmatprep.subr.bf16.mxu0 0
    %2061 = vmatpush2.bf16.msra.mxu0 0
    %2062 = vmatprep.subr.bf16.mxu0 0
    %2063 = vmatpush2.bf16.msra.mxu0 0
    %2064 = vmatprep.mubr.bf16.mxu0 0
    %2065 = vmatmul.mubr.bf16.gmra.mxu0 %v1793
    %v2066 = vpop.f32.mrf.mxu0
    %v2067 = vadd.f32 0.0, %v2066
    %v2068 = vpop.f32.mrf.mxu0
    %v2069 = vadd.f32 0.0, %v2068
    %v2070 = vpop.f32.mrf.mxu0
    %v2071 = vpop.f32.mrf.mxu0
    %2072 = vdwg.mxu0
    %v2073 = vadd.f32 %v1795, %v2026
    %v2074 = vadd.f32 %v1796, %v2028
    %v2075 = vadd.f32 %v1797, %v2067
    %v2076 = vadd.f32 %v1798, %v2069
    %v2077 = vxor.u32 %v2073, 2147483648
    %v2078 = vxor.u32 %v2074, 2147483648
    %v2079 = vxor.u32 %v2075, 2147483648
    %v2080 = vmul.f32 %v2077, 1.442695
    %v2081 = vpow.pop %v2080
    %v2082 = vmul.f32 %v2078, 1.442695
    %v2083 = vpow.pop %v2082
    %v2084 = vmul.f32 %v2079, 1.442695
    %v2085 = vpow.pop %v2084
    %v2086 = vadd.f32 %v2081, 1.0
    %v2087 = vadd.f32 %v2083, 1.0
    %v2088 = vadd.f32 %v2085, 1.0
    %v2089 = vrcp.pop %v2086
    %v2090 = vmul.f32 1.0, %v2089
    %v2091 = vrcp.pop %v2087
    %v2092 = vmul.f32 1.0, %v2091
    %v2093 = vrcp.pop %v2088
    %v2094 = vmul.f32 1.0, %v2093
    %v2095 = vtanh.pop %v2076
    %v2096 = vmul.f32 %v2092, %v1790
    %v2097 = vmul.f32 %v2090, %v2095
    %v2098 = vadd.f32 %v2096, %v2097
    %v2099 = vtanh.pop %v2098
    %v2100 = vmul.f32 %v2094, %v2099
    %v2101 = vpack.c.bf16 %v2100, %v2100
    %2102 = vst [vmem:[#allocation3 + $0x10] sm:$0xf] %v2101
    %v2103 = vld [vmem:[#allocation2 + $0xa0] sm:$0xff]
    %v2104 = vld [vmem:[#allocation2 + $0xa8] sm:$0xff]
    %v2105 = vld [vmem:[#allocation2 + $0xb0] sm:$0xff]
    %v2106 = vld [vmem:[#allocation2 + $0xb8] sm:$0xff]
    %v2107 = vld [vmem:[#allocation12] sm:$0xff]
    %v2108 = vld [vmem:[#allocation12 + $0x8] sm:$0xff]
    %v2109 = vld [vmem:[#allocation12 + $0x10] sm:$0xff]
    %v2110 = vld [vmem:[#allocation12 + $0x18] sm:$0xff]
    %v2111 = vld [vmem:[#allocation12 + $0x20] sm:$0xff]
    %v2112 = vld [vmem:[#allocation12 + $0x28] sm:$0xff]
    %v2113 = vld [vmem:[#allocation12 + $0x30] sm:$0xff]
    %v2114 = vld [vmem:[#allocation12 + $0x38] sm:$0xff]
    %v2115 = vld [vmem:[#allocation12 + $0x40] sm:$0xff]
    %v2116 = vld [vmem:[#allocation12 + $0x48] sm:$0xff]
    %v2117 = vld [vmem:[#allocation12 + $0x50] sm:$0xff]
    %v2118 = vld [vmem:[#allocation12 + $0x58] sm:$0xff]
    %v2119 = vld [vmem:[#allocation12 + $0x60] sm:$0xff]
    %v2120 = vld [vmem:[#allocation12 + $0x68] sm:$0xff]
    %v2121 = vld [vmem:[#allocation12 + $0x70] sm:$0xff]
    %v2122 = vld [vmem:[#allocation12 + $0x78] sm:$0xff]
    %v2123 = vld [vmem:[#allocation12 + $0x80] sm:$0xff]
    %v2124 = vld [vmem:[#allocation12 + $0x88] sm:$0xff]
    %v2125 = vld [vmem:[#allocation12 + $0x90] sm:$0xff]
    %v2126 = vld [vmem:[#allocation12 + $0x98] sm:$0xff]
    %v2127 = vld [vmem:[#allocation12 + $0xa0] sm:$0xff]
    %v2128 = vld [vmem:[#allocation12 + $0xa8] sm:$0xff]
    %v2129 = vld [vmem:[#allocation12 + $0xb0] sm:$0xff]
    %v2130 = vld [vmem:[#allocation12 + $0xb8] sm:$0xff]
    %v2131 = vld [vmem:[#allocation12 + $0xc0] sm:$0xff]
    %v2132 = vld [vmem:[#allocation12 + $0xc8] sm:$0xff]
    %v2133 = vld [vmem:[#allocation12 + $0xd0] sm:$0xff]
    %v2134 = vld [vmem:[#allocation12 + $0xd8] sm:$0xff]
    %v2135 = vld [vmem:[#allocation12 + $0xe0] sm:$0xff]
    %v2136 = vld [vmem:[#allocation12 + $0xe8] sm:$0xff]
    %v2137 = vld [vmem:[#allocation12 + $0xf0] sm:$0xff]
    %v2138 = vld [vmem:[#allocation12 + $0xf8] sm:$0xff]
    %v2171 = vunpack.c.l.b16 %v2107
    %v2172 = vunpack.c.h.b16 %v2107
    %v2173 = vunpack.c.l.b16 %v2108
    %v2174 = vunpack.c.h.b16 %v2108
    %v2175 = vunpack.c.l.b16 %v2109
    %v2176 = vunpack.c.h.b16 %v2109
    %v2177 = vunpack.c.l.b16 %v2110
    %v2178 = vunpack.c.h.b16 %v2110
    %v2179 = vunpack.c.l.b16 %v2111
    %v2180 = vunpack.c.h.b16 %v2111
    %v2181 = vunpack.c.l.b16 %v2112
    %v2182 = vunpack.c.h.b16 %v2112
    %v2183 = vunpack.c.l.b16 %v2113
    %v2184 = vunpack.c.h.b16 %v2113
    %v2185 = vunpack.c.l.b16 %v2114
    %v2186 = vunpack.c.h.b16 %v2114
    %v2187 = vunpack.c.l.b16 %v2115
    %v2188 = vunpack.c.h.b16 %v2115
    %v2189 = vunpack.c.l.b16 %v2116
    %v2190 = vunpack.c.h.b16 %v2116
    %v2191 = vunpack.c.l.b16 %v2117
    %v2192 = vunpack.c.h.b16 %v2117
    %v2193 = vunpack.c.l.b16 %v2118
    %v2194 = vunpack.c.h.b16 %v2118
    %v2195 = vunpack.c.l.b16 %v2119
    %v2196 = vunpack.c.h.b16 %v2119
    %v2197 = vunpack.c.l.b16 %v2120
    %v2198 = vunpack.c.h.b16 %v2120
    %v2199 = vunpack.c.l.b16 %v2121
    %v2200 = vunpack.c.h.b16 %v2121
    %v2201 = vunpack.c.l.b16 %v2122
    %v2202 = vunpack.c.h.b16 %v2122
    %v2203 = vunpack.c.l.b16 %v2123
    %v2204 = vunpack.c.h.b16 %v2123
    %v2205 = vunpack.c.l.b16 %v2124
    %v2206 = vunpack.c.h.b16 %v2124
    %v2207 = vunpack.c.l.b16 %v2125
    %v2208 = vunpack.c.h.b16 %v2125
    %v2209 = vunpack.c.l.b16 %v2126
    %v2210 = vunpack.c.h.b16 %v2126
    %v2211 = vunpack.c.l.b16 %v2127
    %v2212 = vunpack.c.h.b16 %v2127
    %v2213 = vunpack.c.l.b16 %v2128
    %v2214 = vunpack.c.h.b16 %v2128
    %v2215 = vunpack.c.l.b16 %v2129
    %v2216 = vunpack.c.h.b16 %v2129
    %v2217 = vunpack.c.l.b16 %v2130
    %v2218 = vunpack.c.h.b16 %v2130
    %v2219 = vunpack.c.l.b16 %v2131
    %v2220 = vunpack.c.h.b16 %v2131
    %v2221 = vunpack.c.l.b16 %v2132
    %v2222 = vunpack.c.h.b16 %v2132
    %v2223 = vunpack.c.l.b16 %v2133
    %v2224 = vunpack.c.h.b16 %v2133
    %v2225 = vunpack.c.l.b16 %v2134
    %v2226 = vunpack.c.h.b16 %v2134
    %v2227 = vunpack.c.l.b16 %v2135
    %v2228 = vunpack.c.h.b16 %v2135
    %v2229 = vunpack.c.l.b16 %v2136
    %v2230 = vunpack.c.h.b16 %v2136
    %v2231 = vunpack.c.l.b16 %v2137
    %v2232 = vunpack.c.h.b16 %v2137
    %v2233 = vunpack.c.l.b16 %v2138
    %v2234 = vunpack.c.h.b16 %v2138
    %v2235 = vpack.c.b16 %v2175, %v2171
    %v2236 = vpack.c.b16 %v2176, %v2172
    %v2237 = vpack.c.b16 %v2177, %v2173
    %v2238 = vpack.c.b16 %v2178, %v2174
    %v2239 = vpack.c.b16 %v2183, %v2179
    %v2240 = vpack.c.b16 %v2184, %v2180
    %v2241 = vpack.c.b16 %v2185, %v2181
    %v2242 = vpack.c.b16 %v2186, %v2182
    %v2243 = vpack.c.b16 %v2191, %v2187
    %v2244 = vpack.c.b16 %v2192, %v2188
    %v2245 = vpack.c.b16 %v2193, %v2189
    %v2246 = vpack.c.b16 %v2194, %v2190
    %v2247 = vpack.c.b16 %v2199, %v2195
    %v2248 = vpack.c.b16 %v2200, %v2196
    %v2249 = vpack.c.b16 %v2201, %v2197
    %v2250 = vpack.c.b16 %v2202, %v2198
    %v2251 = vpack.c.b16 %v2207, %v2203
    %v2252 = vpack.c.b16 %v2208, %v2204
    %v2253 = vpack.c.b16 %v2209, %v2205
    %v2254 = vpack.c.b16 %v2210, %v2206
    %v2255 = vpack.c.b16 %v2215, %v2211
    %v2256 = vpack.c.b16 %v2216, %v2212
    %v2257 = vpack.c.b16 %v2217, %v2213
    %v2258 = vpack.c.b16 %v2218, %v2214
    %v2259 = vpack.c.b16 %v2223, %v2219
    %v2260 = vpack.c.b16 %v2224, %v2220
    %v2261 = vpack.c.b16 %v2225, %v2221
    %v2262 = vpack.c.b16 %v2226, %v2222
    %v2263 = vpack.c.b16 %v2231, %v2227
    %v2264 = vpack.c.b16 %v2232, %v2228
    %v2265 = vpack.c.b16 %v2233, %v2229
    %v2266 = vpack.c.b16 %v2234, %v2230
    %2299 = vmatprep.subr.bf16.mxu0 %v2264
    %2300 = vmatpush1.bf16.msra.mxu0 %v2263
    %2301 = vmatprep.subr.bf16.mxu0 %v2260
    %2302 = vmatpush1.bf16.msra.mxu0 %v2259
    %2303 = vmatprep.subr.bf16.mxu0 %v2256
    %2304 = vmatpush1.bf16.msra.mxu0 %v2255
    %2305 = vmatprep.subr.bf16.mxu0 %v2252
    %2306 = vmatpush1.bf16.msra.mxu0 %v2251
    %2307 = vmatprep.subr.bf16.mxu0 %v2248
    %2308 = vmatpush1.bf16.msra.mxu0 %v2247
    %2309 = vmatprep.subr.bf16.mxu0 %v2244
    %2310 = vmatpush1.bf16.msra.mxu0 %v2243
    %2311 = vmatprep.subr.bf16.mxu0 %v2240
    %2312 = vmatpush1.bf16.msra.mxu0 %v2239
    %2313 = vmatprep.subr.bf16.mxu0 %v2236
    %2314 = vmatpush1.bf16.msra.mxu0 %v2235
    %2315 = vmatprep.subr.bf16.mxu0 0
    %2316 = vmatpush2.bf16.msra.mxu0 0
    %2317 = vmatprep.subr.bf16.mxu0 0
    %2318 = vmatpush2.bf16.msra.mxu0 0
    %2319 = vmatprep.subr.bf16.mxu0 0
    %2320 = vmatpush2.bf16.msra.mxu0 0
    %2321 = vmatprep.subr.bf16.mxu0 0
    %2322 = vmatpush2.bf16.msra.mxu0 0
    %2323 = vmatprep.subr.bf16.mxu0 0
    %2324 = vmatpush2.bf16.msra.mxu0 0
    %2325 = vmatprep.subr.bf16.mxu0 0
    %2326 = vmatpush2.bf16.msra.mxu0 0
    %2327 = vmatprep.subr.bf16.mxu0 0
    %2328 = vmatpush2.bf16.msra.mxu0 0
    %2329 = vmatprep.subr.bf16.mxu0 0
    %2330 = vmatpush2.bf16.msra.mxu0 0
    %2331 = vmatprep.mubr.bf16.mxu0 0
    %2332 = vmatmul.mubr.bf16.gmra.mxu0 %v2101
    %v2333 = vpop.f32.mrf.mxu0
    %v2334 = vadd.f32 0.0, %v2333
    %v2335 = vpop.f32.mrf.mxu0
    %v2336 = vadd.f32 0.0, %v2335
    %v2337 = vpop.f32.mrf.mxu0
    %v2338 = vpop.f32.mrf.mxu0
    %2339 = vdwg.mxu0
    %2340 = vmatprep.subr.bf16.mxu0 %v2266
    %2341 = vmatpush1.bf16.msra.mxu0 %v2265
    %2342 = vmatprep.subr.bf16.mxu0 %v2262
    %2343 = vmatpush1.bf16.msra.mxu0 %v2261
    %2344 = vmatprep.subr.bf16.mxu0 %v2258
    %2345 = vmatpush1.bf16.msra.mxu0 %v2257
    %2346 = vmatprep.subr.bf16.mxu0 %v2254
    %2347 = vmatpush1.bf16.msra.mxu0 %v2253
    %2348 = vmatprep.subr.bf16.mxu0 %v2250
    %2349 = vmatpush1.bf16.msra.mxu0 %v2249
    %2350 = vmatprep.subr.bf16.mxu0 %v2246
    %2351 = vmatpush1.bf16.msra.mxu0 %v2245
    %2352 = vmatprep.subr.bf16.mxu0 %v2242
    %2353 = vmatpush1.bf16.msra.mxu0 %v2241
    %2354 = vmatprep.subr.bf16.mxu0 %v2238
    %2355 = vmatpush1.bf16.msra.mxu0 %v2237
    %2356 = vmatprep.subr.bf16.mxu0 0
    %2357 = vmatpush2.bf16.msra.mxu0 0
    %2358 = vmatprep.subr.bf16.mxu0 0
    %2359 = vmatpush2.bf16.msra.mxu0 0
    %2360 = vmatprep.subr.bf16.mxu0 0
    %2361 = vmatpush2.bf16.msra.mxu0 0
    %2362 = vmatprep.subr.bf16.mxu0 0
    %2363 = vmatpush2.bf16.msra.mxu0 0
    %2364 = vmatprep.subr.bf16.mxu0 0
    %2365 = vmatpush2.bf16.msra.mxu0 0
    %2366 = vmatprep.subr.bf16.mxu0 0
    %2367 = vmatpush2.bf16.msra.mxu0 0
    %2368 = vmatprep.subr.bf16.mxu0 0
    %2369 = vmatpush2.bf16.msra.mxu0 0
    %2370 = vmatprep.subr.bf16.mxu0 0
    %2371 = vmatpush2.bf16.msra.mxu0 0
    %2372 = vmatprep.mubr.bf16.mxu0 0
    %2373 = vmatmul.mubr.bf16.gmra.mxu0 %v2101
    %v2374 = vpop.f32.mrf.mxu0
    %v2375 = vadd.f32 0.0, %v2374
    %v2376 = vpop.f32.mrf.mxu0
    %v2377 = vadd.f32 0.0, %v2376
    %v2378 = vpop.f32.mrf.mxu0
    %v2379 = vpop.f32.mrf.mxu0
    %2380 = vdwg.mxu0
    %v2381 = vadd.f32 %v2103, %v2334
    %v2382 = vadd.f32 %v2104, %v2336
    %v2383 = vadd.f32 %v2105, %v2375
    %v2384 = vadd.f32 %v2106, %v2377
    %v2385 = vxor.u32 %v2381, 2147483648
    %v2386 = vxor.u32 %v2382, 2147483648
    %v2387 = vxor.u32 %v2383, 2147483648
    %v2388 = vmul.f32 %v2385, 1.442695
    %v2389 = vpow.pop %v2388
    %v2390 = vmul.f32 %v2386, 1.442695
    %v2391 = vpow.pop %v2390
    %v2392 = vmul.f32 %v2387, 1.442695
    %v2393 = vpow.pop %v2392
    %v2394 = vadd.f32 %v2389, 1.0
    %v2395 = vadd.f32 %v2391, 1.0
    %v2396 = vadd.f32 %v2393, 1.0
    %v2397 = vrcp.pop %v2394
    %v2398 = vmul.f32 1.0, %v2397
    %v2399 = vrcp.pop %v2395
    %v2400 = vmul.f32 1.0, %v2399
    %v2401 = vrcp.pop %v2396
    %v2402 = vmul.f32 1.0, %v2401
    %v2403 = vtanh.pop %v2384
    %v2404 = vmul.f32 %v2400, %v2098
    %v2405 = vmul.f32 %v2398, %v2403
    %v2406 = vadd.f32 %v2404, %v2405
    %v2407 = vtanh.pop %v2406
    %v2408 = vmul.f32 %v2402, %v2407
    %v2409 = vpack.c.bf16 %v2408, %v2408
    %2410 = vst [vmem:[#allocation3 + $0x14] sm:$0xf] %v2409
    %v2411 = vld [vmem:[#allocation2 + $0xc0] sm:$0xff]
    %v2412 = vld [vmem:[#allocation2 + $0xc8] sm:$0xff]
    %v2413 = vld [vmem:[#allocation2 + $0xd0] sm:$0xff]
    %v2414 = vld [vmem:[#allocation2 + $0xd8] sm:$0xff]
    %v2415 = vld [vmem:[#allocation12] sm:$0xff]
    %v2416 = vld [vmem:[#allocation12 + $0x8] sm:$0xff]
    %v2417 = vld [vmem:[#allocation12 + $0x10] sm:$0xff]
    %v2418 = vld [vmem:[#allocation12 + $0x18] sm:$0xff]
    %v2419 = vld [vmem:[#allocation12 + $0x20] sm:$0xff]
    %v2420 = vld [vmem:[#allocation12 + $0x28] sm:$0xff]
    %v2421 = vld [vmem:[#allocation12 + $0x30] sm:$0xff]
    %v2422 = vld [vmem:[#allocation12 + $0x38] sm:$0xff]
    %v2423 = vld [vmem:[#allocation12 + $0x40] sm:$0xff]
    %v2424 = vld [vmem:[#allocation12 + $0x48] sm:$0xff]
    %v2425 = vld [vmem:[#allocation12 + $0x50] sm:$0xff]
    %v2426 = vld [vmem:[#allocation12 + $0x58] sm:$0xff]
    %v2427 = vld [vmem:[#allocation12 + $0x60] sm:$0xff]
    %v2428 = vld [vmem:[#allocation12 + $0x68] sm:$0xff]
    %v2429 = vld [vmem:[#allocation12 + $0x70] sm:$0xff]
    %v2430 = vld [vmem:[#allocation12 + $0x78] sm:$0xff]
    %v2431 = vld [vmem:[#allocation12 + $0x80] sm:$0xff]
    %v2432 = vld [vmem:[#allocation12 + $0x88] sm:$0xff]
    %v2433 = vld [vmem:[#allocation12 + $0x90] sm:$0xff]
    %v2434 = vld [vmem:[#allocation12 + $0x98] sm:$0xff]
    %v2435 = vld [vmem:[#allocation12 + $0xa0] sm:$0xff]
    %v2436 = vld [vmem:[#allocation12 + $0xa8] sm:$0xff]
    %v2437 = vld [vmem:[#allocation12 + $0xb0] sm:$0xff]
    %v2438 = vld [vmem:[#allocation12 + $0xb8] sm:$0xff]
    %v2439 = vld [vmem:[#allocation12 + $0xc0] sm:$0xff]
    %v2440 = vld [vmem:[#allocation12 + $0xc8] sm:$0xff]
    %v2441 = vld [vmem:[#allocation12 + $0xd0] sm:$0xff]
    %v2442 = vld [vmem:[#allocation12 + $0xd8] sm:$0xff]
    %v2443 = vld [vmem:[#allocation12 + $0xe0] sm:$0xff]
    %v2444 = vld [vmem:[#allocation12 + $0xe8] sm:$0xff]
    %v2445 = vld [vmem:[#allocation12 + $0xf0] sm:$0xff]
    %v2446 = vld [vmem:[#allocation12 + $0xf8] sm:$0xff]
    %v2479 = vunpack.c.l.b16 %v2415
    %v2480 = vunpack.c.h.b16 %v2415
    %v2481 = vunpack.c.l.b16 %v2416
    %v2482 = vunpack.c.h.b16 %v2416
    %v2483 = vunpack.c.l.b16 %v2417
    %v2484 = vunpack.c.h.b16 %v2417
    %v2485 = vunpack.c.l.b16 %v2418
    %v2486 = vunpack.c.h.b16 %v2418
    %v2487 = vunpack.c.l.b16 %v2419
    %v2488 = vunpack.c.h.b16 %v2419
    %v2489 = vunpack.c.l.b16 %v2420
    %v2490 = vunpack.c.h.b16 %v2420
    %v2491 = vunpack.c.l.b16 %v2421
    %v2492 = vunpack.c.h.b16 %v2421
    %v2493 = vunpack.c.l.b16 %v2422
    %v2494 = vunpack.c.h.b16 %v2422
    %v2495 = vunpack.c.l.b16 %v2423
    %v2496 = vunpack.c.h.b16 %v2423
    %v2497 = vunpack.c.l.b16 %v2424
    %v2498 = vunpack.c.h.b16 %v2424
    %v2499 = vunpack.c.l.b16 %v2425
    %v2500 = vunpack.c.h.b16 %v2425
    %v2501 = vunpack.c.l.b16 %v2426
    %v2502 = vunpack.c.h.b16 %v2426
    %v2503 = vunpack.c.l.b16 %v2427
    %v2504 = vunpack.c.h.b16 %v2427
    %v2505 = vunpack.c.l.b16 %v2428
    %v2506 = vunpack.c.h.b16 %v2428
    %v2507 = vunpack.c.l.b16 %v2429
    %v2508 = vunpack.c.h.b16 %v2429
    %v2509 = vunpack.c.l.b16 %v2430
    %v2510 = vunpack.c.h.b16 %v2430
    %v2511 = vunpack.c.l.b16 %v2431
    %v2512 = vunpack.c.h.b16 %v2431
    %v2513 = vunpack.c.l.b16 %v2432
    %v2514 = vunpack.c.h.b16 %v2432
    %v2515 = vunpack.c.l.b16 %v2433
    %v2516 = vunpack.c.h.b16 %v2433
    %v2517 = vunpack.c.l.b16 %v2434
    %v2518 = vunpack.c.h.b16 %v2434
    %v2519 = vunpack.c.l.b16 %v2435
    %v2520 = vunpack.c.h.b16 %v2435
    %v2521 = vunpack.c.l.b16 %v2436
    %v2522 = vunpack.c.h.b16 %v2436
    %v2523 = vunpack.c.l.b16 %v2437
    %v2524 = vunpack.c.h.b16 %v2437
    %v2525 = vunpack.c.l.b16 %v2438
    %v2526 = vunpack.c.h.b16 %v2438
    %v2527 = vunpack.c.l.b16 %v2439
    %v2528 = vunpack.c.h.b16 %v2439
    %v2529 = vunpack.c.l.b16 %v2440
    %v2530 = vunpack.c.h.b16 %v2440
    %v2531 = vunpack.c.l.b16 %v2441
    %v2532 = vunpack.c.h.b16 %v2441
    %v2533 = vunpack.c.l.b16 %v2442
    %v2534 = vunpack.c.h.b16 %v2442
    %v2535 = vunpack.c.l.b16 %v2443
    %v2536 = vunpack.c.h.b16 %v2443
    %v2537 = vunpack.c.l.b16 %v2444
    %v2538 = vunpack.c.h.b16 %v2444
    %v2539 = vunpack.c.l.b16 %v2445
    %v2540 = vunpack.c.h.b16 %v2445
    %v2541 = vunpack.c.l.b16 %v2446
    %v2542 = vunpack.c.h.b16 %v2446
    %v2543 = vpack.c.b16 %v2483, %v2479
    %v2544 = vpack.c.b16 %v2484, %v2480
    %v2545 = vpack.c.b16 %v2485, %v2481
    %v2546 = vpack.c.b16 %v2486, %v2482
    %v2547 = vpack.c.b16 %v2491, %v2487
    %v2548 = vpack.c.b16 %v2492, %v2488
    %v2549 = vpack.c.b16 %v2493, %v2489
    %v2550 = vpack.c.b16 %v2494, %v2490
    %v2551 = vpack.c.b16 %v2499, %v2495
    %v2552 = vpack.c.b16 %v2500, %v2496
    %v2553 = vpack.c.b16 %v2501, %v2497
    %v2554 = vpack.c.b16 %v2502, %v2498
    %v2555 = vpack.c.b16 %v2507, %v2503
    %v2556 = vpack.c.b16 %v2508, %v2504
    %v2557 = vpack.c.b16 %v2509, %v2505
    %v2558 = vpack.c.b16 %v2510, %v2506
    %v2559 = vpack.c.b16 %v2515, %v2511
    %v2560 = vpack.c.b16 %v2516, %v2512
    %v2561 = vpack.c.b16 %v2517, %v2513
    %v2562 = vpack.c.b16 %v2518, %v2514
    %v2563 = vpack.c.b16 %v2523, %v2519
    %v2564 = vpack.c.b16 %v2524, %v2520
    %v2565 = vpack.c.b16 %v2525, %v2521
    %v2566 = vpack.c.b16 %v2526, %v2522
    %v2567 = vpack.c.b16 %v2531, %v2527
    %v2568 = vpack.c.b16 %v2532, %v2528
    %v2569 = vpack.c.b16 %v2533, %v2529
    %v2570 = vpack.c.b16 %v2534, %v2530
    %v2571 = vpack.c.b16 %v2539, %v2535
    %v2572 = vpack.c.b16 %v2540, %v2536
    %v2573 = vpack.c.b16 %v2541, %v2537
    %v2574 = vpack.c.b16 %v2542, %v2538
    %2607 = vmatprep.subr.bf16.mxu0 %v2572
    %2608 = vmatpush1.bf16.msra.mxu0 %v2571
    %2609 = vmatprep.subr.bf16.mxu0 %v2568
    %2610 = vmatpush1.bf16.msra.mxu0 %v2567
    %2611 = vmatprep.subr.bf16.mxu0 %v2564
    %2612 = vmatpush1.bf16.msra.mxu0 %v2563
    %2613 = vmatprep.subr.bf16.mxu0 %v2560
    %2614 = vmatpush1.bf16.msra.mxu0 %v2559
    %2615 = vmatprep.subr.bf16.mxu0 %v2556
    %2616 = vmatpush1.bf16.msra.mxu0 %v2555
    %2617 = vmatprep.subr.bf16.mxu0 %v2552
    %2618 = vmatpush1.bf16.msra.mxu0 %v2551
    %2619 = vmatprep.subr.bf16.mxu0 %v2548
    %2620 = vmatpush1.bf16.msra.mxu0 %v2547
    %2621 = vmatprep.subr.bf16.mxu0 %v2544
    %2622 = vmatpush1.bf16.msra.mxu0 %v2543
    %2623 = vmatprep.subr.bf16.mxu0 0
    %2624 = vmatpush2.bf16.msra.mxu0 0
    %2625 = vmatprep.subr.bf16.mxu0 0
    %2626 = vmatpush2.bf16.msra.mxu0 0
    %2627 = vmatprep.subr.bf16.mxu0 0
    %2628 = vmatpush2.bf16.msra.mxu0 0
    %2629 = vmatprep.subr.bf16.mxu0 0
    %2630 = vmatpush2.bf16.msra.mxu0 0
    %2631 = vmatprep.subr.bf16.mxu0 0
    %2632 = vmatpush2.bf16.msra.mxu0 0
    %2633 = vmatprep.subr.bf16.mxu0 0
    %2634 = vmatpush2.bf16.msra.mxu0 0
    %2635 = vmatprep.subr.bf16.mxu0 0
    %2636 = vmatpush2.bf16.msra.mxu0 0
    %2637 = vmatprep.subr.bf16.mxu0 0
    %2638 = vmatpush2.bf16.msra.mxu0 0
    %2639 = vmatprep.mubr.bf16.mxu0 0
    %2640 = vmatmul.mubr.bf16.gmra.mxu0 %v2409
    %v2641 = vpop.f32.mrf.mxu0
    %v2642 = vadd.f32 0.0, %v2641
    %v2643 = vpop.f32.mrf.mxu0
    %v2644 = vadd.f32 0.0, %v2643
    %v2645 = vpop.f32.mrf.mxu0
    %v2646 = vpop.f32.mrf.mxu0
    %2647 = vdwg.mxu0
    %2648 = vmatprep.subr.bf16.mxu0 %v2574
    %2649 = vmatpush1.bf16.msra.mxu0 %v2573
    %2650 = vmatprep.subr.bf16.mxu0 %v2570
    %2651 = vmatpush1.bf16.msra.mxu0 %v2569
    %2652 = vmatprep.subr.bf16.mxu0 %v2566
    %2653 = vmatpush1.bf16.msra.mxu0 %v2565
    %2654 = vmatprep.subr.bf16.mxu0 %v2562
    %2655 = vmatpush1.bf16.msra.mxu0 %v2561
    %2656 = vmatprep.subr.bf16.mxu0 %v2558
    %2657 = vmatpush1.bf16.msra.mxu0 %v2557
    %2658 = vmatprep.subr.bf16.mxu0 %v2554
    %2659 = vmatpush1.bf16.msra.mxu0 %v2553
    %2660 = vmatprep.subr.bf16.mxu0 %v2550
    %2661 = vmatpush1.bf16.msra.mxu0 %v2549
    %2662 = vmatprep.subr.bf16.mxu0 %v2546
    %2663 = vmatpush1.bf16.msra.mxu0 %v2545
    %2664 = vmatprep.subr.bf16.mxu0 0
    %2665 = vmatpush2.bf16.msra.mxu0 0
    %2666 = vmatprep.subr.bf16.mxu0 0
    %2667 = vmatpush2.bf16.msra.mxu0 0
    %2668 = vmatprep.subr.bf16.mxu0 0
    %2669 = vmatpush2.bf16.msra.mxu0 0
    %2670 = vmatprep.subr.bf16.mxu0 0
    %2671 = vmatpush2.bf16.msra.mxu0 0
    %2672 = vmatprep.subr.bf16.mxu0 0
    %2673 = vmatpush2.bf16.msra.mxu0 0
    %2674 = vmatprep.subr.bf16.mxu0 0
    %2675 = vmatpush2.bf16.msra.mxu0 0
    %2676 = vmatprep.subr.bf16.mxu0 0
    %2677 = vmatpush2.bf16.msra.mxu0 0
    %2678 = vmatprep.subr.bf16.mxu0 0
    %2679 = vmatpush2.bf16.msra.mxu0 0
    %2680 = vmatprep.mubr.bf16.mxu0 0
    %2681 = vmatmul.mubr.bf16.gmra.mxu0 %v2409
    %v2682 = vpop.f32.mrf.mxu0
    %v2683 = vadd.f32 0.0, %v2682
    %v2684 = vpop.f32.mrf.mxu0
    %v2685 = vadd.f32 0.0, %v2684
    %v2686 = vpop.f32.mrf.mxu0
    %v2687 = vpop.f32.mrf.mxu0
    %2688 = vdwg.mxu0
    %v2689 = vadd.f32 %v2411, %v2642
    %v2690 = vadd.f32 %v2412, %v2644
    %v2691 = vadd.f32 %v2413, %v2683
    %v2692 = vadd.f32 %v2414, %v2685
    %v2693 = vxor.u32 %v2689, 2147483648
    %v2694 = vxor.u32 %v2690, 2147483648
    %v2695 = vxor.u32 %v2691, 2147483648
    %v2696 = vmul.f32 %v2693, 1.442695
    %v2697 = vpow.pop %v2696
    %v2698 = vmul.f32 %v2694, 1.442695
    %v2699 = vpow.pop %v2698
    %v2700 = vmul.f32 %v2695, 1.442695
    %v2701 = vpow.pop %v2700
    %v2702 = vadd.f32 %v2697, 1.0
    %v2703 = vadd.f32 %v2699, 1.0
    %v2704 = vadd.f32 %v2701, 1.0
    %v2705 = vrcp.pop %v2702
    %v2706 = vmul.f32 1.0, %v2705
    %v2707 = vrcp.pop %v2703
    %v2708 = vmul.f32 1.0, %v2707
    %v2709 = vrcp.pop %v2704
    %v2710 = vmul.f32 1.0, %v2709
    %v2711 = vtanh.pop %v2692
    %v2712 = vmul.f32 %v2708, %v2406
    %v2713 = vmul.f32 %v2706, %v2711
    %v2714 = vadd.f32 %v2712, %v2713
    %v2715 = vtanh.pop %v2714
    %v2716 = vmul.f32 %v2710, %v2715
    %v2717 = vpack.c.bf16 %v2716, %v2716
    %2718 = vst [vmem:[#allocation3 + $0x18] sm:$0xf] %v2717
    %v2719 = vld [vmem:[#allocation2 + $0xe0] sm:$0xff]
    %v2720 = vld [vmem:[#allocation2 + $0xe8] sm:$0xff]
    %v2721 = vld [vmem:[#allocation2 + $0xf0] sm:$0xff]
    %v2722 = vld [vmem:[#allocation2 + $0xf8] sm:$0xff]
    %v2723 = vld [vmem:[#allocation12] sm:$0xff]
    %v2724 = vld [vmem:[#allocation12 + $0x8] sm:$0xff]
    %v2725 = vld [vmem:[#allocation12 + $0x10] sm:$0xff]
    %v2726 = vld [vmem:[#allocation12 + $0x18] sm:$0xff]
    %v2727 = vld [vmem:[#allocation12 + $0x20] sm:$0xff]
    %v2728 = vld [vmem:[#allocation12 + $0x28] sm:$0xff]
    %v2729 = vld [vmem:[#allocation12 + $0x30] sm:$0xff]
    %v2730 = vld [vmem:[#allocation12 + $0x38] sm:$0xff]
    %v2731 = vld [vmem:[#allocation12 + $0x40] sm:$0xff]
    %v2732 = vld [vmem:[#allocation12 + $0x48] sm:$0xff]
    %v2733 = vld [vmem:[#allocation12 + $0x50] sm:$0xff]
    %v2734 = vld [vmem:[#allocation12 + $0x58] sm:$0xff]
    %v2735 = vld [vmem:[#allocation12 + $0x60] sm:$0xff]
    %v2736 = vld [vmem:[#allocation12 + $0x68] sm:$0xff]
    %v2737 = vld [vmem:[#allocation12 + $0x70] sm:$0xff]
    %v2738 = vld [vmem:[#allocation12 + $0x78] sm:$0xff]
    %v2739 = vld [vmem:[#allocation12 + $0x80] sm:$0xff]
    %v2740 = vld [vmem:[#allocation12 + $0x88] sm:$0xff]
    %v2741 = vld [vmem:[#allocation12 + $0x90] sm:$0xff]
    %v2742 = vld [vmem:[#allocation12 + $0x98] sm:$0xff]
    %v2743 = vld [vmem:[#allocation12 + $0xa0] sm:$0xff]
    %v2744 = vld [vmem:[#allocation12 + $0xa8] sm:$0xff]
    %v2745 = vld [vmem:[#allocation12 + $0xb0] sm:$0xff]
    %v2746 = vld [vmem:[#allocation12 + $0xb8] sm:$0xff]
    %v2747 = vld [vmem:[#allocation12 + $0xc0] sm:$0xff]
    %v2748 = vld [vmem:[#allocation12 + $0xc8] sm:$0xff]
    %v2749 = vld [vmem:[#allocation12 + $0xd0] sm:$0xff]
    %v2750 = vld [vmem:[#allocation12 + $0xd8] sm:$0xff]
    %v2751 = vld [vmem:[#allocation12 + $0xe0] sm:$0xff]
    %v2752 = vld [vmem:[#allocation12 + $0xe8] sm:$0xff]
    %v2753 = vld [vmem:[#allocation12 + $0xf0] sm:$0xff]
    %v2754 = vld [vmem:[#allocation12 + $0xf8] sm:$0xff]
    %v2787 = vunpack.c.l.b16 %v2723
    %v2788 = vunpack.c.h.b16 %v2723
    %v2789 = vunpack.c.l.b16 %v2724
    %v2790 = vunpack.c.h.b16 %v2724
    %v2791 = vunpack.c.l.b16 %v2725
    %v2792 = vunpack.c.h.b16 %v2725
    %v2793 = vunpack.c.l.b16 %v2726
    %v2794 = vunpack.c.h.b16 %v2726
    %v2795 = vunpack.c.l.b16 %v2727
    %v2796 = vunpack.c.h.b16 %v2727
    %v2797 = vunpack.c.l.b16 %v2728
    %v2798 = vunpack.c.h.b16 %v2728
    %v2799 = vunpack.c.l.b16 %v2729
    %v2800 = vunpack.c.h.b16 %v2729
    %v2801 = vunpack.c.l.b16 %v2730
    %v2802 = vunpack.c.h.b16 %v2730
    %v2803 = vunpack.c.l.b16 %v2731
    %v2804 = vunpack.c.h.b16 %v2731
    %v2805 = vunpack.c.l.b16 %v2732
    %v2806 = vunpack.c.h.b16 %v2732
    %v2807 = vunpack.c.l.b16 %v2733
    %v2808 = vunpack.c.h.b16 %v2733
    %v2809 = vunpack.c.l.b16 %v2734
    %v2810 = vunpack.c.h.b16 %v2734
    %v2811 = vunpack.c.l.b16 %v2735
    %v2812 = vunpack.c.h.b16 %v2735
    %v2813 = vunpack.c.l.b16 %v2736
    %v2814 = vunpack.c.h.b16 %v2736
    %v2815 = vunpack.c.l.b16 %v2737
    %v2816 = vunpack.c.h.b16 %v2737
    %v2817 = vunpack.c.l.b16 %v2738
    %v2818 = vunpack.c.h.b16 %v2738
    %v2819 = vunpack.c.l.b16 %v2739
    %v2820 = vunpack.c.h.b16 %v2739
    %v2821 = vunpack.c.l.b16 %v2740
    %v2822 = vunpack.c.h.b16 %v2740
    %v2823 = vunpack.c.l.b16 %v2741
    %v2824 = vunpack.c.h.b16 %v2741
    %v2825 = vunpack.c.l.b16 %v2742
    %v2826 = vunpack.c.h.b16 %v2742
    %v2827 = vunpack.c.l.b16 %v2743
    %v2828 = vunpack.c.h.b16 %v2743
    %v2829 = vunpack.c.l.b16 %v2744
    %v2830 = vunpack.c.h.b16 %v2744
    %v2831 = vunpack.c.l.b16 %v2745
    %v2832 = vunpack.c.h.b16 %v2745
    %v2833 = vunpack.c.l.b16 %v2746
    %v2834 = vunpack.c.h.b16 %v2746
    %v2835 = vunpack.c.l.b16 %v2747
    %v2836 = vunpack.c.h.b16 %v2747
    %v2837 = vunpack.c.l.b16 %v2748
    %v2838 = vunpack.c.h.b16 %v2748
    %v2839 = vunpack.c.l.b16 %v2749
    %v2840 = vunpack.c.h.b16 %v2749
    %v2841 = vunpack.c.l.b16 %v2750
    %v2842 = vunpack.c.h.b16 %v2750
    %v2843 = vunpack.c.l.b16 %v2751
    %v2844 = vunpack.c.h.b16 %v2751
    %v2845 = vunpack.c.l.b16 %v2752
    %v2846 = vunpack.c.h.b16 %v2752
    %v2847 = vunpack.c.l.b16 %v2753
    %v2848 = vunpack.c.h.b16 %v2753
    %v2849 = vunpack.c.l.b16 %v2754
    %v2850 = vunpack.c.h.b16 %v2754
    %v2851 = vpack.c.b16 %v2791, %v2787
    %v2852 = vpack.c.b16 %v2792, %v2788
    %v2853 = vpack.c.b16 %v2793, %v2789
    %v2854 = vpack.c.b16 %v2794, %v2790
    %v2855 = vpack.c.b16 %v2799, %v2795
    %v2856 = vpack.c.b16 %v2800, %v2796
    %v2857 = vpack.c.b16 %v2801, %v2797
    %v2858 = vpack.c.b16 %v2802, %v2798
    %v2859 = vpack.c.b16 %v2807, %v2803
    %v2860 = vpack.c.b16 %v2808, %v2804
    %v2861 = vpack.c.b16 %v2809, %v2805
    %v2862 = vpack.c.b16 %v2810, %v2806
    %v2863 = vpack.c.b16 %v2815, %v2811
    %v2864 = vpack.c.b16 %v2816, %v2812
    %v2865 = vpack.c.b16 %v2817, %v2813
    %v2866 = vpack.c.b16 %v2818, %v2814
    %v2867 = vpack.c.b16 %v2823, %v2819
    %v2868 = vpack.c.b16 %v2824, %v2820
    %v2869 = vpack.c.b16 %v2825, %v2821
    %v2870 = vpack.c.b16 %v2826, %v2822
    %v2871 = vpack.c.b16 %v2831, %v2827
    %v2872 = vpack.c.b16 %v2832, %v2828
    %v2873 = vpack.c.b16 %v2833, %v2829
    %v2874 = vpack.c.b16 %v2834, %v2830
    %v2875 = vpack.c.b16 %v2839, %v2835
    %v2876 = vpack.c.b16 %v2840, %v2836
    %v2877 = vpack.c.b16 %v2841, %v2837
    %v2878 = vpack.c.b16 %v2842, %v2838
    %v2879 = vpack.c.b16 %v2847, %v2843
    %v2880 = vpack.c.b16 %v2848, %v2844
    %v2881 = vpack.c.b16 %v2849, %v2845
    %v2882 = vpack.c.b16 %v2850, %v2846
    %2915 = vmatprep.subr.bf16.mxu0 %v2880
    %2916 = vmatpush1.bf16.msra.mxu0 %v2879
    %2917 = vmatprep.subr.bf16.mxu0 %v2876
    %2918 = vmatpush1.bf16.msra.mxu0 %v2875
    %2919 = vmatprep.subr.bf16.mxu0 %v2872
    %2920 = vmatpush1.bf16.msra.mxu0 %v2871
    %2921 = vmatprep.subr.bf16.mxu0 %v2868
    %2922 = vmatpush1.bf16.msra.mxu0 %v2867
    %2923 = vmatprep.subr.bf16.mxu0 %v2864
    %2924 = vmatpush1.bf16.msra.mxu0 %v2863
    %2925 = vmatprep.subr.bf16.mxu0 %v2860
    %2926 = vmatpush1.bf16.msra.mxu0 %v2859
    %2927 = vmatprep.subr.bf16.mxu0 %v2856
    %2928 = vmatpush1.bf16.msra.mxu0 %v2855
    %2929 = vmatprep.subr.bf16.mxu0 %v2852
    %2930 = vmatpush1.bf16.msra.mxu0 %v2851
    %2931 = vmatprep.subr.bf16.mxu0 0
    %2932 = vmatpush2.bf16.msra.mxu0 0
    %2933 = vmatprep.subr.bf16.mxu0 0
    %2934 = vmatpush2.bf16.msra.mxu0 0
    %2935 = vmatprep.subr.bf16.mxu0 0
    %2936 = vmatpush2.bf16.msra.mxu0 0
    %2937 = vmatprep.subr.bf16.mxu0 0
    %2938 = vmatpush2.bf16.msra.mxu0 0
    %2939 = vmatprep.subr.bf16.mxu0 0
    %2940 = vmatpush2.bf16.msra.mxu0 0
    %2941 = vmatprep.subr.bf16.mxu0 0
    %2942 = vmatpush2.bf16.msra.mxu0 0
    %2943 = vmatprep.subr.bf16.mxu0 0
    %2944 = vmatpush2.bf16.msra.mxu0 0
    %2945 = vmatprep.subr.bf16.mxu0 0
    %2946 = vmatpush2.bf16.msra.mxu0 0
    %2947 = vmatprep.mubr.bf16.mxu0 0
    %2948 = vmatmul.mubr.bf16.gmra.mxu0 %v2717
    %v2949 = vpop.f32.mrf.mxu0
    %v2950 = vadd.f32 0.0, %v2949
    %v2951 = vpop.f32.mrf.mxu0
    %v2952 = vadd.f32 0.0, %v2951
    %v2953 = vpop.f32.mrf.mxu0
    %v2954 = vpop.f32.mrf.mxu0
    %2955 = vdwg.mxu0
    %2956 = vmatprep.subr.bf16.mxu0 %v2882
    %2957 = vmatpush1.bf16.msra.mxu0 %v2881
    %2958 = vmatprep.subr.bf16.mxu0 %v2878
    %2959 = vmatpush1.bf16.msra.mxu0 %v2877
    %2960 = vmatprep.subr.bf16.mxu0 %v2874
    %2961 = vmatpush1.bf16.msra.mxu0 %v2873
    %2962 = vmatprep.subr.bf16.mxu0 %v2870
    %2963 = vmatpush1.bf16.msra.mxu0 %v2869
    %2964 = vmatprep.subr.bf16.mxu0 %v2866
    %2965 = vmatpush1.bf16.msra.mxu0 %v2865
    %2966 = vmatprep.subr.bf16.mxu0 %v2862
    %2967 = vmatpush1.bf16.msra.mxu0 %v2861
    %2968 = vmatprep.subr.bf16.mxu0 %v2858
    %2969 = vmatpush1.bf16.msra.mxu0 %v2857
    %2970 = vmatprep.subr.bf16.mxu0 %v2854
    %2971 = vmatpush1.bf16.msra.mxu0 %v2853
    %2972 = vmatprep.subr.bf16.mxu0 0
    %2973 = vmatpush2.bf16.msra.mxu0 0
    %2974 = vmatprep.subr.bf16.mxu0 0
    %2975 = vmatpush2.bf16.msra.mxu0 0
    %2976 = vmatprep.subr.bf16.mxu0 0
    %2977 = vmatpush2.bf16.msra.mxu0 0
    %2978 = vmatprep.subr.bf16.mxu0 0
    %2979 = vmatpush2.bf16.msra.mxu0 0
    %2980 = vmatprep.subr.bf16.mxu0 0
    %2981 = vmatpush2.bf16.msra.mxu0 0
    %2982 = vmatprep.subr.bf16.mxu0 0
    %2983 = vmatpush2.bf16.msra.mxu0 0
    %2984 = vmatprep.subr.bf16.mxu0 0
    %2985 = vmatpush2.bf16.msra.mxu0 0
    %2986 = vmatprep.subr.bf16.mxu0 0
    %2987 = vmatpush2.bf16.msra.mxu0 0
    %2988 = vmatprep.mubr.bf16.mxu0 0
    %2989 = vmatmul.mubr.bf16.gmra.mxu0 %v2717
    %v2990 = vpop.f32.mrf.mxu0
    %v2991 = vadd.f32 0.0, %v2990
    %v2992 = vpop.f32.mrf.mxu0
    %v2993 = vadd.f32 0.0, %v2992
    %v2994 = vpop.f32.mrf.mxu0
    %v2995 = vpop.f32.mrf.mxu0
    %2996 = vdwg.mxu0
    %v2997 = vadd.f32 %v2719, %v2950
    %v2998 = vadd.f32 %v2720, %v2952
    %v2999 = vadd.f32 %v2721, %v2991
    %v3000 = vadd.f32 %v2722, %v2993
    %v3001 = vxor.u32 %v2997, 2147483648
    %v3002 = vxor.u32 %v2998, 2147483648
    %v3003 = vxor.u32 %v2999, 2147483648
    %v3004 = vmul.f32 %v3001, 1.442695
    %v3005 = vpow.pop %v3004
    %v3006 = vmul.f32 %v3002, 1.442695
    %v3007 = vpow.pop %v3006
    %v3008 = vmul.f32 %v3003, 1.442695
    %v3009 = vpow.pop %v3008
    %v3010 = vadd.f32 %v3005, 1.0
    %v3011 = vadd.f32 %v3007, 1.0
    %v3012 = vadd.f32 %v3009, 1.0
    %v3013 = vrcp.pop %v3010
    %v3014 = vmul.f32 1.0, %v3013
    %v3015 = vrcp.pop %v3011
    %v3016 = vmul.f32 1.0, %v3015
    %v3017 = vrcp.pop %v3012
    %v3018 = vmul.f32 1.0, %v3017
    %v3019 = vtanh.pop %v3000
    %v3020 = vmul.f32 %v3016, %v2714
    %v3021 = vmul.f32 %v3014, %v3019
    %v3022 = vadd.f32 %v3020, %v3021
    %v3023 = vtanh.pop %v3022
    %v3024 = vmul.f32 %v3018, %v3023
    %v3025 = vpack.c.bf16 %v3024, %v3024
    %3026 = vst [vmem:[#allocation3 + $0x1c] sm:$0xf] %v3025
    %v3027 = vld [vmem:[#allocation3] sm:$0xf]
    %v3028 = vld [vmem:[#allocation3 + $0x4] sm:$0xf]
    %v3029 = vld [vmem:[#allocation3 + $0x8] sm:$0xf]
    %v3030 = vld [vmem:[#allocation3 + $0xc] sm:$0xf]
    %v3031 = vld [vmem:[#allocation3 + $0x10] sm:$0xf]
    %v3032 = vld [vmem:[#allocation3 + $0x14] sm:$0xf]
    %v3033 = vld [vmem:[#allocation3 + $0x18] sm:$0xf]
    %v3034 = vld [vmem:[#allocation3 + $0x1c] sm:$0xf]
    %v3035 = vld [vmem:[#allocation13] sm:$0xff]
    %v3036 = vld [vmem:[#allocation13 + $0x8] sm:$0xff]
    %v3037 = vld [vmem:[#allocation13 + $0x10] sm:$0xff]
    %v3038 = vld [vmem:[#allocation13 + $0x18] sm:$0xff]
    %v3039 = vld [vmem:[#allocation13 + $0x20] sm:$0xff]
    %v3040 = vld [vmem:[#allocation13 + $0x28] sm:$0xff]
    %v3041 = vld [vmem:[#allocation13 + $0x30] sm:$0xff]
    %v3042 = vld [vmem:[#allocation13 + $0x38] sm:$0xff]
    %v3043 = vld [vmem:[#allocation13 + $0x40] sm:$0xff]
    %v3044 = vld [vmem:[#allocation13 + $0x48] sm:$0xff]
    %v3045 = vld [vmem:[#allocation13 + $0x50] sm:$0xff]
    %v3046 = vld [vmem:[#allocation13 + $0x58] sm:$0xff]
    %v3047 = vld [vmem:[#allocation13 + $0x60] sm:$0xff]
    %v3048 = vld [vmem:[#allocation13 + $0x68] sm:$0xff]
    %v3049 = vld [vmem:[#allocation13 + $0x70] sm:$0xff]
    %v3050 = vld [vmem:[#allocation13 + $0x78] sm:$0xff]
    %v3051 = vld [vmem:[#allocation13 + $0x80] sm:$0xff]
    %v3052 = vld [vmem:[#allocation13 + $0x88] sm:$0xff]
    %v3053 = vld [vmem:[#allocation13 + $0x90] sm:$0xff]
    %v3054 = vld [vmem:[#allocation13 + $0x98] sm:$0xff]
    %v3055 = vld [vmem:[#allocation13 + $0xa0] sm:$0xff]
    %v3056 = vld [vmem:[#allocation13 + $0xa8] sm:$0xff]
    %v3057 = vld [vmem:[#allocation13 + $0xb0] sm:$0xff]
    %v3058 = vld [vmem:[#allocation13 + $0xb8] sm:$0xff]
    %v3059 = vld [vmem:[#allocation13 + $0xc0] sm:$0xff]
    %v3060 = vld [vmem:[#allocation13 + $0xc8] sm:$0xff]
    %v3061 = vld [vmem:[#allocation13 + $0xd0] sm:$0xff]
    %v3062 = vld [vmem:[#allocation13 + $0xd8] sm:$0xff]
    %v3063 = vld [vmem:[#allocation13 + $0xe0] sm:$0xff]
    %v3064 = vld [vmem:[#allocation13 + $0xe8] sm:$0xff]
    %v3065 = vld [vmem:[#allocation13 + $0xf0] sm:$0xff]
    %v3066 = vld [vmem:[#allocation13 + $0xf8] sm:$0xff]
    %v3067 = vld [vmem:[%s8] sm:$0xf]
    %v3069 = vlaneseq
    %v3070 = vshrl.u32 %v3069, 7
    %v3071 = vsub.s32 0, %v3070
    %v3072 = vrot.slane %v3067, %v3071
    %v3073 = vlaneseq
    %v3074 = vshrl.u32 %v3073, 7
    %v3075 = vsub.s32 1, %v3074
    %v3076 = vrot.slane %v3067, %v3075
    %v3077 = vlaneseq
    %v3078 = vshrl.u32 %v3077, 7
    %v3079 = vsub.s32 2, %v3078
    %v3080 = vrot.slane %v3067, %v3079
    %v3081 = vlaneseq
    %v3082 = vshrl.u32 %v3081, 7
    %v3083 = vsub.s32 3, %v3082
    %v3084 = vrot.slane %v3067, %v3083
    %v3097 = vunpack.c.l.b16 %v3027
    %v3098 = vunpack.c.l.b16 %v3028
    %v3099 = vunpack.c.l.b16 %v3029
    %v3100 = vunpack.c.l.b16 %v3030
    %v3101 = vunpack.c.l.b16 %v3031
    %v3102 = vunpack.c.l.b16 %v3032
    %v3103 = vunpack.c.l.b16 %v3033
    %v3104 = vunpack.c.l.b16 %v3034
    %v3105 = vpack.c.b16 %v3098, %v3097
    %v3106 = vpack.c.b16 %v3100, %v3099
    %v3107 = vpack.c.b16 %v3102, %v3101
    %v3108 = vpack.c.b16 %v3104, %v3103
    %v3145 = vunpack.c.l.b16 %v3035
    %v3146 = vunpack.c.h.b16 %v3035
    %v3147 = vunpack.c.l.b16 %v3036
    %v3148 = vunpack.c.h.b16 %v3036
    %v3149 = vunpack.c.l.b16 %v3037
    %v3150 = vunpack.c.h.b16 %v3037
    %v3151 = vunpack.c.l.b16 %v3038
    %v3152 = vunpack.c.h.b16 %v3038
    %v3153 = vunpack.c.l.b16 %v3039
    %v3154 = vunpack.c.h.b16 %v3039
    %v3155 = vunpack.c.l.b16 %v3040
    %v3156 = vunpack.c.h.b16 %v3040
    %v3157 = vunpack.c.l.b16 %v3041
    %v3158 = vunpack.c.h.b16 %v3041
    %v3159 = vunpack.c.l.b16 %v3042
    %v3160 = vunpack.c.h.b16 %v3042
    %v3161 = vunpack.c.l.b16 %v3043
    %v3162 = vunpack.c.h.b16 %v3043
    %v3163 = vunpack.c.l.b16 %v3044
    %v3164 = vunpack.c.h.b16 %v3044
    %v3165 = vunpack.c.l.b16 %v3045
    %v3166 = vunpack.c.h.b16 %v3045
    %v3167 = vunpack.c.l.b16 %v3046
    %v3168 = vunpack.c.h.b16 %v3046
    %v3169 = vunpack.c.l.b16 %v3047
    %v3170 = vunpack.c.h.b16 %v3047
    %v3171 = vunpack.c.l.b16 %v3048
    %v3172 = vunpack.c.h.b16 %v3048
    %v3173 = vunpack.c.l.b16 %v3049
    %v3174 = vunpack.c.h.b16 %v3049
    %v3175 = vunpack.c.l.b16 %v3050
    %v3176 = vunpack.c.h.b16 %v3050
    %v3177 = vunpack.c.l.b16 %v3051
    %v3178 = vunpack.c.h.b16 %v3051
    %v3179 = vunpack.c.l.b16 %v3052
    %v3180 = vunpack.c.h.b16 %v3052
    %v3181 = vunpack.c.l.b16 %v3053
    %v3182 = vunpack.c.h.b16 %v3053
    %v3183 = vunpack.c.l.b16 %v3054
    %v3184 = vunpack.c.h.b16 %v3054
    %v3185 = vunpack.c.l.b16 %v3055
    %v3186 = vunpack.c.h.b16 %v3055
    %v3187 = vunpack.c.l.b16 %v3056
    %v3188 = vunpack.c.h.b16 %v3056
    %v3189 = vunpack.c.l.b16 %v3057
    %v3190 = vunpack.c.h.b16 %v3057
    %v3191 = vunpack.c.l.b16 %v3058
    %v3192 = vunpack.c.h.b16 %v3058
    %v3193 = vunpack.c.l.b16 %v3059
    %v3194 = vunpack.c.h.b16 %v3059
    %v3195 = vunpack.c.l.b16 %v3060
    %v3196 = vunpack.c.h.b16 %v3060
    %v3197 = vunpack.c.l.b16 %v3061
    %v3198 = vunpack.c.h.b16 %v3061
    %v3199 = vunpack.c.l.b16 %v3062
    %v3200 = vunpack.c.h.b16 %v3062
    %v3201 = vunpack.c.l.b16 %v3063
    %v3202 = vunpack.c.h.b16 %v3063
    %v3203 = vunpack.c.l.b16 %v3064
    %v3204 = vunpack.c.h.b16 %v3064
    %v3205 = vunpack.c.l.b16 %v3065
    %v3206 = vunpack.c.h.b16 %v3065
    %v3207 = vunpack.c.l.b16 %v3066
    %v3208 = vunpack.c.h.b16 %v3066
    %v3209 = vpack.c.b16 %v3149, %v3145
    %v3210 = vpack.c.b16 %v3150, %v3146
    %v3211 = vpack.c.b16 %v3151, %v3147
    %v3212 = vpack.c.b16 %v3152, %v3148
    %v3213 = vpack.c.b16 %v3157, %v3153
    %v3214 = vpack.c.b16 %v3158, %v3154
    %v3215 = vpack.c.b16 %v3159, %v3155
    %v3216 = vpack.c.b16 %v3160, %v3156
    %v3217 = vpack.c.b16 %v3165, %v3161
    %v3218 = vpack.c.b16 %v3166, %v3162
    %v3219 = vpack.c.b16 %v3167, %v3163
    %v3220 = vpack.c.b16 %v3168, %v3164
    %v3221 = vpack.c.b16 %v3173, %v3169
    %v3222 = vpack.c.b16 %v3174, %v3170
    %v3223 = vpack.c.b16 %v3175, %v3171
    %v3224 = vpack.c.b16 %v3176, %v3172
    %v3225 = vpack.c.b16 %v3181, %v3177
    %v3226 = vpack.c.b16 %v3182, %v3178
    %v3227 = vpack.c.b16 %v3183, %v3179
    %v3228 = vpack.c.b16 %v3184, %v3180
    %v3229 = vpack.c.b16 %v3189, %v3185
    %v3230 = vpack.c.b16 %v3190, %v3186
    %v3231 = vpack.c.b16 %v3191, %v3187
    %v3232 = vpack.c.b16 %v3192, %v3188
    %v3233 = vpack.c.b16 %v3197, %v3193
    %v3234 = vpack.c.b16 %v3198, %v3194
    %v3235 = vpack.c.b16 %v3199, %v3195
    %v3236 = vpack.c.b16 %v3200, %v3196
    %v3237 = vpack.c.b16 %v3205, %v3201
    %v3238 = vpack.c.b16 %v3206, %v3202
    %v3239 = vpack.c.b16 %v3207, %v3203
    %v3240 = vpack.c.b16 %v3208, %v3204
    %3273 = vmatprep.subr.bf16.mxu0 %v3238
    %3274 = vmatpush1.bf16.msra.mxu0 %v3237
    %3275 = vmatprep.subr.bf16.mxu0 %v3234
    %3276 = vmatpush1.bf16.msra.mxu0 %v3233
    %3277 = vmatprep.subr.bf16.mxu0 %v3230
    %3278 = vmatpush1.bf16.msra.mxu0 %v3229
    %3279 = vmatprep.subr.bf16.mxu0 %v3226
    %3280 = vmatpush1.bf16.msra.mxu0 %v3225
    %3281 = vmatprep.subr.bf16.mxu0 %v3222
    %3282 = vmatpush1.bf16.msra.mxu0 %v3221
    %3283 = vmatprep.subr.bf16.mxu0 %v3218
    %3284 = vmatpush1.bf16.msra.mxu0 %v3217
    %3285 = vmatprep.subr.bf16.mxu0 %v3214
    %3286 = vmatpush1.bf16.msra.mxu0 %v3213
    %3287 = vmatprep.subr.bf16.mxu0 %v3210
    %3288 = vmatpush1.bf16.msra.mxu0 %v3209
    %3289 = vmatprep.subr.bf16.mxu0 0
    %3290 = vmatpush2.bf16.msra.mxu0 0
    %3291 = vmatprep.subr.bf16.mxu0 0
    %3292 = vmatpush2.bf16.msra.mxu0 0
    %3293 = vmatprep.subr.bf16.mxu0 0
    %3294 = vmatpush2.bf16.msra.mxu0 0
    %3295 = vmatprep.subr.bf16.mxu0 0
    %3296 = vmatpush2.bf16.msra.mxu0 0
    %3297 = vmatprep.subr.bf16.mxu0 0
    %3298 = vmatpush2.bf16.msra.mxu0 0
    %3299 = vmatprep.subr.bf16.mxu0 0
    %3300 = vmatpush2.bf16.msra.mxu0 0
    %3301 = vmatprep.subr.bf16.mxu0 0
    %3302 = vmatpush2.bf16.msra.mxu0 0
    %3303 = vmatprep.subr.bf16.mxu0 0
    %3304 = vmatpush2.bf16.msra.mxu0 0
    %3305 = vmatprep.mubr.bf16.mxu0 0
    %3306 = vmatmul.mubr.bf16.gmra.mxu0 %v3105
    %v3307 = vpop.f32.mrf.mxu0
    %v3308 = vadd.f32 %v3072, %v3307
    %v3309 = vpop.f32.mrf.mxu0
    %v3310 = vadd.f32 %v3076, %v3309
    %v3311 = vpop.f32.mrf.mxu0
    %v3312 = vadd.f32 %v3072, %v3311
    %v3313 = vpop.f32.mrf.mxu0
    %v3314 = vadd.f32 %v3076, %v3313
    %3315 = vmatprep.mubr.bf16.mxu0 0
    %3316 = vmatmul.mubr.bf16.gmra.mxu0 %v3106
    %v3317 = vpop.f32.mrf.mxu0
    %v3318 = vadd.f32 %v3072, %v3317
    %v3319 = vpop.f32.mrf.mxu0
    %v3320 = vadd.f32 %v3076, %v3319
    %v3321 = vpop.f32.mrf.mxu0
    %v3322 = vadd.f32 %v3072, %v3321
    %v3323 = vpop.f32.mrf.mxu0
    %v3324 = vadd.f32 %v3076, %v3323
    %3325 = vmatprep.mubr.bf16.mxu0 0
    %3326 = vmatmul.mubr.bf16.gmra.mxu0 %v3107
    %v3327 = vpop.f32.mrf.mxu0
    %v3328 = vadd.f32 %v3072, %v3327
    %v3329 = vpop.f32.mrf.mxu0
    %v3330 = vadd.f32 %v3076, %v3329
    %v3331 = vpop.f32.mrf.mxu0
    %v3332 = vadd.f32 %v3072, %v3331
    %v3333 = vpop.f32.mrf.mxu0
    %v3334 = vadd.f32 %v3076, %v3333
    %3335 = vmatprep.mubr.bf16.mxu0 0
    %3336 = vmatmul.mubr.bf16.gmra.mxu0 %v3108
    %v3337 = vpop.f32.mrf.mxu0
    %v3338 = vadd.f32 %v3072, %v3337
    %v3339 = vpop.f32.mrf.mxu0
    %v3340 = vadd.f32 %v3076, %v3339
    %v3341 = vpop.f32.mrf.mxu0
    %v3342 = vadd.f32 %v3072, %v3341
    %v3343 = vpop.f32.mrf.mxu0
    %v3344 = vadd.f32 %v3076, %v3343
    %3345 = vdwg.mxu0
    %3346 = vmatprep.subr.bf16.mxu0 %v3240
    %3347 = vmatpush1.bf16.msra.mxu0 %v3239
    %3348 = vmatprep.subr.bf16.mxu0 %v3236
    %3349 = vmatpush1.bf16.msra.mxu0 %v3235
    %3350 = vmatprep.subr.bf16.mxu0 %v3232
    %3351 = vmatpush1.bf16.msra.mxu0 %v3231
    %3352 = vmatprep.subr.bf16.mxu0 %v3228
    %3353 = vmatpush1.bf16.msra.mxu0 %v3227
    %3354 = vmatprep.subr.bf16.mxu0 %v3224
    %3355 = vmatpush1.bf16.msra.mxu0 %v3223
    %3356 = vmatprep.subr.bf16.mxu0 %v3220
    %3357 = vmatpush1.bf16.msra.mxu0 %v3219
    %3358 = vmatprep.subr.bf16.mxu0 %v3216
    %3359 = vmatpush1.bf16.msra.mxu0 %v3215
    %3360 = vmatprep.subr.bf16.mxu0 %v3212
    %3361 = vmatpush1.bf16.msra.mxu0 %v3211
    %3362 = vmatprep.subr.bf16.mxu0 0
    %3363 = vmatpush2.bf16.msra.mxu0 0
    %3364 = vmatprep.subr.bf16.mxu0 0
    %3365 = vmatpush2.bf16.msra.mxu0 0
    %3366 = vmatprep.subr.bf16.mxu0 0
    %3367 = vmatpush2.bf16.msra.mxu0 0
    %3368 = vmatprep.subr.bf16.mxu0 0
    %3369 = vmatpush2.bf16.msra.mxu0 0
    %3370 = vmatprep.subr.bf16.mxu0 0
    %3371 = vmatpush2.bf16.msra.mxu0 0
    %3372 = vmatprep.subr.bf16.mxu0 0
    %3373 = vmatpush2.bf16.msra.mxu0 0
    %3374 = vmatprep.subr.bf16.mxu0 0
    %3375 = vmatpush2.bf16.msra.mxu0 0
    %3376 = vmatprep.subr.bf16.mxu0 0
    %3377 = vmatpush2.bf16.msra.mxu0 0
    %3378 = vmatprep.mubr.bf16.mxu0 0
    %3379 = vmatmul.mubr.bf16.gmra.mxu0 %v3105
    %v3380 = vpop.f32.mrf.mxu0
    %v3381 = vadd.f32 %v3080, %v3380
    %v3382 = vpop.f32.mrf.mxu0
    %v3383 = vadd.f32 %v3084, %v3382
    %v3384 = vpop.f32.mrf.mxu0
    %v3385 = vadd.f32 %v3080, %v3384
    %v3386 = vpop.f32.mrf.mxu0
    %v3387 = vadd.f32 %v3084, %v3386
    %3388 = vmatprep.mubr.bf16.mxu0 0
    %3389 = vmatmul.mubr.bf16.gmra.mxu0 %v3106
    %v3390 = vpop.f32.mrf.mxu0
    %v3391 = vadd.f32 %v3080, %v3390
    %v3392 = vpop.f32.mrf.mxu0
    %v3393 = vadd.f32 %v3084, %v3392
    %v3394 = vpop.f32.mrf.mxu0
    %v3395 = vadd.f32 %v3080, %v3394
    %v3396 = vpop.f32.mrf.mxu0
    %v3397 = vadd.f32 %v3084, %v3396
    %3398 = vmatprep.mubr.bf16.mxu0 0
    %3399 = vmatmul.mubr.bf16.gmra.mxu0 %v3107
    %v3400 = vpop.f32.mrf.mxu0
    %v3401 = vadd.f32 %v3080, %v3400
    %v3402 = vpop.f32.mrf.mxu0
    %v3403 = vadd.f32 %v3084, %v3402
    %v3404 = vpop.f32.mrf.mxu0
    %v3405 = vadd.f32 %v3080, %v3404
    %v3406 = vpop.f32.mrf.mxu0
    %v3407 = vadd.f32 %v3084, %v3406
    %3408 = vmatprep.mubr.bf16.mxu0 0
    %3409 = vmatmul.mubr.bf16.gmra.mxu0 %v3108
    %v3410 = vpop.f32.mrf.mxu0
    %v3411 = vadd.f32 %v3080, %v3410
    %v3412 = vpop.f32.mrf.mxu0
    %v3413 = vadd.f32 %v3084, %v3412
    %v3414 = vpop.f32.mrf.mxu0
    %v3415 = vadd.f32 %v3080, %v3414
    %v3416 = vpop.f32.mrf.mxu0
    %v3417 = vadd.f32 %v3084, %v3416
    %3418 = vdwg.mxu0
    %3419 = vst [vmem:[#allocation2] sm:$0xff] %v3308
    %3420 = vst [vmem:[#allocation2 + $0x8] sm:$0xff] %v3310
    %3421 = vst [vmem:[#allocation2 + $0x10] sm:$0xff] %v3381
    %3422 = vst [vmem:[#allocation2 + $0x18] sm:$0xff] %v3383
    %3423 = vst [vmem:[#allocation2 + $0x20] sm:$0xff] %v3312
    %3424 = vst [vmem:[#allocation2 + $0x28] sm:$0xff] %v3314
    %3425 = vst [vmem:[#allocation2 + $0x30] sm:$0xff] %v3385
    %3426 = vst [vmem:[#allocation2 + $0x38] sm:$0xff] %v3387
    %3427 = vst [vmem:[#allocation2 + $0x40] sm:$0xff] %v3318
    %3428 = vst [vmem:[#allocation2 + $0x48] sm:$0xff] %v3320
    %3429 = vst [vmem:[#allocation2 + $0x50] sm:$0xff] %v3391
    %3430 = vst [vmem:[#allocation2 + $0x58] sm:$0xff] %v3393
    %3431 = vst [vmem:[#allocation2 + $0x60] sm:$0xff] %v3322
    %3432 = vst [vmem:[#allocation2 + $0x68] sm:$0xff] %v3324
    %3433 = vst [vmem:[#allocation2 + $0x70] sm:$0xff] %v3395
    %3434 = vst [vmem:[#allocation2 + $0x78] sm:$0xff] %v3397
    %3435 = vst [vmem:[#allocation2 + $0x80] sm:$0xff] %v3328
    %3436 = vst [vmem:[#allocation2 + $0x88] sm:$0xff] %v3330
    %3437 = vst [vmem:[#allocation2 + $0x90] sm:$0xff] %v3401
    %3438 = vst [vmem:[#allocation2 + $0x98] sm:$0xff] %v3403
    %3439 = vst [vmem:[#allocation2 + $0xa0] sm:$0xff] %v3332
    %3440 = vst [vmem:[#allocation2 + $0xa8] sm:$0xff] %v3334
    %3441 = vst [vmem:[#allocation2 + $0xb0] sm:$0xff] %v3405
    %3442 = vst [vmem:[#allocation2 + $0xb8] sm:$0xff] %v3407
    %3443 = vst [vmem:[#allocation2 + $0xc0] sm:$0xff] %v3338
    %3444 = vst [vmem:[#allocation2 + $0xc8] sm:$0xff] %v3340
    %3445 = vst [vmem:[#allocation2 + $0xd0] sm:$0xff] %v3411
    %3446 = vst [vmem:[#allocation2 + $0xd8] sm:$0xff] %v3413
    %3447 = vst [vmem:[#allocation2 + $0xe0] sm:$0xff] %v3342
    %3448 = vst [vmem:[#allocation2 + $0xe8] sm:$0xff] %v3344
    %3449 = vst [vmem:[#allocation2 + $0xf0] sm:$0xff] %v3415
    %3450 = vst [vmem:[#allocation2 + $0xf8] sm:$0xff] %v3417
    %s3451 = scalar_lea.vmem [#allocation7], 8
    %v3452 = vld [vmem:[%s3451] sm:$0xff]
    %s3453 = scalar_lea.vmem [#allocation9], 8
    %v3454 = vld [vmem:[%s3453] sm:$0xff]
    %v3455 = vld [vmem:[#allocation2] sm:$0xff]
    %v3456 = vld [vmem:[#allocation2 + $0x8] sm:$0xff]
    %v3457 = vld [vmem:[#allocation2 + $0x10] sm:$0xff]
    %v3458 = vld [vmem:[#allocation2 + $0x18] sm:$0xff]
    %v3459 = vpack.c.bf16 %v3452, %v3452
    %v3460 = vld [vmem:[#allocation15] sm:$0xff]
    %v3461 = vld [vmem:[#allocation15 + $0x8] sm:$0xff]
    %v3462 = vld [vmem:[#allocation15 + $0x10] sm:$0xff]
    %v3463 = vld [vmem:[#allocation15 + $0x18] sm:$0xff]
    %v3464 = vld [vmem:[#allocation15 + $0x20] sm:$0xff]
    %v3465 = vld [vmem:[#allocation15 + $0x28] sm:$0xff]
    %v3466 = vld [vmem:[#allocation15 + $0x30] sm:$0xff]
    %v3467 = vld [vmem:[#allocation15 + $0x38] sm:$0xff]
    %v3468 = vld [vmem:[#allocation15 + $0x40] sm:$0xff]
    %v3469 = vld [vmem:[#allocation15 + $0x48] sm:$0xff]
    %v3470 = vld [vmem:[#allocation15 + $0x50] sm:$0xff]
    %v3471 = vld [vmem:[#allocation15 + $0x58] sm:$0xff]
    %v3472 = vld [vmem:[#allocation15 + $0x60] sm:$0xff]
    %v3473 = vld [vmem:[#allocation15 + $0x68] sm:$0xff]
    %v3474 = vld [vmem:[#allocation15 + $0x70] sm:$0xff]
    %v3475 = vld [vmem:[#allocation15 + $0x78] sm:$0xff]
    %v3476 = vld [vmem:[#allocation15 + $0x80] sm:$0xff]
    %v3477 = vld [vmem:[#allocation15 + $0x88] sm:$0xff]
    %v3478 = vld [vmem:[#allocation15 + $0x90] sm:$0xff]
    %v3479 = vld [vmem:[#allocation15 + $0x98] sm:$0xff]
    %v3480 = vld [vmem:[#allocation15 + $0xa0] sm:$0xff]
    %v3481 = vld [vmem:[#allocation15 + $0xa8] sm:$0xff]
    %v3482 = vld [vmem:[#allocation15 + $0xb0] sm:$0xff]
    %v3483 = vld [vmem:[#allocation15 + $0xb8] sm:$0xff]
    %v3484 = vld [vmem:[#allocation15 + $0xc0] sm:$0xff]
    %v3485 = vld [vmem:[#allocation15 + $0xc8] sm:$0xff]
    %v3486 = vld [vmem:[#allocation15 + $0xd0] sm:$0xff]
    %v3487 = vld [vmem:[#allocation15 + $0xd8] sm:$0xff]
    %v3488 = vld [vmem:[#allocation15 + $0xe0] sm:$0xff]
    %v3489 = vld [vmem:[#allocation15 + $0xe8] sm:$0xff]
    %v3490 = vld [vmem:[#allocation15 + $0xf0] sm:$0xff]
    %v3491 = vld [vmem:[#allocation15 + $0xf8] sm:$0xff]
    %v3524 = vunpack.c.l.b16 %v3460
    %v3525 = vunpack.c.h.b16 %v3460
    %v3526 = vunpack.c.l.b16 %v3461
    %v3527 = vunpack.c.h.b16 %v3461
    %v3528 = vunpack.c.l.b16 %v3462
    %v3529 = vunpack.c.h.b16 %v3462
    %v3530 = vunpack.c.l.b16 %v3463
    %v3531 = vunpack.c.h.b16 %v3463
    %v3532 = vunpack.c.l.b16 %v3464
    %v3533 = vunpack.c.h.b16 %v3464
    %v3534 = vunpack.c.l.b16 %v3465
    %v3535 = vunpack.c.h.b16 %v3465
    %v3536 = vunpack.c.l.b16 %v3466
    %v3537 = vunpack.c.h.b16 %v3466
    %v3538 = vunpack.c.l.b16 %v3467
    %v3539 = vunpack.c.h.b16 %v3467
    %v3540 = vunpack.c.l.b16 %v3468
    %v3541 = vunpack.c.h.b16 %v3468
    %v3542 = vunpack.c.l.b16 %v3469
    %v3543 = vunpack.c.h.b16 %v3469
    %v3544 = vunpack.c.l.b16 %v3470
    %v3545 = vunpack.c.h.b16 %v3470
    %v3546 = vunpack.c.l.b16 %v3471
    %v3547 = vunpack.c.h.b16 %v3471
    %v3548 = vunpack.c.l.b16 %v3472
    %v3549 = vunpack.c.h.b16 %v3472
    %v3550 = vunpack.c.l.b16 %v3473
    %v3551 = vunpack.c.h.b16 %v3473
    %v3552 = vunpack.c.l.b16 %v3474
    %v3553 = vunpack.c.h.b16 %v3474
    %v3554 = vunpack.c.l.b16 %v3475
    %v3555 = vunpack.c.h.b16 %v3475
    %v3556 = vunpack.c.l.b16 %v3476
    %v3557 = vunpack.c.h.b16 %v3476
    %v3558 = vunpack.c.l.b16 %v3477
    %v3559 = vunpack.c.h.b16 %v3477
    %v3560 = vunpack.c.l.b16 %v3478
    %v3561 = vunpack.c.h.b16 %v3478
    %v3562 = vunpack.c.l.b16 %v3479
    %v3563 = vunpack.c.h.b16 %v3479
    %v3564 = vunpack.c.l.b16 %v3480
    %v3565 = vunpack.c.h.b16 %v3480
    %v3566 = vunpack.c.l.b16 %v3481
    %v3567 = vunpack.c.h.b16 %v3481
    %v3568 = vunpack.c.l.b16 %v3482
    %v3569 = vunpack.c.h.b16 %v3482
    %v3570 = vunpack.c.l.b16 %v3483
    %v3571 = vunpack.c.h.b16 %v3483
    %v3572 = vunpack.c.l.b16 %v3484
    %v3573 = vunpack.c.h.b16 %v3484
    %v3574 = vunpack.c.l.b16 %v3485
    %v3575 = vunpack.c.h.b16 %v3485
    %v3576 = vunpack.c.l.b16 %v3486
    %v3577 = vunpack.c.h.b16 %v3486
    %v3578 = vunpack.c.l.b16 %v3487
    %v3579 = vunpack.c.h.b16 %v3487
    %v3580 = vunpack.c.l.b16 %v3488
    %v3581 = vunpack.c.h.b16 %v3488
    %v3582 = vunpack.c.l.b16 %v3489
    %v3583 = vunpack.c.h.b16 %v3489
    %v3584 = vunpack.c.l.b16 %v3490
    %v3585 = vunpack.c.h.b16 %v3490
    %v3586 = vunpack.c.l.b16 %v3491
    %v3587 = vunpack.c.h.b16 %v3491
    %v3588 = vpack.c.b16 %v3528, %v3524
    %v3589 = vpack.c.b16 %v3529, %v3525
    %v3590 = vpack.c.b16 %v3530, %v3526
    %v3591 = vpack.c.b16 %v3531, %v3527
    %v3592 = vpack.c.b16 %v3536, %v3532
    %v3593 = vpack.c.b16 %v3537, %v3533
    %v3594 = vpack.c.b16 %v3538, %v3534
    %v3595 = vpack.c.b16 %v3539, %v3535
    %v3596 = vpack.c.b16 %v3544, %v3540
    %v3597 = vpack.c.b16 %v3545, %v3541
    %v3598 = vpack.c.b16 %v3546, %v3542
    %v3599 = vpack.c.b16 %v3547, %v3543
    %v3600 = vpack.c.b16 %v3552, %v3548
    %v3601 = vpack.c.b16 %v3553, %v3549
    %v3602 = vpack.c.b16 %v3554, %v3550
    %v3603 = vpack.c.b16 %v3555, %v3551
    %v3604 = vpack.c.b16 %v3560, %v3556
    %v3605 = vpack.c.b16 %v3561, %v3557
    %v3606 = vpack.c.b16 %v3562, %v3558
    %v3607 = vpack.c.b16 %v3563, %v3559
    %v3608 = vpack.c.b16 %v3568, %v3564
    %v3609 = vpack.c.b16 %v3569, %v3565
    %v3610 = vpack.c.b16 %v3570, %v3566
    %v3611 = vpack.c.b16 %v3571, %v3567
    %v3612 = vpack.c.b16 %v3576, %v3572
    %v3613 = vpack.c.b16 %v3577, %v3573
    %v3614 = vpack.c.b16 %v3578, %v3574
    %v3615 = vpack.c.b16 %v3579, %v3575
    %v3616 = vpack.c.b16 %v3584, %v3580
    %v3617 = vpack.c.b16 %v3585, %v3581
    %v3618 = vpack.c.b16 %v3586, %v3582
    %v3619 = vpack.c.b16 %v3587, %v3583
    %3652 = vmatprep.subr.bf16.mxu0 %v3617
    %3653 = vmatpush1.bf16.msra.mxu0 %v3616
    %3654 = vmatprep.subr.bf16.mxu0 %v3613
    %3655 = vmatpush1.bf16.msra.mxu0 %v3612
    %3656 = vmatprep.subr.bf16.mxu0 %v3609
    %3657 = vmatpush1.bf16.msra.mxu0 %v3608
    %3658 = vmatprep.subr.bf16.mxu0 %v3605
    %3659 = vmatpush1.bf16.msra.mxu0 %v3604
    %3660 = vmatprep.subr.bf16.mxu0 %v3601
    %3661 = vmatpush1.bf16.msra.mxu0 %v3600
    %3662 = vmatprep.subr.bf16.mxu0 %v3597
    %3663 = vmatpush1.bf16.msra.mxu0 %v3596
    %3664 = vmatprep.subr.bf16.mxu0 %v3593
    %3665 = vmatpush1.bf16.msra.mxu0 %v3592
    %3666 = vmatprep.subr.bf16.mxu0 %v3589
    %3667 = vmatpush1.bf16.msra.mxu0 %v3588
    %3668 = vmatprep.subr.bf16.mxu0 0
    %3669 = vmatpush2.bf16.msra.mxu0 0
    %3670 = vmatprep.subr.bf16.mxu0 0
    %3671 = vmatpush2.bf16.msra.mxu0 0
    %3672 = vmatprep.subr.bf16.mxu0 0
    %3673 = vmatpush2.bf16.msra.mxu0 0
    %3674 = vmatprep.subr.bf16.mxu0 0
    %3675 = vmatpush2.bf16.msra.mxu0 0
    %3676 = vmatprep.subr.bf16.mxu0 0
    %3677 = vmatpush2.bf16.msra.mxu0 0
    %3678 = vmatprep.subr.bf16.mxu0 0
    %3679 = vmatpush2.bf16.msra.mxu0 0
    %3680 = vmatprep.subr.bf16.mxu0 0
    %3681 = vmatpush2.bf16.msra.mxu0 0
    %3682 = vmatprep.subr.bf16.mxu0 0
    %3683 = vmatpush2.bf16.msra.mxu0 0
    %3684 = vmatprep.mubr.bf16.mxu0 0
    %3685 = vmatmul.mubr.bf16.gmra.mxu0 %v3459
    %v3686 = vpop.f32.mrf.mxu0
    %v3687 = vadd.f32 0.0, %v3686
    %v3688 = vpop.f32.mrf.mxu0
    %v3689 = vadd.f32 0.0, %v3688
    %v3690 = vpop.f32.mrf.mxu0
    %v3691 = vpop.f32.mrf.mxu0
    %3692 = vdwg.mxu0
    %3693 = vmatprep.subr.bf16.mxu0 %v3619
    %3694 = vmatpush1.bf16.msra.mxu0 %v3618
    %3695 = vmatprep.subr.bf16.mxu0 %v3615
    %3696 = vmatpush1.bf16.msra.mxu0 %v3614
    %3697 = vmatprep.subr.bf16.mxu0 %v3611
    %3698 = vmatpush1.bf16.msra.mxu0 %v3610
    %3699 = vmatprep.subr.bf16.mxu0 %v3607
    %3700 = vmatpush1.bf16.msra.mxu0 %v3606
    %3701 = vmatprep.subr.bf16.mxu0 %v3603
    %3702 = vmatpush1.bf16.msra.mxu0 %v3602
    %3703 = vmatprep.subr.bf16.mxu0 %v3599
    %3704 = vmatpush1.bf16.msra.mxu0 %v3598
    %3705 = vmatprep.subr.bf16.mxu0 %v3595
    %3706 = vmatpush1.bf16.msra.mxu0 %v3594
    %3707 = vmatprep.subr.bf16.mxu0 %v3591
    %3708 = vmatpush1.bf16.msra.mxu0 %v3590
    %3709 = vmatprep.subr.bf16.mxu0 0
    %3710 = vmatpush2.bf16.msra.mxu0 0
    %3711 = vmatprep.subr.bf16.mxu0 0
    %3712 = vmatpush2.bf16.msra.mxu0 0
    %3713 = vmatprep.subr.bf16.mxu0 0
    %3714 = vmatpush2.bf16.msra.mxu0 0
    %3715 = vmatprep.subr.bf16.mxu0 0
    %3716 = vmatpush2.bf16.msra.mxu0 0
    %3717 = vmatprep.subr.bf16.mxu0 0
    %3718 = vmatpush2.bf16.msra.mxu0 0
    %3719 = vmatprep.subr.bf16.mxu0 0
    %3720 = vmatpush2.bf16.msra.mxu0 0
    %3721 = vmatprep.subr.bf16.mxu0 0
    %3722 = vmatpush2.bf16.msra.mxu0 0
    %3723 = vmatprep.subr.bf16.mxu0 0
    %3724 = vmatpush2.bf16.msra.mxu0 0
    %3725 = vmatprep.mubr.bf16.mxu0 0
    %3726 = vmatmul.mubr.bf16.gmra.mxu0 %v3459
    %v3727 = vpop.f32.mrf.mxu0
    %v3728 = vadd.f32 0.0, %v3727
    %v3729 = vpop.f32.mrf.mxu0
    %v3730 = vadd.f32 0.0, %v3729
    %v3731 = vpop.f32.mrf.mxu0
    %v3732 = vpop.f32.mrf.mxu0
    %3733 = vdwg.mxu0
    %v3734 = vadd.f32 %v3455, %v3687
    %v3735 = vadd.f32 %v3456, %v3689
    %v3736 = vadd.f32 %v3457, %v3728
    %v3737 = vadd.f32 %v3458, %v3730
    %v3738 = vxor.u32 %v3734, 2147483648
    %v3739 = vxor.u32 %v3735, 2147483648
    %v3740 = vxor.u32 %v3736, 2147483648
    %v3741 = vmul.f32 %v3738, 1.442695
    %v3742 = vpow.pop %v3741
    %v3743 = vmul.f32 %v3739, 1.442695
    %v3744 = vpow.pop %v3743
    %v3745 = vmul.f32 %v3740, 1.442695
    %v3746 = vpow.pop %v3745
    %v3747 = vadd.f32 %v3742, 1.0
    %v3748 = vadd.f32 %v3744, 1.0
    %v3749 = vadd.f32 %v3746, 1.0
    %v3750 = vrcp.pop %v3747
    %v3751 = vmul.f32 1.0, %v3750
    %v3752 = vrcp.pop %v3748
    %v3753 = vmul.f32 1.0, %v3752
    %v3754 = vrcp.pop %v3749
    %v3755 = vmul.f32 1.0, %v3754
    %v3756 = vtanh.pop %v3737
    %v3757 = vmul.f32 %v3753, %v3454
    %v3758 = vmul.f32 %v3751, %v3756
    %v3759 = vadd.f32 %v3757, %v3758
    %v3760 = vtanh.pop %v3759
    %v3761 = vmul.f32 %v3755, %v3760
    %v3762 = vld [vmem:[#allocation2 + $0x20] sm:$0xff]
    %v3763 = vld [vmem:[#allocation2 + $0x28] sm:$0xff]
    %v3764 = vld [vmem:[#allocation2 + $0x30] sm:$0xff]
    %v3765 = vld [vmem:[#allocation2 + $0x38] sm:$0xff]
    %v3766 = vpack.c.bf16 %v3761, %v3761
    %3767 = vmatprep.subr.bf16.mxu0 %v3617
    %3768 = vmatpush1.bf16.msra.mxu0 %v3616
    %3769 = vmatprep.subr.bf16.mxu0 %v3613
    %3770 = vmatpush1.bf16.msra.mxu0 %v3612
    %3771 = vmatprep.subr.bf16.mxu0 %v3609
    %3772 = vmatpush1.bf16.msra.mxu0 %v3608
    %3773 = vmatprep.subr.bf16.mxu0 %v3605
    %3774 = vmatpush1.bf16.msra.mxu0 %v3604
    %3775 = vmatprep.subr.bf16.mxu0 %v3601
    %3776 = vmatpush1.bf16.msra.mxu0 %v3600
    %3777 = vmatprep.subr.bf16.mxu0 %v3597
    %3778 = vmatpush1.bf16.msra.mxu0 %v3596
    %3779 = vmatprep.subr.bf16.mxu0 %v3593
    %3780 = vmatpush1.bf16.msra.mxu0 %v3592
    %3781 = vmatprep.subr.bf16.mxu0 %v3589
    %3782 = vmatpush1.bf16.msra.mxu0 %v3588
    %3783 = vmatprep.subr.bf16.mxu0 0
    %3784 = vmatpush2.bf16.msra.mxu0 0
    %3785 = vmatprep.subr.bf16.mxu0 0
    %3786 = vmatpush2.bf16.msra.mxu0 0
    %3787 = vmatprep.subr.bf16.mxu0 0
    %3788 = vmatpush2.bf16.msra.mxu0 0
    %3789 = vmatprep.subr.bf16.mxu0 0
    %3790 = vmatpush2.bf16.msra.mxu0 0
    %3791 = vmatprep.subr.bf16.mxu0 0
    %3792 = vmatpush2.bf16.msra.mxu0 0
    %3793 = vmatprep.subr.bf16.mxu0 0
    %3794 = vmatpush2.bf16.msra.mxu0 0
    %3795 = vmatprep.subr.bf16.mxu0 0
    %3796 = vmatpush2.bf16.msra.mxu0 0
    %3797 = vmatprep.subr.bf16.mxu0 0
    %3798 = vmatpush2.bf16.msra.mxu0 0
    %3799 = vmatprep.mubr.bf16.mxu0 0
    %3800 = vmatmul.mubr.bf16.gmra.mxu0 %v3766
    %v3801 = vpop.f32.mrf.mxu0
    %v3802 = vadd.f32 0.0, %v3801
    %v3803 = vpop.f32.mrf.mxu0
    %v3804 = vadd.f32 0.0, %v3803
    %v3805 = vpop.f32.mrf.mxu0
    %v3806 = vpop.f32.mrf.mxu0
    %3807 = vdwg.mxu0
    %3808 = vmatprep.subr.bf16.mxu0 %v3619
    %3809 = vmatpush1.bf16.msra.mxu0 %v3618
    %3810 = vmatprep.subr.bf16.mxu0 %v3615
    %3811 = vmatpush1.bf16.msra.mxu0 %v3614
    %3812 = vmatprep.subr.bf16.mxu0 %v3611
    %3813 = vmatpush1.bf16.msra.mxu0 %v3610
    %3814 = vmatprep.subr.bf16.mxu0 %v3607
    %3815 = vmatpush1.bf16.msra.mxu0 %v3606
    %3816 = vmatprep.subr.bf16.mxu0 %v3603
    %3817 = vmatpush1.bf16.msra.mxu0 %v3602
    %3818 = vmatprep.subr.bf16.mxu0 %v3599
    %3819 = vmatpush1.bf16.msra.mxu0 %v3598
    %3820 = vmatprep.subr.bf16.mxu0 %v3595
    %3821 = vmatpush1.bf16.msra.mxu0 %v3594
    %3822 = vmatprep.subr.bf16.mxu0 %v3591
    %3823 = vmatpush1.bf16.msra.mxu0 %v3590
    %3824 = vmatprep.subr.bf16.mxu0 0
    %3825 = vmatpush2.bf16.msra.mxu0 0
    %3826 = vmatprep.subr.bf16.mxu0 0
    %3827 = vmatpush2.bf16.msra.mxu0 0
    %3828 = vmatprep.subr.bf16.mxu0 0
    %3829 = vmatpush2.bf16.msra.mxu0 0
    %3830 = vmatprep.subr.bf16.mxu0 0
    %3831 = vmatpush2.bf16.msra.mxu0 0
    %3832 = vmatprep.subr.bf16.mxu0 0
    %3833 = vmatpush2.bf16.msra.mxu0 0
    %3834 = vmatprep.subr.bf16.mxu0 0
    %3835 = vmatpush2.bf16.msra.mxu0 0
    %3836 = vmatprep.subr.bf16.mxu0 0
    %3837 = vmatpush2.bf16.msra.mxu0 0
    %3838 = vmatprep.subr.bf16.mxu0 0
    %3839 = vmatpush2.bf16.msra.mxu0 0
    %3840 = vmatprep.mubr.bf16.mxu0 0
    %3841 = vmatmul.mubr.bf16.gmra.mxu0 %v3766
    %v3842 = vpop.f32.mrf.mxu0
    %v3843 = vadd.f32 0.0, %v3842
    %v3844 = vpop.f32.mrf.mxu0
    %v3845 = vadd.f32 0.0, %v3844
    %v3846 = vpop.f32.mrf.mxu0
    %v3847 = vpop.f32.mrf.mxu0
    %3848 = vdwg.mxu0
    %v3849 = vadd.f32 %v3762, %v3802
    %v3850 = vadd.f32 %v3763, %v3804
    %v3851 = vadd.f32 %v3764, %v3843
    %v3852 = vadd.f32 %v3765, %v3845
    %v3853 = vxor.u32 %v3849, 2147483648
    %v3854 = vxor.u32 %v3850, 2147483648
    %v3855 = vxor.u32 %v3851, 2147483648
    %v3856 = vmul.f32 %v3853, 1.442695
    %v3857 = vpow.pop %v3856
    %v3858 = vmul.f32 %v3854, 1.442695
    %v3859 = vpow.pop %v3858
    %v3860 = vmul.f32 %v3855, 1.442695
    %v3861 = vpow.pop %v3860
    %v3862 = vadd.f32 %v3857, 1.0
    %v3863 = vadd.f32 %v3859, 1.0
    %v3864 = vadd.f32 %v3861, 1.0
    %v3865 = vrcp.pop %v3862
    %v3866 = vmul.f32 1.0, %v3865
    %v3867 = vrcp.pop %v3863
    %v3868 = vmul.f32 1.0, %v3867
    %v3869 = vrcp.pop %v3864
    %v3870 = vmul.f32 1.0, %v3869
    %v3871 = vtanh.pop %v3852
    %v3872 = vmul.f32 %v3868, %v3759
    %v3873 = vmul.f32 %v3866, %v3871
    %v3874 = vadd.f32 %v3872, %v3873
    %v3875 = vtanh.pop %v3874
    %v3876 = vmul.f32 %v3870, %v3875
    %v3877 = vld [vmem:[#allocation2 + $0x40] sm:$0xff]
    %v3878 = vld [vmem:[#allocation2 + $0x48] sm:$0xff]
    %v3879 = vld [vmem:[#allocation2 + $0x50] sm:$0xff]
    %v3880 = vld [vmem:[#allocation2 + $0x58] sm:$0xff]
    %v3881 = vpack.c.bf16 %v3876, %v3876
    %3882 = vmatprep.subr.bf16.mxu0 %v3617
    %3883 = vmatpush1.bf16.msra.mxu0 %v3616
    %3884 = vmatprep.subr.bf16.mxu0 %v3613
    %3885 = vmatpush1.bf16.msra.mxu0 %v3612
    %3886 = vmatprep.subr.bf16.mxu0 %v3609
    %3887 = vmatpush1.bf16.msra.mxu0 %v3608
    %3888 = vmatprep.subr.bf16.mxu0 %v3605
    %3889 = vmatpush1.bf16.msra.mxu0 %v3604
    %3890 = vmatprep.subr.bf16.mxu0 %v3601
    %3891 = vmatpush1.bf16.msra.mxu0 %v3600
    %3892 = vmatprep.subr.bf16.mxu0 %v3597
    %3893 = vmatpush1.bf16.msra.mxu0 %v3596
    %3894 = vmatprep.subr.bf16.mxu0 %v3593
    %3895 = vmatpush1.bf16.msra.mxu0 %v3592
    %3896 = vmatprep.subr.bf16.mxu0 %v3589
    %3897 = vmatpush1.bf16.msra.mxu0 %v3588
    %3898 = vmatprep.subr.bf16.mxu0 0
    %3899 = vmatpush2.bf16.msra.mxu0 0
    %3900 = vmatprep.subr.bf16.mxu0 0
    %3901 = vmatpush2.bf16.msra.mxu0 0
    %3902 = vmatprep.subr.bf16.mxu0 0
    %3903 = vmatpush2.bf16.msra.mxu0 0
    %3904 = vmatprep.subr.bf16.mxu0 0
    %3905 = vmatpush2.bf16.msra.mxu0 0
    %3906 = vmatprep.subr.bf16.mxu0 0
    %3907 = vmatpush2.bf16.msra.mxu0 0
    %3908 = vmatprep.subr.bf16.mxu0 0
    %3909 = vmatpush2.bf16.msra.mxu0 0
    %3910 = vmatprep.subr.bf16.mxu0 0
    %3911 = vmatpush2.bf16.msra.mxu0 0
    %3912 = vmatprep.subr.bf16.mxu0 0
    %3913 = vmatpush2.bf16.msra.mxu0 0
    %3914 = vmatprep.mubr.bf16.mxu0 0
    %3915 = vmatmul.mubr.bf16.gmra.mxu0 %v3881
    %v3916 = vpop.f32.mrf.mxu0
    %v3917 = vadd.f32 0.0, %v3916
    %v3918 = vpop.f32.mrf.mxu0
    %v3919 = vadd.f32 0.0, %v3918
    %v3920 = vpop.f32.mrf.mxu0
    %v3921 = vpop.f32.mrf.mxu0
    %3922 = vdwg.mxu0
    %3923 = vmatprep.subr.bf16.mxu0 %v3619
    %3924 = vmatpush1.bf16.msra.mxu0 %v3618
    %3925 = vmatprep.subr.bf16.mxu0 %v3615
    %3926 = vmatpush1.bf16.msra.mxu0 %v3614
    %3927 = vmatprep.subr.bf16.mxu0 %v3611
    %3928 = vmatpush1.bf16.msra.mxu0 %v3610
    %3929 = vmatprep.subr.bf16.mxu0 %v3607
    %3930 = vmatpush1.bf16.msra.mxu0 %v3606
    %3931 = vmatprep.subr.bf16.mxu0 %v3603
    %3932 = vmatpush1.bf16.msra.mxu0 %v3602
    %3933 = vmatprep.subr.bf16.mxu0 %v3599
    %3934 = vmatpush1.bf16.msra.mxu0 %v3598
    %3935 = vmatprep.subr.bf16.mxu0 %v3595
    %3936 = vmatpush1.bf16.msra.mxu0 %v3594
    %3937 = vmatprep.subr.bf16.mxu0 %v3591
    %3938 = vmatpush1.bf16.msra.mxu0 %v3590
    %3939 = vmatprep.subr.bf16.mxu0 0
    %3940 = vmatpush2.bf16.msra.mxu0 0
    %3941 = vmatprep.subr.bf16.mxu0 0
    %3942 = vmatpush2.bf16.msra.mxu0 0
    %3943 = vmatprep.subr.bf16.mxu0 0
    %3944 = vmatpush2.bf16.msra.mxu0 0
    %3945 = vmatprep.subr.bf16.mxu0 0
    %3946 = vmatpush2.bf16.msra.mxu0 0
    %3947 = vmatprep.subr.bf16.mxu0 0
    %3948 = vmatpush2.bf16.msra.mxu0 0
    %3949 = vmatprep.subr.bf16.mxu0 0
    %3950 = vmatpush2.bf16.msra.mxu0 0
    %3951 = vmatprep.subr.bf16.mxu0 0
    %3952 = vmatpush2.bf16.msra.mxu0 0
    %3953 = vmatprep.subr.bf16.mxu0 0
    %3954 = vmatpush2.bf16.msra.mxu0 0
    %3955 = vmatprep.mubr.bf16.mxu0 0
    %3956 = vmatmul.mubr.bf16.gmra.mxu0 %v3881
    %v3957 = vpop.f32.mrf.mxu0
    %v3958 = vadd.f32 0.0, %v3957
    %v3959 = vpop.f32.mrf.mxu0
    %v3960 = vadd.f32 0.0, %v3959
    %v3961 = vpop.f32.mrf.mxu0
    %v3962 = vpop.f32.mrf.mxu0
    %3963 = vdwg.mxu0
    %v3964 = vadd.f32 %v3877, %v3917
    %v3965 = vadd.f32 %v3878, %v3919
    %v3966 = vadd.f32 %v3879, %v3958
    %v3967 = vadd.f32 %v3880, %v3960
    %v3968 = vxor.u32 %v3964, 2147483648
    %v3969 = vxor.u32 %v3965, 2147483648
    %v3970 = vxor.u32 %v3966, 2147483648
    %v3971 = vmul.f32 %v3968, 1.442695
    %v3972 = vpow.pop %v3971
    %v3973 = vmul.f32 %v3969, 1.442695
    %v3974 = vpow.pop %v3973
    %v3975 = vmul.f32 %v3970, 1.442695
    %v3976 = vpow.pop %v3975
    %v3977 = vadd.f32 %v3972, 1.0
    %v3978 = vadd.f32 %v3974, 1.0
    %v3979 = vadd.f32 %v3976, 1.0
    %v3980 = vrcp.pop %v3977
    %v3981 = vmul.f32 1.0, %v3980
    %v3982 = vrcp.pop %v3978
    %v3983 = vmul.f32 1.0, %v3982
    %v3984 = vrcp.pop %v3979
    %v3985 = vmul.f32 1.0, %v3984
    %v3986 = vtanh.pop %v3967
    %v3987 = vmul.f32 %v3983, %v3874
    %v3988 = vmul.f32 %v3981, %v3986
    %v3989 = vadd.f32 %v3987, %v3988
    %v3990 = vtanh.pop %v3989
    %v3991 = vmul.f32 %v3985, %v3990
    %v3992 = vld [vmem:[#allocation2 + $0x60] sm:$0xff]
    %v3993 = vld [vmem:[#allocation2 + $0x68] sm:$0xff]
    %v3994 = vld [vmem:[#allocation2 + $0x70] sm:$0xff]
    %v3995 = vld [vmem:[#allocation2 + $0x78] sm:$0xff]
    %v3996 = vpack.c.bf16 %v3991, %v3991
    %3997 = vmatprep.subr.bf16.mxu0 %v3617
    %3998 = vmatpush1.bf16.msra.mxu0 %v3616
    %3999 = vmatprep.subr.bf16.mxu0 %v3613
    %4000 = vmatpush1.bf16.msra.mxu0 %v3612
    %4001 = vmatprep.subr.bf16.mxu0 %v3609
    %4002 = vmatpush1.bf16.msra.mxu0 %v3608
    %4003 = vmatprep.subr.bf16.mxu0 %v3605
    %4004 = vmatpush1.bf16.msra.mxu0 %v3604
    %4005 = vmatprep.subr.bf16.mxu0 %v3601
    %4006 = vmatpush1.bf16.msra.mxu0 %v3600
    %4007 = vmatprep.subr.bf16.mxu0 %v3597
    %4008 = vmatpush1.bf16.msra.mxu0 %v3596
    %4009 = vmatprep.subr.bf16.mxu0 %v3593
    %4010 = vmatpush1.bf16.msra.mxu0 %v3592
    %4011 = vmatprep.subr.bf16.mxu0 %v3589
    %4012 = vmatpush1.bf16.msra.mxu0 %v3588
    %4013 = vmatprep.subr.bf16.mxu0 0
    %4014 = vmatpush2.bf16.msra.mxu0 0
    %4015 = vmatprep.subr.bf16.mxu0 0
    %4016 = vmatpush2.bf16.msra.mxu0 0
    %4017 = vmatprep.subr.bf16.mxu0 0
    %4018 = vmatpush2.bf16.msra.mxu0 0
    %4019 = vmatprep.subr.bf16.mxu0 0
    %4020 = vmatpush2.bf16.msra.mxu0 0
    %4021 = vmatprep.subr.bf16.mxu0 0
    %4022 = vmatpush2.bf16.msra.mxu0 0
    %4023 = vmatprep.subr.bf16.mxu0 0
    %4024 = vmatpush2.bf16.msra.mxu0 0
    %4025 = vmatprep.subr.bf16.mxu0 0
    %4026 = vmatpush2.bf16.msra.mxu0 0
    %4027 = vmatprep.subr.bf16.mxu0 0
    %4028 = vmatpush2.bf16.msra.mxu0 0
    %4029 = vmatprep.mubr.bf16.mxu0 0
    %4030 = vmatmul.mubr.bf16.gmra.mxu0 %v3996
    %v4031 = vpop.f32.mrf.mxu0
    %v4032 = vadd.f32 0.0, %v4031
    %v4033 = vpop.f32.mrf.mxu0
    %v4034 = vadd.f32 0.0, %v4033
    %v4035 = vpop.f32.mrf.mxu0
    %v4036 = vpop.f32.mrf.mxu0
    %4037 = vdwg.mxu0
    %4038 = vmatprep.subr.bf16.mxu0 %v3619
    %4039 = vmatpush1.bf16.msra.mxu0 %v3618
    %4040 = vmatprep.subr.bf16.mxu0 %v3615
    %4041 = vmatpush1.bf16.msra.mxu0 %v3614
    %4042 = vmatprep.subr.bf16.mxu0 %v3611
    %4043 = vmatpush1.bf16.msra.mxu0 %v3610
    %4044 = vmatprep.subr.bf16.mxu0 %v3607
    %4045 = vmatpush1.bf16.msra.mxu0 %v3606
    %4046 = vmatprep.subr.bf16.mxu0 %v3603
    %4047 = vmatpush1.bf16.msra.mxu0 %v3602
    %4048 = vmatprep.subr.bf16.mxu0 %v3599
    %4049 = vmatpush1.bf16.msra.mxu0 %v3598
    %4050 = vmatprep.subr.bf16.mxu0 %v3595
    %4051 = vmatpush1.bf16.msra.mxu0 %v3594
    %4052 = vmatprep.subr.bf16.mxu0 %v3591
    %4053 = vmatpush1.bf16.msra.mxu0 %v3590
    %4054 = vmatprep.subr.bf16.mxu0 0
    %4055 = vmatpush2.bf16.msra.mxu0 0
    %4056 = vmatprep.subr.bf16.mxu0 0
    %4057 = vmatpush2.bf16.msra.mxu0 0
    %4058 = vmatprep.subr.bf16.mxu0 0
    %4059 = vmatpush2.bf16.msra.mxu0 0
    %4060 = vmatprep.subr.bf16.mxu0 0
    %4061 = vmatpush2.bf16.msra.mxu0 0
    %4062 = vmatprep.subr.bf16.mxu0 0
    %4063 = vmatpush2.bf16.msra.mxu0 0
    %4064 = vmatprep.subr.bf16.mxu0 0
    %4065 = vmatpush2.bf16.msra.mxu0 0
    %4066 = vmatprep.subr.bf16.mxu0 0
    %4067 = vmatpush2.bf16.msra.mxu0 0
    %4068 = vmatprep.subr.bf16.mxu0 0
    %4069 = vmatpush2.bf16.msra.mxu0 0
    %4070 = vmatprep.mubr.bf16.mxu0 0
    %4071 = vmatmul.mubr.bf16.gmra.mxu0 %v3996
    %v4072 = vpop.f32.mrf.mxu0
    %v4073 = vadd.f32 0.0, %v4072
    %v4074 = vpop.f32.mrf.mxu0
    %v4075 = vadd.f32 0.0, %v4074
    %v4076 = vpop.f32.mrf.mxu0
    %v4077 = vpop.f32.mrf.mxu0
    %4078 = vdwg.mxu0
    %v4079 = vadd.f32 %v3992, %v4032
    %v4080 = vadd.f32 %v3993, %v4034
    %v4081 = vadd.f32 %v3994, %v4073
    %v4082 = vadd.f32 %v3995, %v4075
    %v4083 = vxor.u32 %v4079, 2147483648
    %v4084 = vxor.u32 %v4080, 2147483648
    %v4085 = vxor.u32 %v4081, 2147483648
    %v4086 = vmul.f32 %v4083, 1.442695
    %v4087 = vpow.pop %v4086
    %v4088 = vmul.f32 %v4084, 1.442695
    %v4089 = vpow.pop %v4088
    %v4090 = vmul.f32 %v4085, 1.442695
    %v4091 = vpow.pop %v4090
    %v4092 = vadd.f32 %v4087, 1.0
    %v4093 = vadd.f32 %v4089, 1.0
    %v4094 = vadd.f32 %v4091, 1.0
    %v4095 = vrcp.pop %v4092
    %v4096 = vmul.f32 1.0, %v4095
    %v4097 = vrcp.pop %v4093
    %v4098 = vmul.f32 1.0, %v4097
    %v4099 = vrcp.pop %v4094
    %v4100 = vmul.f32 1.0, %v4099
    %v4101 = vtanh.pop %v4082
    %v4102 = vmul.f32 %v4098, %v3989
    %v4103 = vmul.f32 %v4096, %v4101
    %v4104 = vadd.f32 %v4102, %v4103
    %v4105 = vtanh.pop %v4104
    %v4106 = vmul.f32 %v4100, %v4105
    %v4107 = vld [vmem:[#allocation2 + $0x80] sm:$0xff]
    %v4108 = vld [vmem:[#allocation2 + $0x88] sm:$0xff]
    %v4109 = vld [vmem:[#allocation2 + $0x90] sm:$0xff]
    %v4110 = vld [vmem:[#allocation2 + $0x98] sm:$0xff]
    %v4111 = vpack.c.bf16 %v4106, %v4106
    %4112 = vmatprep.subr.bf16.mxu0 %v3617
    %4113 = vmatpush1.bf16.msra.mxu0 %v3616
    %4114 = vmatprep.subr.bf16.mxu0 %v3613
    %4115 = vmatpush1.bf16.msra.mxu0 %v3612
    %4116 = vmatprep.subr.bf16.mxu0 %v3609
    %4117 = vmatpush1.bf16.msra.mxu0 %v3608
    %4118 = vmatprep.subr.bf16.mxu0 %v3605
    %4119 = vmatpush1.bf16.msra.mxu0 %v3604
    %4120 = vmatprep.subr.bf16.mxu0 %v3601
    %4121 = vmatpush1.bf16.msra.mxu0 %v3600
    %4122 = vmatprep.subr.bf16.mxu0 %v3597
    %4123 = vmatpush1.bf16.msra.mxu0 %v3596
    %4124 = vmatprep.subr.bf16.mxu0 %v3593
    %4125 = vmatpush1.bf16.msra.mxu0 %v3592
    %4126 = vmatprep.subr.bf16.mxu0 %v3589
    %4127 = vmatpush1.bf16.msra.mxu0 %v3588
    %4128 = vmatprep.subr.bf16.mxu0 0
    %4129 = vmatpush2.bf16.msra.mxu0 0
    %4130 = vmatprep.subr.bf16.mxu0 0
    %4131 = vmatpush2.bf16.msra.mxu0 0
    %4132 = vmatprep.subr.bf16.mxu0 0
    %4133 = vmatpush2.bf16.msra.mxu0 0
    %4134 = vmatprep.subr.bf16.mxu0 0
    %4135 = vmatpush2.bf16.msra.mxu0 0
    %4136 = vmatprep.subr.bf16.mxu0 0
    %4137 = vmatpush2.bf16.msra.mxu0 0
    %4138 = vmatprep.subr.bf16.mxu0 0
    %4139 = vmatpush2.bf16.msra.mxu0 0
    %4140 = vmatprep.subr.bf16.mxu0 0
    %4141 = vmatpush2.bf16.msra.mxu0 0
    %4142 = vmatprep.subr.bf16.mxu0 0
    %4143 = vmatpush2.bf16.msra.mxu0 0
    %4144 = vmatprep.mubr.bf16.mxu0 0
    %4145 = vmatmul.mubr.bf16.gmra.mxu0 %v4111
    %v4146 = vpop.f32.mrf.mxu0
    %v4147 = vadd.f32 0.0, %v4146
    %v4148 = vpop.f32.mrf.mxu0
    %v4149 = vadd.f32 0.0, %v4148
    %v4150 = vpop.f32.mrf.mxu0
    %v4151 = vpop.f32.mrf.mxu0
    %4152 = vdwg.mxu0
    %4153 = vmatprep.subr.bf16.mxu0 %v3619
    %4154 = vmatpush1.bf16.msra.mxu0 %v3618
    %4155 = vmatprep.subr.bf16.mxu0 %v3615
    %4156 = vmatpush1.bf16.msra.mxu0 %v3614
    %4157 = vmatprep.subr.bf16.mxu0 %v3611
    %4158 = vmatpush1.bf16.msra.mxu0 %v3610
    %4159 = vmatprep.subr.bf16.mxu0 %v3607
    %4160 = vmatpush1.bf16.msra.mxu0 %v3606
    %4161 = vmatprep.subr.bf16.mxu0 %v3603
    %4162 = vmatpush1.bf16.msra.mxu0 %v3602
    %4163 = vmatprep.subr.bf16.mxu0 %v3599
    %4164 = vmatpush1.bf16.msra.mxu0 %v3598
    %4165 = vmatprep.subr.bf16.mxu0 %v3595
    %4166 = vmatpush1.bf16.msra.mxu0 %v3594
    %4167 = vmatprep.subr.bf16.mxu0 %v3591
    %4168 = vmatpush1.bf16.msra.mxu0 %v3590
    %4169 = vmatprep.subr.bf16.mxu0 0
    %4170 = vmatpush2.bf16.msra.mxu0 0
    %4171 = vmatprep.subr.bf16.mxu0 0
    %4172 = vmatpush2.bf16.msra.mxu0 0
    %4173 = vmatprep.subr.bf16.mxu0 0
    %4174 = vmatpush2.bf16.msra.mxu0 0
    %4175 = vmatprep.subr.bf16.mxu0 0
    %4176 = vmatpush2.bf16.msra.mxu0 0
    %4177 = vmatprep.subr.bf16.mxu0 0
    %4178 = vmatpush2.bf16.msra.mxu0 0
    %4179 = vmatprep.subr.bf16.mxu0 0
    %4180 = vmatpush2.bf16.msra.mxu0 0
    %4181 = vmatprep.subr.bf16.mxu0 0
    %4182 = vmatpush2.bf16.msra.mxu0 0
    %4183 = vmatprep.subr.bf16.mxu0 0
    %4184 = vmatpush2.bf16.msra.mxu0 0
    %4185 = vmatprep.mubr.bf16.mxu0 0
    %4186 = vmatmul.mubr.bf16.gmra.mxu0 %v4111
    %v4187 = vpop.f32.mrf.mxu0
    %v4188 = vadd.f32 0.0, %v4187
    %v4189 = vpop.f32.mrf.mxu0
    %v4190 = vadd.f32 0.0, %v4189
    %v4191 = vpop.f32.mrf.mxu0
    %v4192 = vpop.f32.mrf.mxu0
    %4193 = vdwg.mxu0
    %v4194 = vadd.f32 %v4107, %v4147
    %v4195 = vadd.f32 %v4108, %v4149
    %v4196 = vadd.f32 %v4109, %v4188
    %v4197 = vadd.f32 %v4110, %v4190
    %v4198 = vxor.u32 %v4194, 2147483648
    %v4199 = vxor.u32 %v4195, 2147483648
    %v4200 = vxor.u32 %v4196, 2147483648
    %v4201 = vmul.f32 %v4198, 1.442695
    %v4202 = vpow.pop %v4201
    %v4203 = vmul.f32 %v4199, 1.442695
    %v4204 = vpow.pop %v4203
    %v4205 = vmul.f32 %v4200, 1.442695
    %v4206 = vpow.pop %v4205
    %v4207 = vadd.f32 %v4202, 1.0
    %v4208 = vadd.f32 %v4204, 1.0
    %v4209 = vadd.f32 %v4206, 1.0
    %v4210 = vrcp.pop %v4207
    %v4211 = vmul.f32 1.0, %v4210
    %v4212 = vrcp.pop %v4208
    %v4213 = vmul.f32 1.0, %v4212
    %v4214 = vrcp.pop %v4209
    %v4215 = vmul.f32 1.0, %v4214
    %v4216 = vtanh.pop %v4197
    %v4217 = vmul.f32 %v4213, %v4104
    %v4218 = vmul.f32 %v4211, %v4216
    %v4219 = vadd.f32 %v4217, %v4218
    %v4220 = vtanh.pop %v4219
    %v4221 = vmul.f32 %v4215, %v4220
    %v4222 = vld [vmem:[#allocation2 + $0xa0] sm:$0xff]
    %v4223 = vld [vmem:[#allocation2 + $0xa8] sm:$0xff]
    %v4224 = vld [vmem:[#allocation2 + $0xb0] sm:$0xff]
    %v4225 = vld [vmem:[#allocation2 + $0xb8] sm:$0xff]
    %v4226 = vpack.c.bf16 %v4221, %v4221
    %4227 = vmatprep.subr.bf16.mxu0 %v3617
    %4228 = vmatpush1.bf16.msra.mxu0 %v3616
    %4229 = vmatprep.subr.bf16.mxu0 %v3613
    %4230 = vmatpush1.bf16.msra.mxu0 %v3612
    %4231 = vmatprep.subr.bf16.mxu0 %v3609
    %4232 = vmatpush1.bf16.msra.mxu0 %v3608
    %4233 = vmatprep.subr.bf16.mxu0 %v3605
    %4234 = vmatpush1.bf16.msra.mxu0 %v3604
    %4235 = vmatprep.subr.bf16.mxu0 %v3601
    %4236 = vmatpush1.bf16.msra.mxu0 %v3600
    %4237 = vmatprep.subr.bf16.mxu0 %v3597
    %4238 = vmatpush1.bf16.msra.mxu0 %v3596
    %4239 = vmatprep.subr.bf16.mxu0 %v3593
    %4240 = vmatpush1.bf16.msra.mxu0 %v3592
    %4241 = vmatprep.subr.bf16.mxu0 %v3589
    %4242 = vmatpush1.bf16.msra.mxu0 %v3588
    %4243 = vmatprep.subr.bf16.mxu0 0
    %4244 = vmatpush2.bf16.msra.mxu0 0
    %4245 = vmatprep.subr.bf16.mxu0 0
    %4246 = vmatpush2.bf16.msra.mxu0 0
    %4247 = vmatprep.subr.bf16.mxu0 0
    %4248 = vmatpush2.bf16.msra.mxu0 0
    %4249 = vmatprep.subr.bf16.mxu0 0
    %4250 = vmatpush2.bf16.msra.mxu0 0
    %4251 = vmatprep.subr.bf16.mxu0 0
    %4252 = vmatpush2.bf16.msra.mxu0 0
    %4253 = vmatprep.subr.bf16.mxu0 0
    %4254 = vmatpush2.bf16.msra.mxu0 0
    %4255 = vmatprep.subr.bf16.mxu0 0
    %4256 = vmatpush2.bf16.msra.mxu0 0
    %4257 = vmatprep.subr.bf16.mxu0 0
    %4258 = vmatpush2.bf16.msra.mxu0 0
    %4259 = vmatprep.mubr.bf16.mxu0 0
    %4260 = vmatmul.mubr.bf16.gmra.mxu0 %v4226
    %v4261 = vpop.f32.mrf.mxu0
    %v4262 = vadd.f32 0.0, %v4261
    %v4263 = vpop.f32.mrf.mxu0
    %v4264 = vadd.f32 0.0, %v4263
    %v4265 = vpop.f32.mrf.mxu0
    %v4266 = vpop.f32.mrf.mxu0
    %4267 = vdwg.mxu0
    %4268 = vmatprep.subr.bf16.mxu0 %v3619
    %4269 = vmatpush1.bf16.msra.mxu0 %v3618
    %4270 = vmatprep.subr.bf16.mxu0 %v3615
    %4271 = vmatpush1.bf16.msra.mxu0 %v3614
    %4272 = vmatprep.subr.bf16.mxu0 %v3611
    %4273 = vmatpush1.bf16.msra.mxu0 %v3610
    %4274 = vmatprep.subr.bf16.mxu0 %v3607
    %4275 = vmatpush1.bf16.msra.mxu0 %v3606
    %4276 = vmatprep.subr.bf16.mxu0 %v3603
    %4277 = vmatpush1.bf16.msra.mxu0 %v3602
    %4278 = vmatprep.subr.bf16.mxu0 %v3599
    %4279 = vmatpush1.bf16.msra.mxu0 %v3598
    %4280 = vmatprep.subr.bf16.mxu0 %v3595
    %4281 = vmatpush1.bf16.msra.mxu0 %v3594
    %4282 = vmatprep.subr.bf16.mxu0 %v3591
    %4283 = vmatpush1.bf16.msra.mxu0 %v3590
    %4284 = vmatprep.subr.bf16.mxu0 0
    %4285 = vmatpush2.bf16.msra.mxu0 0
    %4286 = vmatprep.subr.bf16.mxu0 0
    %4287 = vmatpush2.bf16.msra.mxu0 0
    %4288 = vmatprep.subr.bf16.mxu0 0
    %4289 = vmatpush2.bf16.msra.mxu0 0
    %4290 = vmatprep.subr.bf16.mxu0 0
    %4291 = vmatpush2.bf16.msra.mxu0 0
    %4292 = vmatprep.subr.bf16.mxu0 0
    %4293 = vmatpush2.bf16.msra.mxu0 0
    %4294 = vmatprep.subr.bf16.mxu0 0
    %4295 = vmatpush2.bf16.msra.mxu0 0
    %4296 = vmatprep.subr.bf16.mxu0 0
    %4297 = vmatpush2.bf16.msra.mxu0 0
    %4298 = vmatprep.subr.bf16.mxu0 0
    %4299 = vmatpush2.bf16.msra.mxu0 0
    %4300 = vmatprep.mubr.bf16.mxu0 0
    %4301 = vmatmul.mubr.bf16.gmra.mxu0 %v4226
    %v4302 = vpop.f32.mrf.mxu0
    %v4303 = vadd.f32 0.0, %v4302
    %v4304 = vpop.f32.mrf.mxu0
    %v4305 = vadd.f32 0.0, %v4304
    %v4306 = vpop.f32.mrf.mxu0
    %v4307 = vpop.f32.mrf.mxu0
    %4308 = vdwg.mxu0
    %v4309 = vadd.f32 %v4222, %v4262
    %v4310 = vadd.f32 %v4223, %v4264
    %v4311 = vadd.f32 %v4224, %v4303
    %v4312 = vadd.f32 %v4225, %v4305
    %v4313 = vxor.u32 %v4309, 2147483648
    %v4314 = vxor.u32 %v4310, 2147483648
    %v4315 = vxor.u32 %v4311, 2147483648
    %v4316 = vmul.f32 %v4313, 1.442695
    %v4317 = vpow.pop %v4316
    %v4318 = vmul.f32 %v4314, 1.442695
    %v4319 = vpow.pop %v4318
    %v4320 = vmul.f32 %v4315, 1.442695
    %v4321 = vpow.pop %v4320
    %v4322 = vadd.f32 %v4317, 1.0
    %v4323 = vadd.f32 %v4319, 1.0
    %v4324 = vadd.f32 %v4321, 1.0
    %v4325 = vrcp.pop %v4322
    %v4326 = vmul.f32 1.0, %v4325
    %v4327 = vrcp.pop %v4323
    %v4328 = vmul.f32 1.0, %v4327
    %v4329 = vrcp.pop %v4324
    %v4330 = vmul.f32 1.0, %v4329
    %v4331 = vtanh.pop %v4312
    %v4332 = vmul.f32 %v4328, %v4219
    %v4333 = vmul.f32 %v4326, %v4331
    %v4334 = vadd.f32 %v4332, %v4333
    %v4335 = vtanh.pop %v4334
    %v4336 = vmul.f32 %v4330, %v4335
    %v4337 = vld [vmem:[#allocation2 + $0xc0] sm:$0xff]
    %v4338 = vld [vmem:[#allocation2 + $0xc8] sm:$0xff]
    %v4339 = vld [vmem:[#allocation2 + $0xd0] sm:$0xff]
    %v4340 = vld [vmem:[#allocation2 + $0xd8] sm:$0xff]
    %v4341 = vpack.c.bf16 %v4336, %v4336
    %4342 = vmatprep.subr.bf16.mxu0 %v3617
    %4343 = vmatpush1.bf16.msra.mxu0 %v3616
    %4344 = vmatprep.subr.bf16.mxu0 %v3613
    %4345 = vmatpush1.bf16.msra.mxu0 %v3612
    %4346 = vmatprep.subr.bf16.mxu0 %v3609
    %4347 = vmatpush1.bf16.msra.mxu0 %v3608
    %4348 = vmatprep.subr.bf16.mxu0 %v3605
    %4349 = vmatpush1.bf16.msra.mxu0 %v3604
    %4350 = vmatprep.subr.bf16.mxu0 %v3601
    %4351 = vmatpush1.bf16.msra.mxu0 %v3600
    %4352 = vmatprep.subr.bf16.mxu0 %v3597
    %4353 = vmatpush1.bf16.msra.mxu0 %v3596
    %4354 = vmatprep.subr.bf16.mxu0 %v3593
    %4355 = vmatpush1.bf16.msra.mxu0 %v3592
    %4356 = vmatprep.subr.bf16.mxu0 %v3589
    %4357 = vmatpush1.bf16.msra.mxu0 %v3588
    %4358 = vmatprep.subr.bf16.mxu0 0
    %4359 = vmatpush2.bf16.msra.mxu0 0
    %4360 = vmatprep.subr.bf16.mxu0 0
    %4361 = vmatpush2.bf16.msra.mxu0 0
    %4362 = vmatprep.subr.bf16.mxu0 0
    %4363 = vmatpush2.bf16.msra.mxu0 0
    %4364 = vmatprep.subr.bf16.mxu0 0
    %4365 = vmatpush2.bf16.msra.mxu0 0
    %4366 = vmatprep.subr.bf16.mxu0 0
    %4367 = vmatpush2.bf16.msra.mxu0 0
    %4368 = vmatprep.subr.bf16.mxu0 0
    %4369 = vmatpush2.bf16.msra.mxu0 0
    %4370 = vmatprep.subr.bf16.mxu0 0
    %4371 = vmatpush2.bf16.msra.mxu0 0
    %4372 = vmatprep.subr.bf16.mxu0 0
    %4373 = vmatpush2.bf16.msra.mxu0 0
    %4374 = vmatprep.mubr.bf16.mxu0 0
    %4375 = vmatmul.mubr.bf16.gmra.mxu0 %v4341
    %v4376 = vpop.f32.mrf.mxu0
    %v4377 = vadd.f32 0.0, %v4376
    %v4378 = vpop.f32.mrf.mxu0
    %v4379 = vadd.f32 0.0, %v4378
    %v4380 = vpop.f32.mrf.mxu0
    %v4381 = vpop.f32.mrf.mxu0
    %4382 = vdwg.mxu0
    %4383 = vmatprep.subr.bf16.mxu0 %v3619
    %4384 = vmatpush1.bf16.msra.mxu0 %v3618
    %4385 = vmatprep.subr.bf16.mxu0 %v3615
    %4386 = vmatpush1.bf16.msra.mxu0 %v3614
    %4387 = vmatprep.subr.bf16.mxu0 %v3611
    %4388 = vmatpush1.bf16.msra.mxu0 %v3610
    %4389 = vmatprep.subr.bf16.mxu0 %v3607
    %4390 = vmatpush1.bf16.msra.mxu0 %v3606
    %4391 = vmatprep.subr.bf16.mxu0 %v3603
    %4392 = vmatpush1.bf16.msra.mxu0 %v3602
    %4393 = vmatprep.subr.bf16.mxu0 %v3599
    %4394 = vmatpush1.bf16.msra.mxu0 %v3598
    %4395 = vmatprep.subr.bf16.mxu0 %v3595
    %4396 = vmatpush1.bf16.msra.mxu0 %v3594
    %4397 = vmatprep.subr.bf16.mxu0 %v3591
    %4398 = vmatpush1.bf16.msra.mxu0 %v3590
    %4399 = vmatprep.subr.bf16.mxu0 0
    %4400 = vmatpush2.bf16.msra.mxu0 0
    %4401 = vmatprep.subr.bf16.mxu0 0
    %4402 = vmatpush2.bf16.msra.mxu0 0
    %4403 = vmatprep.subr.bf16.mxu0 0
    %4404 = vmatpush2.bf16.msra.mxu0 0
    %4405 = vmatprep.subr.bf16.mxu0 0
    %4406 = vmatpush2.bf16.msra.mxu0 0
    %4407 = vmatprep.subr.bf16.mxu0 0
    %4408 = vmatpush2.bf16.msra.mxu0 0
    %4409 = vmatprep.subr.bf16.mxu0 0
    %4410 = vmatpush2.bf16.msra.mxu0 0
    %4411 = vmatprep.subr.bf16.mxu0 0
    %4412 = vmatpush2.bf16.msra.mxu0 0
    %4413 = vmatprep.subr.bf16.mxu0 0
    %4414 = vmatpush2.bf16.msra.mxu0 0
    %4415 = vmatprep.mubr.bf16.mxu0 0
    %4416 = vmatmul.mubr.bf16.gmra.mxu0 %v4341
    %v4417 = vpop.f32.mrf.mxu0
    %v4418 = vadd.f32 0.0, %v4417
    %v4419 = vpop.f32.mrf.mxu0
    %v4420 = vadd.f32 0.0, %v4419
    %v4421 = vpop.f32.mrf.mxu0
    %v4422 = vpop.f32.mrf.mxu0
    %4423 = vdwg.mxu0
    %v4424 = vadd.f32 %v4337, %v4377
    %v4425 = vadd.f32 %v4338, %v4379
    %v4426 = vadd.f32 %v4339, %v4418
    %v4427 = vadd.f32 %v4340, %v4420
    %v4428 = vxor.u32 %v4424, 2147483648
    %v4429 = vxor.u32 %v4425, 2147483648
    %v4430 = vxor.u32 %v4426, 2147483648
    %v4431 = vmul.f32 %v4428, 1.442695
    %v4432 = vpow.pop %v4431
    %v4433 = vmul.f32 %v4429, 1.442695
    %v4434 = vpow.pop %v4433
    %v4435 = vmul.f32 %v4430, 1.442695
    %v4436 = vpow.pop %v4435
    %v4437 = vadd.f32 %v4432, 1.0
    %v4438 = vadd.f32 %v4434, 1.0
    %v4439 = vadd.f32 %v4436, 1.0
    %v4440 = vrcp.pop %v4437
    %v4441 = vmul.f32 1.0, %v4440
    %v4442 = vrcp.pop %v4438
    %v4443 = vmul.f32 1.0, %v4442
    %v4444 = vrcp.pop %v4439
    %v4445 = vmul.f32 1.0, %v4444
    %v4446 = vtanh.pop %v4427
    %v4447 = vmul.f32 %v4443, %v4334
    %v4448 = vmul.f32 %v4441, %v4446
    %v4449 = vadd.f32 %v4447, %v4448
    %v4450 = vtanh.pop %v4449
    %v4451 = vmul.f32 %v4445, %v4450
    %v4452 = vld [vmem:[#allocation2 + $0xe0] sm:$0xff]
    %v4453 = vld [vmem:[#allocation2 + $0xe8] sm:$0xff]
    %v4454 = vld [vmem:[#allocation2 + $0xf0] sm:$0xff]
    %v4455 = vld [vmem:[#allocation2 + $0xf8] sm:$0xff]
    %v4456 = vpack.c.bf16 %v4451, %v4451
    %4457 = vmatprep.subr.bf16.mxu0 %v3617
    %4458 = vmatpush1.bf16.msra.mxu0 %v3616
    %4459 = vmatprep.subr.bf16.mxu0 %v3613
    %4460 = vmatpush1.bf16.msra.mxu0 %v3612
    %4461 = vmatprep.subr.bf16.mxu0 %v3609
    %4462 = vmatpush1.bf16.msra.mxu0 %v3608
    %4463 = vmatprep.subr.bf16.mxu0 %v3605
    %4464 = vmatpush1.bf16.msra.mxu0 %v3604
    %4465 = vmatprep.subr.bf16.mxu0 %v3601
    %4466 = vmatpush1.bf16.msra.mxu0 %v3600
    %4467 = vmatprep.subr.bf16.mxu0 %v3597
    %4468 = vmatpush1.bf16.msra.mxu0 %v3596
    %4469 = vmatprep.subr.bf16.mxu0 %v3593
    %4470 = vmatpush1.bf16.msra.mxu0 %v3592
    %4471 = vmatprep.subr.bf16.mxu0 %v3589
    %4472 = vmatpush1.bf16.msra.mxu0 %v3588
    %4473 = vmatprep.subr.bf16.mxu0 0
    %4474 = vmatpush2.bf16.msra.mxu0 0
    %4475 = vmatprep.subr.bf16.mxu0 0
    %4476 = vmatpush2.bf16.msra.mxu0 0
    %4477 = vmatprep.subr.bf16.mxu0 0
    %4478 = vmatpush2.bf16.msra.mxu0 0
    %4479 = vmatprep.subr.bf16.mxu0 0
    %4480 = vmatpush2.bf16.msra.mxu0 0
    %4481 = vmatprep.subr.bf16.mxu0 0
    %4482 = vmatpush2.bf16.msra.mxu0 0
    %4483 = vmatprep.subr.bf16.mxu0 0
    %4484 = vmatpush2.bf16.msra.mxu0 0
    %4485 = vmatprep.subr.bf16.mxu0 0
    %4486 = vmatpush2.bf16.msra.mxu0 0
    %4487 = vmatprep.subr.bf16.mxu0 0
    %4488 = vmatpush2.bf16.msra.mxu0 0
    %4489 = vmatprep.mubr.bf16.mxu0 0
    %4490 = vmatmul.mubr.bf16.gmra.mxu0 %v4456
    %v4491 = vpop.f32.mrf.mxu0
    %v4492 = vadd.f32 0.0, %v4491
    %v4493 = vpop.f32.mrf.mxu0
    %v4494 = vadd.f32 0.0, %v4493
    %v4495 = vpop.f32.mrf.mxu0
    %v4496 = vpop.f32.mrf.mxu0
    %4497 = vdwg.mxu0
    %4498 = vmatprep.subr.bf16.mxu0 %v3619
    %4499 = vmatpush1.bf16.msra.mxu0 %v3618
    %4500 = vmatprep.subr.bf16.mxu0 %v3615
    %4501 = vmatpush1.bf16.msra.mxu0 %v3614
    %4502 = vmatprep.subr.bf16.mxu0 %v3611
    %4503 = vmatpush1.bf16.msra.mxu0 %v3610
    %4504 = vmatprep.subr.bf16.mxu0 %v3607
    %4505 = vmatpush1.bf16.msra.mxu0 %v3606
    %4506 = vmatprep.subr.bf16.mxu0 %v3603
    %4507 = vmatpush1.bf16.msra.mxu0 %v3602
    %4508 = vmatprep.subr.bf16.mxu0 %v3599
    %4509 = vmatpush1.bf16.msra.mxu0 %v3598
    %4510 = vmatprep.subr.bf16.mxu0 %v3595
    %4511 = vmatpush1.bf16.msra.mxu0 %v3594
    %4512 = vmatprep.subr.bf16.mxu0 %v3591
    %4513 = vmatpush1.bf16.msra.mxu0 %v3590
    %4514 = vmatprep.subr.bf16.mxu0 0
    %4515 = vmatpush2.bf16.msra.mxu0 0
    %4516 = vmatprep.subr.bf16.mxu0 0
    %4517 = vmatpush2.bf16.msra.mxu0 0
    %4518 = vmatprep.subr.bf16.mxu0 0
    %4519 = vmatpush2.bf16.msra.mxu0 0
    %4520 = vmatprep.subr.bf16.mxu0 0
    %4521 = vmatpush2.bf16.msra.mxu0 0
    %4522 = vmatprep.subr.bf16.mxu0 0
    %4523 = vmatpush2.bf16.msra.mxu0 0
    %4524 = vmatprep.subr.bf16.mxu0 0
    %4525 = vmatpush2.bf16.msra.mxu0 0
    %4526 = vmatprep.subr.bf16.mxu0 0
    %4527 = vmatpush2.bf16.msra.mxu0 0
    %4528 = vmatprep.subr.bf16.mxu0 0
    %4529 = vmatpush2.bf16.msra.mxu0 0
    %4530 = vmatprep.mubr.bf16.mxu0 0
    %4531 = vmatmul.mubr.bf16.gmra.mxu0 %v4456
    %v4532 = vpop.f32.mrf.mxu0
    %v4533 = vadd.f32 0.0, %v4532
    %v4534 = vpop.f32.mrf.mxu0
    %v4535 = vadd.f32 0.0, %v4534
    %v4536 = vpop.f32.mrf.mxu0
    %v4537 = vpop.f32.mrf.mxu0
    %4538 = vdwg.mxu0
    %v4539 = vadd.f32 %v4452, %v4492
    %v4540 = vadd.f32 %v4453, %v4494
    %v4541 = vadd.f32 %v4454, %v4533
    %v4542 = vadd.f32 %v4455, %v4535
    %v4543 = vxor.u32 %v4539, 2147483648
    %v4544 = vxor.u32 %v4540, 2147483648
    %v4545 = vxor.u32 %v4541, 2147483648
    %v4546 = vmul.f32 %v4543, 1.442695
    %v4547 = vpow.pop %v4546
    %v4548 = vmul.f32 %v4544, 1.442695
    %v4549 = vpow.pop %v4548
    %v4550 = vmul.f32 %v4545, 1.442695
    %v4551 = vpow.pop %v4550
    %v4552 = vadd.f32 %v4547, 1.0
    %v4553 = vadd.f32 %v4549, 1.0
    %v4554 = vadd.f32 %v4551, 1.0
    %v4555 = vrcp.pop %v4552
    %v4556 = vmul.f32 1.0, %v4555
    %v4557 = vrcp.pop %v4553
    %v4558 = vmul.f32 1.0, %v4557
    %v4559 = vrcp.pop %v4554
    %v4560 = vmul.f32 1.0, %v4559
    %v4561 = vtanh.pop %v4542
    %v4562 = vmul.f32 %v4558, %v4449
    %v4563 = vmul.f32 %v4556, %v4561
    %v4564 = vadd.f32 %v4562, %v4563
    %v4565 = vtanh.pop %v4564
    %v4566 = vmul.f32 %v4560, %v4565
    %v4567 = vld [vmem:[%s9] sm:$0x1]
    %v4569 = vlaneseq
    %v4570 = vshrl.u32 %v4569, 7
    %v4571 = vsub.s32 0, %v4570
    %v4572 = vrot.slane %v4567, %v4571
    %v4574 = vmul.f32 %v4566, %v4572
    %4575 = vadd.xlane.f32.xlu0 %v4574
    %v4576 = vpop.xlane.xlu0 %4575
    %v4577 = vld [vmem:[#allocation4] sm:$0x1]
    %v4579 = vlaneseq
    %v4580 = vshrl.u32 %v4579, 7
    %v4581 = vsub.s32 0, %v4580
    %v4582 = vrot.slane %v4577, %v4581
    %v4584 = vadd.f32 %v4576, %v4582
    %v4585 = vxor.u32 %v4584, 2147483648
    %v4586 = vmul.f32 %v4585, 1.442695
    %v4587 = vpow.pop %v4586
    %v4588 = vadd.f32 %v4587, 1.0
    %v4589 = vrcp.pop %v4588
    %v4590 = vmul.f32 1.0, %v4589
    %vm4591 = vcmask 7168
    %4592 = vst.msk [vmem:[%s11] sm:$0xff] %vm4591, %v4590
    // Predicated region
    $region74: #{tpu_custom_call.1} parent=1 // pred_check
      _
    $region75: #{tpu_custom_call.1} parent=1 // pred_check_branch
      %4594 = sbr.rel (0) target = $region77
    $region76: #{tpu_custom_call.1} parent=1 // pred_region
      _
    $region77: #{tpu_custom_call.1} parent=1 // pred_fallthru
      _
    // Predicated region
    $region78: #{tpu_custom_call.1} parent=1 // pred_check
      _
    $region79: #{tpu_custom_call.1} parent=1 // pred_check_branch
      %4596 = sbr.rel (0) target = $region81
    $region80: #{tpu_custom_call.1} parent=1 // pred_region
      _
    $region81: #{tpu_custom_call.1} parent=1 // pred_fallthru
      _
    %4597 = vsyncpa [#allocation6], 1
    %4598 = vsyncpa [#allocation8], 1
    %4599 = vsyncpa [#allocation11], 1
    %4600 = vsyncpa [#allocation14], 1

</llo_original>
